<compile_context>
chip_gen: v7x
topology: tpu7x:2x2x1
jax: 0.10.0
libtpu: 0.0.40
codegen_flags: <defaults>
</compile_context>

<pallas_src>
import math

import jax
import jax.numpy as jnp
from jax import lax
from jax.experimental import pallas as pl
from jax.experimental.pallas import tpu as pltpu

POINTS_DIM = 3
CHANNEL_MAP = lambda x: POINTS_DIM + x
BN_EPS = 1e-5
LEAKY_SLOPE = 0.2


def _round_up(x, m):
    return ((x + m - 1) // m) * m


def _tpu_generation():
    """Coarse chip-generation detection from device_kind ('v5' / 'v6' / 'v7')."""
    try:
        kind = jax.devices()[0].device_kind.lower()
    except Exception:
        kind = ""
    if "v5" in kind:
        return "v5"
    if "v7" in kind or "7x" in kind:
        return "v7"
    return "v6"


# --------------------------------------------------------------------------------------
# Pallas kernel: fused (1x1 conv [BN-folded] -> bias -> LeakyReLU)* -> sigmoid(||dp||)*h
#                -> max over K neighbours -> transposed (Cout, TM) store
# --------------------------------------------------------------------------------------
def make_mlp_kernel(n_layers, tm, k, c_out):
    def kernel(x_ref, *refs):
        o_ref = refs[-1]
        p_refs = refs[:-1]                              # (w_folded, bias) per layer

        x = x_ref[0]                                    # (TM*K, Cin_pad) bf16
        h = x
        for li in range(n_layers):
            w = p_refs[2 * li][...]                     # (Cin_i, Cout_i) bf16, BN-folded
            b = p_refs[2 * li + 1][...]                 # (1, Cout_i) f32
            h32 = jnp.dot(h, w, preferred_element_type=jnp.float32) + b
            h32 = jnp.maximum(h32, LEAKY_SLOPE * h32)   # LeakyReLU(0.2), f32, single VALU op
            h = h32.astype(jnp.bfloat16) if li < n_layers - 1 else h32

        # Gate computed late (short live range; EUP sqrt/sigmoid overlap the last matmul).
        # dp channels are already radius-normalized -> sigmoid(||dp||/radius).
        dp = x[:, :POINTS_DIM].astype(jnp.float32)
        gate = jax.nn.sigmoid(
            jnp.sqrt(jnp.sum(dp * dp, axis=-1, keepdims=True)))    # (TM*K, 1) f32

        h = gate * h                                    # gate on flat (TM*K, Cout) layout
        y = jnp.max(h.reshape(tm, k, c_out), axis=1)    # max over K -> (TM, Cout)
        o_ref[...] = jnp.transpose(y, (1, 0)).reshape(1, c_out, tm).astype(o_ref.dtype)

    return kernel


def _choose_tm(m_pad, per_q_bytes, budget_bytes, need_two_tiles):
    """Largest M-tile that divides the (128-padded) M, fits the per-stage VMEM budget and
    (only when the batch axis cannot feed both v7x cores) leaves >=2 tiles along M."""
    for t in (2048, 1024, 512, 256, 128):
        if m_pad % t:
            continue
        if need_two_tiles and m_pad // t < 2:
            continue
        if t * per_q_bytes <= budget_bytes:
            return t
    return 128


def msg_mlp_max(x_flat, params_folded, m_pad, k, *, gen, batch):
    """x_flat: (B, M_pad*K, Cin_pad) bf16 -> (B, Cout_pad, M_pad) f32."""
    B = x_flat.shape[0]
    cin_pad = x_flat.shape[-1]
    n_layers = len(params_folded)
    c_out = params_folded[-1][0].shape[1]
    c_max = max(w.shape[1] for w, _ in params_folded)

    # Generation-aware VMEM budgets (per pipeline stage) and scoped-VMEM limit.
    budget = (5 << 20) if gen == "v7" else (14 << 20)
    vmem_limit = (48 << 20) if gen == "v7" else (96 << 20)

    # Per-query-row live VMEM (bytes), including physical layout inflation.
    in_row_bytes = 2 * max(cin_pad, 128)          # bf16 input row, lane-padded physical
    per_q = (2 * k * in_row_bytes                 # input block, double-buffered
             + 6 * k * c_max                      # f32 h32 + overlapping bf16 h
             + 512 * k                            # (rows,1) f32 gate, lane-inflated
             + 4 * k * c_out                      # gated final-layer activations (f32)
             + 8 * c_out                          # (tm, c_out) max result + transpose temp
             + 8 * c_out)                         # (c_out, tm) f32 out tile, double-buffered
    w_bytes = 2 * sum(w.size * 2 + 8 * 128 * 4 for w, _ in params_folded)
    tm = _choose_tm(m_pad, per_q, budget - w_bytes, need_two_tiles=(batch < 2))

    in_specs = [pl.BlockSpec((1, tm * k, cin_pad), lambda b, mi: (b, mi, 0))]
    flat_params = []
    for (w, bias) in params_folded:
        flat_params += [w, bias]
        in_specs += [
            pl.BlockSpec(w.shape, lambda b, mi: (0, 0)),
            pl.BlockSpec(bias.shape, lambda b, mi: (0, 0)),
        ]
    out_spec = pl.BlockSpec((1, c_out, tm), lambda b, mi: (b, 0, mi))

    return pl.pallas_call(
        make_mlp_kernel(n_layers, tm, k, c_out),
        out_shape=jax.ShapeDtypeStruct((B, c_out, m_pad), jnp.float32),
        grid=(B, m_pad // tm),
        in_specs=in_specs,
        out_specs=out_spec,
        compiler_params=pltpu.CompilerParams(
            dimension_semantics=("parallel", "parallel"),
            vmem_limit_bytes=vmem_limit),
    )(x_flat, *flat_params)


# --------------------------------------------------------------------------------------
# Parameter preparation: fold BN scale into conv weights + pad to TPU-friendly widths
# --------------------------------------------------------------------------------------
def fold_and_pad_params(params, cin_pad, mxu_width):
    """params: list of (w (Cin,Cout), bn_scale (1,Cout), bn_bias (1,Cout)).
    Returns list of (w_folded_padded bf16, bias_padded f32) and the true final Cout.
    Zero padding is numerically inert (zero weight rows/cols, zero bias)."""
    folded = []
    prev = cin_pad
    n = len(params)
    for i, (w, scale, bias) in enumerate(params):
        cin, cout = w.shape
        if i == n - 1:
            cout_pad = _round_up(cout, 8)                 # f32 output: minimal pad
        else:
            cout_pad = _round_up(cout, 128)
            # v6e/v7x MXUs are 2x256x256: lift awkward widths within one 256 pass up to
            # 256; leave <=128 widths and 256-aligned widths alone (and 128 on v5e).
            if mxu_width == 256 and 128 < cout <= 256:
                cout_pad = 256
        w_folded = w * scale                              # fold BN scale (per out-ch)
        wp = jnp.zeros((prev, cout_pad), jnp.float32).at[:cin, :cout].set(w_folded)
        bp = jnp.zeros((1, cout_pad), jnp.float32).at[:, :cout].set(bias)
        folded.append((wp.astype(jnp.bfloat16), bp))
        prev = cout_pad
    return folded, params[-1][0].shape[1]


# --------------------------------------------------------------------------------------
# Plain-JAX glue (shift_point, FPS, ball query, grouping)
# --------------------------------------------------------------------------------------
def shift_point(points, stride):
    # points: (G, L, N, 3)
    assert stride in (-1, 0, 1)
    if stride == 0:
        return points
    shifted = jnp.roll(points, stride, axis=1)
    if stride < 0:
        shift_mean = jnp.mean(shifted[:, :-1] - points[:, :-1], axis=1)   # (G, N, 3)
        shifted = shifted.at[:, -1].set(points[:, -1] + shift_mean)
    else:
        shifted = shifted.at[:, 0].set(points[:, 0])
    return shifted


def furthest_point_sample(xyz, npoint):
    # xyz: (B, N, 3) -> idx (B, npoint) int32; first sampled index is 0 (pointnet2 conv.)
    # NOTE: sequential O(npoint) loop on XLA; known wrapper-side cost for large npoint.
    B, N, _ = xyz.shape

    def body(i, carry):
        dist, idx, farthest = carry
        centroid = jnp.take_along_axis(xyz, farthest[:, None, None], axis=1)  # (B,1,3)
        dnew = jnp.sum((xyz - centroid) ** 2, axis=-1)                        # (B, N)
        dist = jnp.minimum(dist, dnew)
        nxt = jnp.argmax(dist, axis=-1).astype(jnp.int32)
        idx = idx.at[:, i].set(nxt)
        return dist, idx, nxt

    dist0 = jnp.full((B, N), 1e10, jnp.float32)
    idx0 = jnp.zeros((B, npoint), jnp.int32)
    far0 = jnp.zeros((B,), jnp.int32)
    _, idx, _ = lax.fori_loop(1, npoint, body, (dist0, idx0, far0))
    return idx


def ball_query(radius, nsample, support_xyz, query_xyz):
    """support: (B, N, 3), query: (B, M, 3) -> idx (B, M, nsample) int32.
    Uses lax.top_k (k smallest in-ball indices) instead of a full argsort.
    Partially-filled balls pad with the first in-ball index; empty balls fall back to
    support index 0 (matches the zero-initialised pointnet2 CUDA kernel)."""
    B, N, _ = support_xyz.shape
    d2 = jnp.sum((query_xyz[:, :, None, :] - support_xyz[:, None, :, :]) ** 2, axis=-1)
    in_ball = d2 < radius * radius
    key = jnp.where(in_ball,
                    jnp.arange(N, dtype=jnp.float32)[None, None, :],
                    jnp.float32(N))
    neg_vals, _ = lax.top_k(-key, nsample)          # nsample smallest keys, ascending
    sel = (-neg_vals).astype(jnp.int32)             # support indices, or N if invalid
    valid = sel < N
    first = jnp.where(sel[:, :, :1] < N, sel[:, :, :1], 0)
    return jnp.where(valid, sel, first)


def _gather_points(points, idx):
    # points (B, N, D), idx (B, M, K) -> (B, M, K, D)
    return jax.vmap(lambda p, i: p[i])(points, idx)


# --------------------------------------------------------------------------------------
# PointNetSAModuleMSG forward
# --------------------------------------------------------------------------------------
def pointnet_sa_module_msg_forward(xyz, features, shape, params,
                                   *, stride, radius, nsamples):
    """xyz: (B, N, 3), features: (B, C, N) -> (query_xyz (B, M, 3), feats (B, Cout, M))."""
    B, N, _ = xyz.shape
    query_xyz = shift_point(
        xyz.reshape(B // shape[0], shape[0], -1, 3), -1).reshape(B, N, 3)

    if stride > 1:
        idx = furthest_point_sample(query_xyz, N // stride)       # (B, M)
        query_xyz = _gather_points(query_xyz, idx[:, :, None])[:, :, 0, :]
    M = query_xyz.shape[1]

    # QueryAndGroup(radius, nsamples, use_xyz=True, normalize_dp=True)
    nidx = ball_query(radius, nsamples, xyz, query_xyz)           # (B, M, K)

    k_pad = _round_up(nsamples, 8)
    if k_pad != nsamples:                                         # duplicate-pad: max() unchanged
        nidx = jnp.concatenate(
            [nidx, jnp.broadcast_to(nidx[:, :, :1], (B, M, k_pad - nsamples))], axis=-1)

    # Pad M to a multiple of 128 with dummy query points (sliced off after the kernel),
    # so the kernel always tiles M at the tuned size.
    m_pad = _round_up(M, 128)
    if m_pad != M:
        nidx = jnp.pad(nidx, ((0, 0), (0, m_pad - M), (0, 0)))
        q_group = jnp.pad(query_xyz, ((0, 0), (0, m_pad - M), (0, 0)))
    else:
        q_group = query_xyz

    grouped_xyz = _gather_points(xyz, nidx)                               # (B, Mp, K, 3)
    dp = ((grouped_xyz - q_group[:, :, None, :]) / radius).astype(jnp.bfloat16)
    feats_t = jnp.transpose(features, (0, 2, 1)).astype(jnp.bfloat16)     # (B, N, C) bf16
    grouped_feats = _gather_points(feats_t, nidx)                         # (B, Mp, K, C) bf16

    x_in = jnp.concatenate([dp, grouped_feats], axis=-1)                  # (B, Mp, K, 3+C)
    cin = x_in.shape[-1]
    # Dense lanes (128-pad) when cin is moderate; minimal 8-pad when cin is tiny.
    cin_pad = _round_up(cin, 128) if cin >= 64 else _round_up(cin, 8)
    if cin_pad != cin:
        x_in = jnp.pad(x_in, ((0, 0), (0, 0), (0, 0), (0, cin_pad - cin)))
    # Pre-flatten to matmul layout so the kernel block needs no relayout.
    x_flat = x_in.reshape(B, m_pad * k_pad, cin_pad)

    gen = _tpu_generation()
    params_folded, c_out_true = fold_and_pad_params(
        params, cin_pad, mxu_width=128 if gen == "v5" else 256)

    out = msg_mlp_max(x_flat, params_folded, m_pad, k_pad, gen=gen, batch=B)
    if out.shape[1] != c_out_true or out.shape[2] != M:
        out = out[:, :c_out_true, :M]
    return query_xyz, out                                                 # (B, Cout, M)


# --------------------------------------------------------------------------------------
# Deterministic parameter init (Conv2D: 1x1 conv no-bias + GroupBN2d + LeakyReLU)
# --------------------------------------------------------------------------------------
def init_params(key, channel_list):
    cl = list(channel_list)
    cl[0] = CHANNEL_MAP(cl[0])
    params = []
    for i in range(len(cl) - 1):
        key, k1, k2, k3, k4, k5 = jax.random.split(key, 6)
        cin, cout = cl[i], cl[i + 1]
        w = jax.random.normal(k1, (cin, cout), jnp.float32) / math.sqrt(cin)
        gamma = 1.0 + 0.1 * jax.random.normal(k2, (cout,), jnp.float32)
        beta = 0.1 * jax.random.normal(k3, (cout,), jnp.float32)
        rmean = 0.1 * jax.random.normal(k4, (cout,), jnp.float32)
        rvar = 1.0 + 0.1 * jax.random.uniform(k5, (cout,), jnp.float32)
        scale = gamma / jnp.sqrt(rvar + BN_EPS)       # BN (eval) folded scale / bias
        bias = beta - rmean * scale
        params.append((w, scale.reshape(1, cout), bias.reshape(1, cout)))
    return params


if __name__ == "__main__":
    key = jax.random.PRNGKey(0)
    L = 2                      # temporal length (shape[0]); B must be divisible by L
    B, N, C = 4, 16, 4         # batch, num points, feature channels
    stride, radius, nsamples = 2, 10.0, 8
    channel_list = [C, 16, 32]

    k1, k2, k3 = jax.random.split(key, 3)
    xyz = jax.random.normal(k1, (B, N, 3), jnp.float32)
    features = jax.random.normal(k2, (B, C, N), jnp.float32)
    params = init_params(k3, channel_list)

    query_xyz, feats = pointnet_sa_module_msg_forward(
        xyz, features, (L,), params,
        stride=stride, radius=radius, nsamples=nsamples)

    jax.block_until_ready((query_xyz, feats))
    assert query_xyz.shape == (B, N // stride, 3)
    assert feats.shape == (B, channel_list[-1], N // stride)
    print("KERNEL_OK")
</pallas_src>

<mosaic_0001>
module attributes {stable_mosaic.version = 11 : i64} {
  func.func @kernel(%arg0: i32, %arg1: i32, %arg2: memref<1x1024x8xbf16, #tpu.memory_space<vmem>>, %arg3: memref<8x128xbf16, #tpu.memory_space<vmem>>, %arg4: memref<1x128xf32, #tpu.memory_space<vmem>>, %arg5: memref<128x32xbf16, #tpu.memory_space<vmem>>, %arg6: memref<1x32xf32, #tpu.memory_space<vmem>>, %arg7: memref<1x32x128xf32, #tpu.memory_space<vmem>>) attributes {dimension_semantics = [#tpu.dimension_semantics<parallel>, #tpu.dimension_semantics<parallel>], iteration_bounds = array<i64: 4, 1>, scalar_prefetch = 0 : i64, scratch_operands = 0 : i64, tpu.core_type = #tpu.core_type<tc>, window_params = [{transform_indices = @transform_0, window_bounds = array<i64: 1, 1024, 8>}, {pipeline_mode = #tpu.pipeline_mode<synchronous>, transform_indices = @transform_1, window_bounds = array<i64: 8, 128>}, {pipeline_mode = #tpu.pipeline_mode<synchronous>, transform_indices = @transform_2, window_bounds = array<i64: 1, 128>}, {pipeline_mode = #tpu.pipeline_mode<synchronous>, transform_indices = @transform_3, window_bounds = array<i64: 128, 32>}, {pipeline_mode = #tpu.pipeline_mode<synchronous>, transform_indices = @transform_4, window_bounds = array<i64: 1, 32>}, {transform_indices = @transform_5, window_bounds = array<i64: 1, 32, 128>}]} {
    %c0 = arith.constant 0 : index
    %c0_0 = arith.constant 0 : index
    %c0_1 = arith.constant 0 : index
    %0 = vector.load %arg2[%c0, %c0_0, %c0_1] : memref<1x1024x8xbf16, #tpu.memory_space<vmem>>, vector<1x1024x8xbf16>
    %1 = vector.shape_cast %0 : vector<1x1024x8xbf16> to vector<1024x8xbf16>
    %c0_2 = arith.constant 0 : index
    %c0_3 = arith.constant 0 : index
    %2 = vector.load %arg3[%c0_2, %c0_3] : memref<8x128xbf16, #tpu.memory_space<vmem>>, vector<8x128xbf16>
    %c0_4 = arith.constant 0 : index
    %c0_5 = arith.constant 0 : index
    %3 = vector.load %arg4[%c0_4, %c0_5] : memref<1x128xf32, #tpu.memory_space<vmem>>, vector<1x128xf32>
    %cst = arith.constant dense<0.000000e+00> : vector<1024x128xf32>
    %4 = tpu.matmul %1, %2, %cst {dimension_numbers = #tpu.dot_dimension_numbers<[1], [0], [0], [1], [0, 0, 1, 1], [], []>} : vector<1024x8xbf16>, vector<8x128xbf16>, vector<1024x128xf32> -> vector<1024x128xf32>
    %5 = vector.broadcast %3 : vector<1x128xf32> to vector<1024x128xf32>
    %6 = arith.addf %4, %5 : vector<1024x128xf32>
    %cst_6 = arith.constant 2.000000e-01 : f32
    %7 = vector.broadcast %cst_6 : f32 to vector<1024x128xf32>
    %8 = arith.mulf %7, %6 : vector<1024x128xf32>
    %9 = arith.maximumf %6, %8 : vector<1024x128xf32>
    %10 = arith.truncf %9 : vector<1024x128xf32> to vector<1024x128xbf16>
    %c0_7 = arith.constant 0 : index
    %c0_8 = arith.constant 0 : index
    %11 = vector.load %arg5[%c0_7, %c0_8] : memref<128x32xbf16, #tpu.memory_space<vmem>>, vector<128x32xbf16>
    %c0_9 = arith.constant 0 : index
    %c0_10 = arith.constant 0 : index
    %12 = vector.load %arg6[%c0_9, %c0_10] : memref<1x32xf32, #tpu.memory_space<vmem>>, vector<1x32xf32>
    %cst_11 = arith.constant dense<0.000000e+00> : vector<1024x32xf32>
    %13 = tpu.matmul %10, %11, %cst_11 {dimension_numbers = #tpu.dot_dimension_numbers<[1], [0], [0], [1], [0, 0, 1, 1], [], []>} : vector<1024x128xbf16>, vector<128x32xbf16>, vector<1024x32xf32> -> vector<1024x32xf32>
    %14 = vector.broadcast %12 : vector<1x32xf32> to vector<1024x32xf32>
    %15 = arith.addf %13, %14 : vector<1024x32xf32>
    %cst_12 = arith.constant 2.000000e-01 : f32
    %16 = vector.broadcast %cst_12 : f32 to vector<1024x32xf32>
    %17 = arith.mulf %16, %15 : vector<1024x32xf32>
    %18 = arith.maximumf %15, %17 : vector<1024x32xf32>
    %19 = vector.extract_strided_slice %1 {offsets = [0, 0], sizes = [1024, 3], strides = [1, 1]} : vector<1024x8xbf16> to vector<1024x3xbf16>
    %20 = arith.extf %19 : vector<1024x3xbf16> to vector<1024x3xf32>
    %21 = arith.mulf %20, %20 : vector<1024x3xf32>
    %cst_13 = arith.constant dense<0.000000e+00> : vector<1024xf32>
    %22 = vector.multi_reduction <add>, %21, %cst_13 [1] : vector<1024x3xf32> to vector<1024xf32>
    %23 = vector.shape_cast %22 : vector<1024xf32> to vector<1024x1xf32>
    %24 = math.sqrt %23 : vector<1024x1xf32>
    %25 = arith.negf %24 : vector<1024x1xf32>
    %26 = math.exp %25 : vector<1024x1xf32>
    %cst_14 = arith.constant 1.000000e+00 : f32
    %27 = vector.broadcast %cst_14 : f32 to vector<1024x1xf32>
    %28 = arith.addf %27, %26 : vector<1024x1xf32>
    %29 = arith.divf %27, %28 : vector<1024x1xf32>
    %30 = vector.broadcast %29 : vector<1024x1xf32> to vector<1024x32xf32>
    %31 = arith.mulf %30, %18 : vector<1024x32xf32>
    %32 = vector.shape_cast %31 : vector<1024x32xf32> to vector<128x8x32xf32>
    %cst_15 = arith.constant dense<0xFF800000> : vector<128x32xf32>
    %33 = vector.multi_reduction <maximumf>, %32, %cst_15 [1] : vector<128x8x32xf32> to vector<128x32xf32>
    %34 = tpu.transpose %33, [1, 0] : vector<128x32xf32> -> vector<32x128xf32>
    %35 = vector.shape_cast %34 : vector<32x128xf32> to vector<1x32x128xf32>
    %c0_16 = arith.constant 0 : index
    %c0_17 = arith.constant 0 : index
    %c0_18 = arith.constant 0 : index
    %36 = vector.load %arg7[%c0_16, %c0_17, %c0_18] : memref<1x32x128xf32, #tpu.memory_space<vmem>>, vector<1x32x128xf32>
    tpu.vector_store %arg7[%c0_16, %c0_17, %c0_18], %35 {strides = array<i32>} : memref<1x32x128xf32, #tpu.memory_space<vmem>>, vector<1x32x128xf32>,
    return
  }
  func.func @transform_0(%arg0: i32, %arg1: i32) -> (i32, i32, i32) {
    %c0_i32 = arith.constant 0 : i32
    %c0_i32_0 = arith.constant 0 : i32
    return %arg0, %arg1, %c0_i32 : i32, i32, i32
  }
  func.func @transform_1(%arg0: i32, %arg1: i32) -> (i32, i32) {
    %c0_i32 = arith.constant 0 : i32
    %c0_i32_0 = arith.constant 0 : i32
    %c0_i32_1 = arith.constant 0 : i32
    return %c0_i32, %c0_i32_0 : i32, i32
  }
  func.func @transform_2(%arg0: i32, %arg1: i32) -> (i32, i32) {
    %c0_i32 = arith.constant 0 : i32
    %c0_i32_0 = arith.constant 0 : i32
    %c0_i32_1 = arith.constant 0 : i32
    return %c0_i32, %c0_i32_0 : i32, i32
  }
  func.func @transform_3(%arg0: i32, %arg1: i32) -> (i32, i32) {
    %c0_i32 = arith.constant 0 : i32
    %c0_i32_0 = arith.constant 0 : i32
    %c0_i32_1 = arith.constant 0 : i32
    return %c0_i32, %c0_i32_0 : i32, i32
  }
  func.func @transform_4(%arg0: i32, %arg1: i32) -> (i32, i32) {
    %c0_i32 = arith.constant 0 : i32
    %c0_i32_0 = arith.constant 0 : i32
    %c0_i32_1 = arith.constant 0 : i32
    return %c0_i32, %c0_i32_0 : i32, i32
  }
  func.func @transform_5(%arg0: i32, %arg1: i32) -> (i32, i32, i32) {
    %c0_i32 = arith.constant 0 : i32
    %c0_i32_0 = arith.constant 0 : i32
    return %arg0, %c0_i32, %arg1 : i32, i32, i32
  }
}

</mosaic_0001>

<llo_original>
// kernel: tpu_custom_call.1
$region0: #{tpu_custom_call.1}
  #allocation0 [shape = 'u32[]', space=smem, size = 0x4, offset = 0x4, fixed_abs, tag = 'smem constant byte address 0x4 - core index']
  #allocation1 [shape = 'u32[144,128]{1,0:T(1,128)}', space=vmem, size = 0x12000, scoped, tag = 'internal scratch']
  %s0 = inlined_call_operand.hbm [shape: bf16[4,1024,8], index: 0, kind: input, shape index: {}]
  %s1 = inlined_call_operand.hbm [shape: bf16[8,128], index: 1, kind: input, shape index: {}]
  %s2 = inlined_call_operand.hbm [shape: f32[1,128], index: 2, kind: input, shape index: {}]
  %s3 = inlined_call_operand.hbm [shape: bf16[128,32], index: 3, kind: input, shape index: {}]
  %s4 = inlined_call_operand.hbm [shape: f32[1,32], index: 4, kind: input, shape index: {}]
  %s5 = inlined_call_operand.hbm [shape: f32[4,32,128], index: 5, kind: output, shape index: {}]
  %s6 = sld [smem:[#allocation0]]
  $region73: #{tpu_custom_call.1} parent=0
    _
  %s8 = ssub.s32 1, %s6
  %s9 = scalar_select 0, %s8, %s6
  $region1: #{tpu_custom_call.1} parent=0
    #allocation2 [shape = 'u8[524288]{0}', space=vmem, size = 0x80000, scoped, tag = 'input window, operand 0']
    #allocation3 [shape = 's32[2]{0}', space=sflag, size = 0x8, scoped, tag = 'scoped memory for tpu_custom_call.1']
    #allocation4 [shape = 's32[2]{0}', space=sflag, size = 0x8, scoped, tag = 'scoped memory for tpu_custom_call.1']
    #allocation5 [shape = 'u8[2048]{0}', space=vmem, size = 0x800, scoped, tag = 'input window, operand 1, single buffered']
    #allocation6 [shape = 's32[1]{0}', space=sflag, size = 0x4, scoped, tag = 'scoped memory for tpu_custom_call.1']
    #allocation7 [shape = 'u8[512]{0}', space=vmem, size = 0x400, scoped, tag = 'input window, operand 2, single buffered']
    #allocation8 [shape = 'u8[32768]{0}', space=vmem, size = 0x8000, scoped, tag = 'input window, operand 3, single buffered']
    #allocation9 [shape = 's32[1]{0}', space=sflag, size = 0x4, scoped, tag = 'scoped memory for tpu_custom_call.1']
    #allocation10 [shape = 'u8[512]{0}', space=vmem, size = 0x400, scoped, tag = 'input window, operand 4, single buffered']
    #allocation11 [shape = 'u8[32768]{0}', space=vmem, size = 0x8000, scoped, tag = 'output window, operand 0']
    %10 = vsyncpa [#allocation3], 0
    %s11 = scalar_lea.sflag [#allocation3], 1
    %12 = vsyncpa %s11, 0
    %13 = vsyncpa [#allocation6], 0
    %14 = vsyncpa [#allocation9], 0
    %15 = vsyncpa [#allocation4], 0
    %s16 = scalar_lea.sflag [#allocation4], 1
    %17 = vsyncpa %s16, 0
    loop: start=0, step=1, limit=6
    $region2: #{tpu_custom_call.1} parent=1 // loop_pre_header
      _
    $region3: #{tpu_custom_call.1} parent=1 // loop_header
      %s19 = sphi 0, %s23
      %p20 = scmp.ge.s32.totalorder %s19, 6
      %s26 = sphi 0, %s38
      %s27 = sphi 0, %s34
      %s28 = sphi 0, %s26
      %s29 = sphi 0, %s27
      %s30 = sphi 0, %s28
      %s31 = sphi 0, %s29
      %s43 = sphi 0, %s45
      %s46 = sphi 0, %s43
      %s47 = sphi 0, %s46
      %s63 = sphi 0, %s47
      %s67 = sphi 0, %s67
      %s69 = sphi 0, %s67
      %s70 = sphi 0, %s69
      %s84 = sphi 0, %s70
      %s88 = sphi 0, %s88
      %s90 = sphi 0, %s88
      %s91 = sphi 0, %s90
      %s105 = sphi 0, %s91
      %s109 = sphi 0, %s109
      %s111 = sphi 0, %s109
      %s112 = sphi 0, %s111
      %s126 = sphi 0, %s112
      %s130 = sphi 0, %s130
      %s132 = sphi 0, %s130
      %s133 = sphi 0, %s132
      %s147 = sphi 0, %s133
      %s155 = sphi 0, %s157
      %s158 = sphi 0, %s155
      %s159 = sphi 0, %s158
      %s175 = sphi 0, %s159
    $region4: #{tpu_custom_call.1} parent=1 // loop_header_branch
      %22 = sbr.rel (%p20) target = $region8
    $region5: #{tpu_custom_call.1} parent=1 // loop_body
      %s24 = ssub.s32 %s19, 1
      %s25 = ssub.s32 %s19, 2
      %s32 = sadd.s32 1, %s27
      %p33 = scmp.ge.s32.totalorder %s32, 1
      %s34 = scalar_select %p33, 0, %s32
      %s35 = sadd.s32 1, %s26
      %s36 = scalar_select %p33, %s35, %s26
      %p37 = scmp.ge.s32.totalorder %s36, 4
      %s38 = scalar_select %p37, 0, %s36
      %s39 = ssub.s32 %s26, %s38
      %s40 = ssub.s32 %s27, %s34
      %s41 = sor.u32 %s39, %s40
      %p42 = scmp.eq.s32.totalorder %s41, 0
      %s44 = sadd.s32 %s43, 1
      %s45 = scalar_select %p42, %s43, %s44
      %p48 = pneg %p42
      %p49 = scmp.eq.s32.totalorder %s19, 3
      %p50 = por %p48, %p49
      %p51 = scmp.ne.s32.totalorder %s43, %s46
      %p52 = scmp.eq.s32.totalorder %s19, 0
      %p53 = por %p51, %p52
      %p54 = scmp.ne.s32.totalorder %s43, %s46
      %p55 = scmp.eq.s32.totalorder %s24, 3
      %p56 = por %p54, %p55
      %p57 = scmp.ne.s32.totalorder %s46, %s47
      %p58 = scmp.eq.s32.totalorder %s24, 0
      %p59 = por %p57, %p58
      %p60 = scmp.ne.s32.totalorder %s46, %s47
      %p61 = scmp.eq.s32.totalorder %s25, 3
      %p62 = por %p60, %p61
      %p64 = scmp.ne.s32.totalorder %s47, %s63
      %p65 = scmp.eq.s32.totalorder %s25, 0
      %p66 = por %p64, %p65
      %s68 = sadd.s32 %s67, 1
      %p71 = scmp.eq.s32.totalorder %s19, 3
      %p72 = scmp.ne.s32.totalorder %s67, %s69
      %p73 = scmp.eq.s32.totalorder %s19, 0
      %p74 = por %p72, %p73
      %p75 = scmp.ne.s32.totalorder %s67, %s69
      %p76 = scmp.eq.s32.totalorder %s24, 3
      %p77 = por %p75, %p76
      %p78 = scmp.ne.s32.totalorder %s69, %s70
      %p79 = scmp.eq.s32.totalorder %s24, 0
      %p80 = por %p78, %p79
      %p81 = scmp.ne.s32.totalorder %s69, %s70
      %p82 = scmp.eq.s32.totalorder %s25, 3
      %p83 = por %p81, %p82
      %p85 = scmp.ne.s32.totalorder %s70, %s84
      %p86 = scmp.eq.s32.totalorder %s25, 0
      %p87 = por %p85, %p86
      %s89 = sadd.s32 %s88, 1
      %p92 = scmp.eq.s32.totalorder %s19, 3
      %p93 = scmp.ne.s32.totalorder %s88, %s90
      %p94 = scmp.eq.s32.totalorder %s19, 0
      %p95 = por %p93, %p94
      %p96 = scmp.ne.s32.totalorder %s88, %s90
      %p97 = scmp.eq.s32.totalorder %s24, 3
      %p98 = por %p96, %p97
      %p99 = scmp.ne.s32.totalorder %s90, %s91
      %p100 = scmp.eq.s32.totalorder %s24, 0
      %p101 = por %p99, %p100
      %p102 = scmp.ne.s32.totalorder %s90, %s91
      %p103 = scmp.eq.s32.totalorder %s25, 3
      %p104 = por %p102, %p103
      %p106 = scmp.ne.s32.totalorder %s91, %s105
      %p107 = scmp.eq.s32.totalorder %s25, 0
      %p108 = por %p106, %p107
      %s110 = sadd.s32 %s109, 1
      %p113 = scmp.eq.s32.totalorder %s19, 3
      %p114 = scmp.ne.s32.totalorder %s109, %s111
      %p115 = scmp.eq.s32.totalorder %s19, 0
      %p116 = por %p114, %p115
      %p117 = scmp.ne.s32.totalorder %s109, %s111
      %p118 = scmp.eq.s32.totalorder %s24, 3
      %p119 = por %p117, %p118
      %p120 = scmp.ne.s32.totalorder %s111, %s112
      %p121 = scmp.eq.s32.totalorder %s24, 0
      %p122 = por %p120, %p121
      %p123 = scmp.ne.s32.totalorder %s111, %s112
      %p124 = scmp.eq.s32.totalorder %s25, 3
      %p125 = por %p123, %p124
      %p127 = scmp.ne.s32.totalorder %s112, %s126
      %p128 = scmp.eq.s32.totalorder %s25, 0
      %p129 = por %p127, %p128
      %s131 = sadd.s32 %s130, 1
      %p134 = scmp.eq.s32.totalorder %s19, 3
      %p135 = scmp.ne.s32.totalorder %s130, %s132
      %p136 = scmp.eq.s32.totalorder %s19, 0
      %p137 = por %p135, %p136
      %p138 = scmp.ne.s32.totalorder %s130, %s132
      %p139 = scmp.eq.s32.totalorder %s24, 3
      %p140 = por %p138, %p139
      %p141 = scmp.ne.s32.totalorder %s132, %s133
      %p142 = scmp.eq.s32.totalorder %s24, 0
      %p143 = por %p141, %p142
      %p144 = scmp.ne.s32.totalorder %s132, %s133
      %p145 = scmp.eq.s32.totalorder %s25, 3
      %p146 = por %p144, %p145
      %p148 = scmp.ne.s32.totalorder %s133, %s147
      %p149 = scmp.eq.s32.totalorder %s25, 0
      %p150 = por %p148, %p149
      %s151 = ssub.s32 %s26, %s38
      %s152 = ssub.s32 %s27, %s34
      %s153 = sor.u32 %s151, %s152
      %p154 = scmp.eq.s32.totalorder %s153, 0
      %s156 = sadd.s32 %s155, 1
      %s157 = scalar_select %p154, %s155, %s156
      %p160 = pneg %p154
      %p161 = scmp.eq.s32.totalorder %s19, 3
      %p162 = por %p160, %p161
      %p163 = scmp.ne.s32.totalorder %s155, %s158
      %p164 = scmp.eq.s32.totalorder %s19, 0
      %p165 = por %p163, %p164
      %p166 = scmp.ne.s32.totalorder %s155, %s158
      %p167 = scmp.eq.s32.totalorder %s24, 3
      %p168 = por %p166, %p167
      %p169 = scmp.ne.s32.totalorder %s158, %s159
      %p170 = scmp.eq.s32.totalorder %s24, 0
      %p171 = por %p169, %p170
      %p172 = scmp.ne.s32.totalorder %s158, %s159
      %p173 = scmp.eq.s32.totalorder %s25, 3
      %p174 = por %p172, %p173
      %p176 = scmp.ne.s32.totalorder %s159, %s175
      %p177 = scmp.eq.s32.totalorder %s25, 0
      %p178 = por %p176, %p177
      %p179 = scmp.le.s32.totalorder 1, %s19
      %p180 = scmp.lt.s32.totalorder %s19, 5
      %p181 = pnand %p179, %p180
      %p182 = pneg %p181
      // Predicated region
      $region9: #{tpu_custom_call.1} parent=5 // pred_check
        _
      $region10: #{tpu_custom_call.1} parent=5 // pred_check_branch
        %184 = sbr.rel (%p181) target = $region12
      $region11: #{tpu_custom_call.1} parent=5 // pred_region
        %s185 = ssub.s32 %s19, 1
        // Predicated region
        $region13: #{tpu_custom_call.1} parent=11 // pred_check
          %p186 = pneg %p80
        $region14: #{tpu_custom_call.1} parent=11 // pred_check_branch
          %188 = sbr.rel (%p186) target = $region16
        $region15: #{tpu_custom_call.1} parent=11 // pred_region
          %s190 = ssub.s32 64, 64
          %191 = vsyncadd [#allocation6], %s190
          %s193 = sshll.u32 [#allocation5], 4
          %s194 = int_to_ptr.vmem [resolvable:$true] %s193
          %196 = dma.hbm_to_vmem [thread:$0]  %s1, 64, %s194, [#allocation6]
        $region16: #{tpu_custom_call.1} parent=11 // pred_fallthru
          _
        // Predicated region
        $region17: #{tpu_custom_call.1} parent=11 // pred_check
          %p197 = pneg %p101
        $region18: #{tpu_custom_call.1} parent=11 // pred_check_branch
          %199 = sbr.rel (%p197) target = $region20
        $region19: #{tpu_custom_call.1} parent=11 // pred_region
          %s201 = ssub.s32 16, 16
          %202 = vsyncadd [#allocation6], %s201
          %s204 = sshll.u32 [#allocation7], 4
          %s205 = int_to_ptr.vmem [resolvable:$true] %s204
          %207 = dma.hbm_to_vmem [thread:$0]  %s2, 16, %s205, [#allocation6]
        $region20: #{tpu_custom_call.1} parent=11 // pred_fallthru
          _
        // Predicated region
        $region21: #{tpu_custom_call.1} parent=11 // pred_check
          %p208 = pneg %p122
        $region22: #{tpu_custom_call.1} parent=11 // pred_check_branch
          %210 = sbr.rel (%p208) target = $region24
        $region23: #{tpu_custom_call.1} parent=11 // pred_region
          %s212 = ssub.s32 1024, 1024
          %213 = vsyncadd [#allocation9], %s212
          %s214 = sshll.u32 [#allocation8], 4
          %s215 = int_to_ptr.vmem [resolvable:$true] %s214
          %220 = dma.hbm_to_vmem [thread:$0]  %s3, 1024, %s215, [#allocation9], 64, 64, 4
        $region24: #{tpu_custom_call.1} parent=11 // pred_fallthru
          _
        // Predicated region
        $region25: #{tpu_custom_call.1} parent=11 // pred_check
          %p221 = pneg %p143
        $region26: #{tpu_custom_call.1} parent=11 // pred_check_branch
          %223 = sbr.rel (%p221) target = $region28
        $region27: #{tpu_custom_call.1} parent=11 // pred_region
          %s225 = ssub.s32 16, 16
          %226 = vsyncadd [#allocation9], %s225
          %s228 = sshll.u32 [#allocation10], 4
          %s229 = int_to_ptr.vmem [resolvable:$true] %s228
          %231 = dma.hbm_to_vmem [thread:$0]  %s4, 16, %s229, [#allocation9]
        $region28: #{tpu_custom_call.1} parent=11 // pred_fallthru
          _
      $region12: #{tpu_custom_call.1} parent=5 // pred_fallthru
        _
      %p232 = scmp.lt.s32.totalorder %s19, 4
      // Predicated region
      $region29: #{tpu_custom_call.1} parent=5 // pred_check
        %p233 = pneg %p232
      $region30: #{tpu_custom_call.1} parent=5 // pred_check_branch
        %235 = sbr.rel (%p233) target = $region32
      $region31: #{tpu_custom_call.1} parent=5 // pred_region
        // Predicated region
        $region33: #{tpu_custom_call.1} parent=31 // pred_check
          %p236 = pneg %p53
        $region34: #{tpu_custom_call.1} parent=31 // pred_check_branch
          %238 = sbr.rel (%p236) target = $region36
        $region35: #{tpu_custom_call.1} parent=31 // pred_region
          %s239 = sand.u32 %s43, 1
          %s240 = scalar_lea.sflag [#allocation3], %s239
          %s241 = sand.u32 %s43, 1
          %s242 = smul.addr %s241, 512
          %s243 = scalar_lea.vmem [#allocation2], %s242
          %s244 = smul.u32 128, %s27
          %s246 = ssub.s32 8192, 8192
          %247 = vsyncadd %s240, %s246
          %s248 = smul.addr %s26, 128
          %s249 = sadd.s32 %s244, %s248
          %s250 = smul.addr %s249, 64
          %s251 = scalar_lea.hbm %s0, %s250
          %s252 = sshll.u32 %s243, 4
          %s253 = int_to_ptr.vmem [resolvable:$true] %s252
          %258 = dma.hbm_to_vmem [thread:$0]  %s251, 8192, %s253, %s240, 64, 64, 4
        $region36: #{tpu_custom_call.1} parent=31 // pred_fallthru
          _
      $region32: #{tpu_custom_call.1} parent=5 // pred_fallthru
        _
      %p259 = scmp.le.s32.totalorder 1, %s19
      %p260 = scmp.lt.s32.totalorder %s19, 5
      %p261 = pnand %p259, %p260
      %p262 = pneg %p261
      // Predicated region
      $region37: #{tpu_custom_call.1} parent=5 // pred_check
        _
      $region38: #{tpu_custom_call.1} parent=5 // pred_check_branch
        %264 = sbr.rel (%p261) target = $region40
      $region39: #{tpu_custom_call.1} parent=5 // pred_region
        %s265 = ssub.s32 %s19, 1
        %s266 = sand.u32 %s46, 1
        %s267 = scalar_lea.sflag [#allocation3], %s266
        %s268 = sand.u32 %s46, 1
        %s269 = smul.addr %s268, 512
        %s270 = scalar_lea.vmem [#allocation2], %s269
        // Predicated region
        $region41: #{tpu_custom_call.1} parent=39 // pred_check
          %p271 = pneg %p59
        $region42: #{tpu_custom_call.1} parent=39 // pred_check_branch
          %273 = sbr.rel (%p271) target = $region44
        $region43: #{tpu_custom_call.1} parent=39 // pred_region
          %274 = dma.done %s267, 8192
        $region44: #{tpu_custom_call.1} parent=39 // pred_fallthru
          _
        // Predicated region
        $region45: #{tpu_custom_call.1} parent=39 // pred_check
          %p275 = pneg %p80
        $region46: #{tpu_custom_call.1} parent=39 // pred_check_branch
          %277 = sbr.rel (%p275) target = $region48
        $region47: #{tpu_custom_call.1} parent=39 // pred_region
          %278 = dma.done [#allocation6], 64
        $region48: #{tpu_custom_call.1} parent=39 // pred_fallthru
          _
        // Predicated region
        $region49: #{tpu_custom_call.1} parent=39 // pred_check
          %p279 = pneg %p101
        $region50: #{tpu_custom_call.1} parent=39 // pred_check_branch
          %281 = sbr.rel (%p279) target = $region52
        $region51: #{tpu_custom_call.1} parent=39 // pred_region
          %282 = dma.done [#allocation6], 16
        $region52: #{tpu_custom_call.1} parent=39 // pred_fallthru
          _
        // Predicated region
        $region53: #{tpu_custom_call.1} parent=39 // pred_check
          %p283 = pneg %p122
        $region54: #{tpu_custom_call.1} parent=39 // pred_check_branch
          %285 = sbr.rel (%p283) target = $region56
        $region55: #{tpu_custom_call.1} parent=39 // pred_region
          %286 = dma.done [#allocation9], 1024
        $region56: #{tpu_custom_call.1} parent=39 // pred_fallthru
          _
        // Predicated region
        $region57: #{tpu_custom_call.1} parent=39 // pred_check
          %p287 = pneg %p143
        $region58: #{tpu_custom_call.1} parent=39 // pred_check_branch
          %289 = sbr.rel (%p287) target = $region60
        $region59: #{tpu_custom_call.1} parent=39 // pred_region
          %290 = dma.done [#allocation9], 16
        $region60: #{tpu_custom_call.1} parent=39 // pred_fallthru
          _
        %s291 = sand.u32 %s46, 1
        %s292 = scalar_lea.sflag [#allocation3], %s291
        %s293 = sand.u32 %s46, 1
        %s294 = smul.addr %s293, 512
        %s295 = scalar_lea.vmem [#allocation2], %s294
        %p296 = pneg %p59
        %p297 = pneg %p56
        %p298 = pneg %p80
        %p299 = pneg %p77
        %p300 = pneg %p101
        %p301 = pneg %p98
        %p302 = pneg %p122
        %p303 = pneg %p119
        %p304 = pneg %p143
        %p305 = pneg %p140
        %p306 = pneg %p171
        %p307 = pneg %p168
        %s308 = sand.u32 %s158, 1
        %s309 = scalar_lea.sflag [#allocation4], %s308
        %s310 = sand.u32 %s158, 1
        %s311 = smul.addr %s310, 32
        %s312 = scalar_lea.vmem [#allocation11], %s311
        %s313 = smul.u32 128, %s29
        %v315 = vld [vmem:[%s270] sm:$0xf]
        %v316 = vld [vmem:[%s270 + $0x4] sm:$0xf]
        %v317 = vld [vmem:[%s270 + $0x8] sm:$0xf]
        %v318 = vld [vmem:[%s270 + $0xc] sm:$0xf]
        %v319 = vld [vmem:[%s270 + $0x10] sm:$0xf]
        %v320 = vld [vmem:[%s270 + $0x14] sm:$0xf]
        %v321 = vld [vmem:[%s270 + $0x18] sm:$0xf]
        %v322 = vld [vmem:[%s270 + $0x1c] sm:$0xf]
        %v323 = vld [vmem:[%s270 + $0x20] sm:$0xf]
        %v324 = vld [vmem:[%s270 + $0x24] sm:$0xf]
        %v325 = vld [vmem:[%s270 + $0x28] sm:$0xf]
        %v326 = vld [vmem:[%s270 + $0x2c] sm:$0xf]
        %v327 = vld [vmem:[%s270 + $0x30] sm:$0xf]
        %v328 = vld [vmem:[%s270 + $0x34] sm:$0xf]
        %v329 = vld [vmem:[%s270 + $0x38] sm:$0xf]
        %v330 = vld [vmem:[%s270 + $0x3c] sm:$0xf]
        %v331 = vld [vmem:[%s270 + $0x40] sm:$0xf]
        %v332 = vld [vmem:[%s270 + $0x44] sm:$0xf]
        %v333 = vld [vmem:[%s270 + $0x48] sm:$0xf]
        %v334 = vld [vmem:[%s270 + $0x4c] sm:$0xf]
        %v335 = vld [vmem:[%s270 + $0x50] sm:$0xf]
        %v336 = vld [vmem:[%s270 + $0x54] sm:$0xf]
        %v337 = vld [vmem:[%s270 + $0x58] sm:$0xf]
        %v338 = vld [vmem:[%s270 + $0x5c] sm:$0xf]
        %v339 = vld [vmem:[%s270 + $0x60] sm:$0xf]
        %v340 = vld [vmem:[%s270 + $0x64] sm:$0xf]
        %v341 = vld [vmem:[%s270 + $0x68] sm:$0xf]
        %v342 = vld [vmem:[%s270 + $0x6c] sm:$0xf]
        %v343 = vld [vmem:[%s270 + $0x70] sm:$0xf]
        %v344 = vld [vmem:[%s270 + $0x74] sm:$0xf]
        %v345 = vld [vmem:[%s270 + $0x78] sm:$0xf]
        %v346 = vld [vmem:[%s270 + $0x7c] sm:$0xf]
        %v347 = vld [vmem:[%s270 + $0x80] sm:$0xf]
        %v348 = vld [vmem:[%s270 + $0x84] sm:$0xf]
        %v349 = vld [vmem:[%s270 + $0x88] sm:$0xf]
        %v350 = vld [vmem:[%s270 + $0x8c] sm:$0xf]
        %v351 = vld [vmem:[%s270 + $0x90] sm:$0xf]
        %v352 = vld [vmem:[%s270 + $0x94] sm:$0xf]
        %v353 = vld [vmem:[%s270 + $0x98] sm:$0xf]
        %v354 = vld [vmem:[%s270 + $0x9c] sm:$0xf]
        %v355 = vld [vmem:[%s270 + $0xa0] sm:$0xf]
        %v356 = vld [vmem:[%s270 + $0xa4] sm:$0xf]
        %v357 = vld [vmem:[%s270 + $0xa8] sm:$0xf]
        %v358 = vld [vmem:[%s270 + $0xac] sm:$0xf]
        %v359 = vld [vmem:[%s270 + $0xb0] sm:$0xf]
        %v360 = vld [vmem:[%s270 + $0xb4] sm:$0xf]
        %v361 = vld [vmem:[%s270 + $0xb8] sm:$0xf]
        %v362 = vld [vmem:[%s270 + $0xbc] sm:$0xf]
        %v363 = vld [vmem:[%s270 + $0xc0] sm:$0xf]
        %v364 = vld [vmem:[%s270 + $0xc4] sm:$0xf]
        %v365 = vld [vmem:[%s270 + $0xc8] sm:$0xf]
        %v366 = vld [vmem:[%s270 + $0xcc] sm:$0xf]
        %v367 = vld [vmem:[%s270 + $0xd0] sm:$0xf]
        %v368 = vld [vmem:[%s270 + $0xd4] sm:$0xf]
        %v369 = vld [vmem:[%s270 + $0xd8] sm:$0xf]
        %v370 = vld [vmem:[%s270 + $0xdc] sm:$0xf]
        %v371 = vld [vmem:[%s270 + $0xe0] sm:$0xf]
        %v372 = vld [vmem:[%s270 + $0xe4] sm:$0xf]
        %v373 = vld [vmem:[%s270 + $0xe8] sm:$0xf]
        %v374 = vld [vmem:[%s270 + $0xec] sm:$0xf]
        %v375 = vld [vmem:[%s270 + $0xf0] sm:$0xf]
        %v376 = vld [vmem:[%s270 + $0xf4] sm:$0xf]
        %v377 = vld [vmem:[%s270 + $0xf8] sm:$0xf]
        %v378 = vld [vmem:[%s270 + $0xfc] sm:$0xf]
        %v379 = vld [vmem:[%s270 + $0x100] sm:$0xf]
        %v380 = vld [vmem:[%s270 + $0x104] sm:$0xf]
        %v381 = vld [vmem:[%s270 + $0x108] sm:$0xf]
        %v382 = vld [vmem:[%s270 + $0x10c] sm:$0xf]
        %v383 = vld [vmem:[%s270 + $0x110] sm:$0xf]
        %v384 = vld [vmem:[%s270 + $0x114] sm:$0xf]
        %v385 = vld [vmem:[%s270 + $0x118] sm:$0xf]
        %v386 = vld [vmem:[%s270 + $0x11c] sm:$0xf]
        %v387 = vld [vmem:[%s270 + $0x120] sm:$0xf]
        %v388 = vld [vmem:[%s270 + $0x124] sm:$0xf]
        %v389 = vld [vmem:[%s270 + $0x128] sm:$0xf]
        %v390 = vld [vmem:[%s270 + $0x12c] sm:$0xf]
        %v391 = vld [vmem:[%s270 + $0x130] sm:$0xf]
        %v392 = vld [vmem:[%s270 + $0x134] sm:$0xf]
        %v393 = vld [vmem:[%s270 + $0x138] sm:$0xf]
        %v394 = vld [vmem:[%s270 + $0x13c] sm:$0xf]
        %v395 = vld [vmem:[%s270 + $0x140] sm:$0xf]
        %v396 = vld [vmem:[%s270 + $0x144] sm:$0xf]
        %v397 = vld [vmem:[%s270 + $0x148] sm:$0xf]
        %v398 = vld [vmem:[%s270 + $0x14c] sm:$0xf]
        %v399 = vld [vmem:[%s270 + $0x150] sm:$0xf]
        %v400 = vld [vmem:[%s270 + $0x154] sm:$0xf]
        %v401 = vld [vmem:[%s270 + $0x158] sm:$0xf]
        %v402 = vld [vmem:[%s270 + $0x15c] sm:$0xf]
        %v403 = vld [vmem:[%s270 + $0x160] sm:$0xf]
        %v404 = vld [vmem:[%s270 + $0x164] sm:$0xf]
        %v405 = vld [vmem:[%s270 + $0x168] sm:$0xf]
        %v406 = vld [vmem:[%s270 + $0x16c] sm:$0xf]
        %v407 = vld [vmem:[%s270 + $0x170] sm:$0xf]
        %v408 = vld [vmem:[%s270 + $0x174] sm:$0xf]
        %v409 = vld [vmem:[%s270 + $0x178] sm:$0xf]
        %v410 = vld [vmem:[%s270 + $0x17c] sm:$0xf]
        %v411 = vld [vmem:[%s270 + $0x180] sm:$0xf]
        %v412 = vld [vmem:[%s270 + $0x184] sm:$0xf]
        %v413 = vld [vmem:[%s270 + $0x188] sm:$0xf]
        %v414 = vld [vmem:[%s270 + $0x18c] sm:$0xf]
        %v415 = vld [vmem:[%s270 + $0x190] sm:$0xf]
        %v416 = vld [vmem:[%s270 + $0x194] sm:$0xf]
        %v417 = vld [vmem:[%s270 + $0x198] sm:$0xf]
        %v418 = vld [vmem:[%s270 + $0x19c] sm:$0xf]
        %v419 = vld [vmem:[%s270 + $0x1a0] sm:$0xf]
        %v420 = vld [vmem:[%s270 + $0x1a4] sm:$0xf]
        %v421 = vld [vmem:[%s270 + $0x1a8] sm:$0xf]
        %v422 = vld [vmem:[%s270 + $0x1ac] sm:$0xf]
        %v423 = vld [vmem:[%s270 + $0x1b0] sm:$0xf]
        %v424 = vld [vmem:[%s270 + $0x1b4] sm:$0xf]
        %v425 = vld [vmem:[%s270 + $0x1b8] sm:$0xf]
        %v426 = vld [vmem:[%s270 + $0x1bc] sm:$0xf]
        %v427 = vld [vmem:[%s270 + $0x1c0] sm:$0xf]
        %v428 = vld [vmem:[%s270 + $0x1c4] sm:$0xf]
        %v429 = vld [vmem:[%s270 + $0x1c8] sm:$0xf]
        %v430 = vld [vmem:[%s270 + $0x1cc] sm:$0xf]
        %v431 = vld [vmem:[%s270 + $0x1d0] sm:$0xf]
        %v432 = vld [vmem:[%s270 + $0x1d4] sm:$0xf]
        %v433 = vld [vmem:[%s270 + $0x1d8] sm:$0xf]
        %v434 = vld [vmem:[%s270 + $0x1dc] sm:$0xf]
        %v435 = vld [vmem:[%s270 + $0x1e0] sm:$0xf]
        %v436 = vld [vmem:[%s270 + $0x1e4] sm:$0xf]
        %v437 = vld [vmem:[%s270 + $0x1e8] sm:$0xf]
        %v438 = vld [vmem:[%s270 + $0x1ec] sm:$0xf]
        %v439 = vld [vmem:[%s270 + $0x1f0] sm:$0xf]
        %v440 = vld [vmem:[%s270 + $0x1f4] sm:$0xf]
        %v441 = vld [vmem:[%s270 + $0x1f8] sm:$0xf]
        %v442 = vld [vmem:[%s270 + $0x1fc] sm:$0xf]
        %v443 = vld [vmem:[#allocation5] sm:$0xf]
        %v444 = vld [vmem:[#allocation7] sm:$0x1]
        %v446 = vlaneseq
        %v447 = vshrl.u32 %v446, 7
        %v448 = vsub.s32 0, %v447
        %v449 = vrot.slane %v444, %v448
        %v579 = vunpack.c.l.b16 %v315
        %v580 = vunpack.c.l.b16 %v316
        %v581 = vunpack.c.l.b16 %v317
        %v582 = vunpack.c.l.b16 %v318
        %v583 = vunpack.c.l.b16 %v319
        %v584 = vunpack.c.l.b16 %v320
        %v585 = vunpack.c.l.b16 %v321
        %v586 = vunpack.c.l.b16 %v322
        %v587 = vunpack.c.l.b16 %v323
        %v588 = vunpack.c.l.b16 %v324
        %v589 = vunpack.c.l.b16 %v325
        %v590 = vunpack.c.l.b16 %v326
        %v591 = vunpack.c.l.b16 %v327
        %v592 = vunpack.c.l.b16 %v328
        %v593 = vunpack.c.l.b16 %v329
        %v594 = vunpack.c.l.b16 %v330
        %v595 = vunpack.c.l.b16 %v331
        %v596 = vunpack.c.l.b16 %v332
        %v597 = vunpack.c.l.b16 %v333
        %v598 = vunpack.c.l.b16 %v334
        %v599 = vunpack.c.l.b16 %v335
        %v600 = vunpack.c.l.b16 %v336
        %v601 = vunpack.c.l.b16 %v337
        %v602 = vunpack.c.l.b16 %v338
        %v603 = vunpack.c.l.b16 %v339
        %v604 = vunpack.c.l.b16 %v340
        %v605 = vunpack.c.l.b16 %v341
        %v606 = vunpack.c.l.b16 %v342
        %v607 = vunpack.c.l.b16 %v343
        %v608 = vunpack.c.l.b16 %v344
        %v609 = vunpack.c.l.b16 %v345
        %v610 = vunpack.c.l.b16 %v346
        %v611 = vunpack.c.l.b16 %v347
        %v612 = vunpack.c.l.b16 %v348
        %v613 = vunpack.c.l.b16 %v349
        %v614 = vunpack.c.l.b16 %v350
        %v615 = vunpack.c.l.b16 %v351
        %v616 = vunpack.c.l.b16 %v352
        %v617 = vunpack.c.l.b16 %v353
        %v618 = vunpack.c.l.b16 %v354
        %v619 = vunpack.c.l.b16 %v355
        %v620 = vunpack.c.l.b16 %v356
        %v621 = vunpack.c.l.b16 %v357
        %v622 = vunpack.c.l.b16 %v358
        %v623 = vunpack.c.l.b16 %v359
        %v624 = vunpack.c.l.b16 %v360
        %v625 = vunpack.c.l.b16 %v361
        %v626 = vunpack.c.l.b16 %v362
        %v627 = vunpack.c.l.b16 %v363
        %v628 = vunpack.c.l.b16 %v364
        %v629 = vunpack.c.l.b16 %v365
        %v630 = vunpack.c.l.b16 %v366
        %v631 = vunpack.c.l.b16 %v367
        %v632 = vunpack.c.l.b16 %v368
        %v633 = vunpack.c.l.b16 %v369
        %v634 = vunpack.c.l.b16 %v370
        %v635 = vunpack.c.l.b16 %v371
        %v636 = vunpack.c.l.b16 %v372
        %v637 = vunpack.c.l.b16 %v373
        %v638 = vunpack.c.l.b16 %v374
        %v639 = vunpack.c.l.b16 %v375
        %v640 = vunpack.c.l.b16 %v376
        %v641 = vunpack.c.l.b16 %v377
        %v642 = vunpack.c.l.b16 %v378
        %v643 = vunpack.c.l.b16 %v379
        %v644 = vunpack.c.l.b16 %v380
        %v645 = vunpack.c.l.b16 %v381
        %v646 = vunpack.c.l.b16 %v382
        %v647 = vunpack.c.l.b16 %v383
        %v648 = vunpack.c.l.b16 %v384
        %v649 = vunpack.c.l.b16 %v385
        %v650 = vunpack.c.l.b16 %v386
        %v651 = vunpack.c.l.b16 %v387
        %v652 = vunpack.c.l.b16 %v388
        %v653 = vunpack.c.l.b16 %v389
        %v654 = vunpack.c.l.b16 %v390
        %v655 = vunpack.c.l.b16 %v391
        %v656 = vunpack.c.l.b16 %v392
        %v657 = vunpack.c.l.b16 %v393
        %v658 = vunpack.c.l.b16 %v394
        %v659 = vunpack.c.l.b16 %v395
        %v660 = vunpack.c.l.b16 %v396
        %v661 = vunpack.c.l.b16 %v397
        %v662 = vunpack.c.l.b16 %v398
        %v663 = vunpack.c.l.b16 %v399
        %v664 = vunpack.c.l.b16 %v400
        %v665 = vunpack.c.l.b16 %v401
        %v666 = vunpack.c.l.b16 %v402
        %v667 = vunpack.c.l.b16 %v403
        %v668 = vunpack.c.l.b16 %v404
        %v669 = vunpack.c.l.b16 %v405
        %v670 = vunpack.c.l.b16 %v406
        %v671 = vunpack.c.l.b16 %v407
        %v672 = vunpack.c.l.b16 %v408
        %v673 = vunpack.c.l.b16 %v409
        %v674 = vunpack.c.l.b16 %v410
        %v675 = vunpack.c.l.b16 %v411
        %v676 = vunpack.c.l.b16 %v412
        %v677 = vunpack.c.l.b16 %v413
        %v678 = vunpack.c.l.b16 %v414
        %v679 = vunpack.c.l.b16 %v415
        %v680 = vunpack.c.l.b16 %v416
        %v681 = vunpack.c.l.b16 %v417
        %v682 = vunpack.c.l.b16 %v418
        %v683 = vunpack.c.l.b16 %v419
        %v684 = vunpack.c.l.b16 %v420
        %v685 = vunpack.c.l.b16 %v421
        %v686 = vunpack.c.l.b16 %v422
        %v687 = vunpack.c.l.b16 %v423
        %v688 = vunpack.c.l.b16 %v424
        %v689 = vunpack.c.l.b16 %v425
        %v690 = vunpack.c.l.b16 %v426
        %v691 = vunpack.c.l.b16 %v427
        %v692 = vunpack.c.l.b16 %v428
        %v693 = vunpack.c.l.b16 %v429
        %v694 = vunpack.c.l.b16 %v430
        %v695 = vunpack.c.l.b16 %v431
        %v696 = vunpack.c.l.b16 %v432
        %v697 = vunpack.c.l.b16 %v433
        %v698 = vunpack.c.l.b16 %v434
        %v699 = vunpack.c.l.b16 %v435
        %v700 = vunpack.c.l.b16 %v436
        %v701 = vunpack.c.l.b16 %v437
        %v702 = vunpack.c.l.b16 %v438
        %v703 = vunpack.c.l.b16 %v439
        %v704 = vunpack.c.l.b16 %v440
        %v705 = vunpack.c.l.b16 %v441
        %v706 = vunpack.c.l.b16 %v442
        %v707 = vpack.c.b16 %v580, %v579
        %v708 = vpack.c.b16 %v582, %v581
        %v709 = vpack.c.b16 %v584, %v583
        %v710 = vpack.c.b16 %v586, %v585
        %v711 = vpack.c.b16 %v588, %v587
        %v712 = vpack.c.b16 %v590, %v589
        %v713 = vpack.c.b16 %v592, %v591
        %v714 = vpack.c.b16 %v594, %v593
        %v715 = vpack.c.b16 %v596, %v595
        %v716 = vpack.c.b16 %v598, %v597
        %v717 = vpack.c.b16 %v600, %v599
        %v718 = vpack.c.b16 %v602, %v601
        %v719 = vpack.c.b16 %v604, %v603
        %v720 = vpack.c.b16 %v606, %v605
        %v721 = vpack.c.b16 %v608, %v607
        %v722 = vpack.c.b16 %v610, %v609
        %v723 = vpack.c.b16 %v612, %v611
        %v724 = vpack.c.b16 %v614, %v613
        %v725 = vpack.c.b16 %v616, %v615
        %v726 = vpack.c.b16 %v618, %v617
        %v727 = vpack.c.b16 %v620, %v619
        %v728 = vpack.c.b16 %v622, %v621
        %v729 = vpack.c.b16 %v624, %v623
        %v730 = vpack.c.b16 %v626, %v625
        %v731 = vpack.c.b16 %v628, %v627
        %v732 = vpack.c.b16 %v630, %v629
        %v733 = vpack.c.b16 %v632, %v631
        %v734 = vpack.c.b16 %v634, %v633
        %v735 = vpack.c.b16 %v636, %v635
        %v736 = vpack.c.b16 %v638, %v637
        %v737 = vpack.c.b16 %v640, %v639
        %v738 = vpack.c.b16 %v642, %v641
        %v739 = vpack.c.b16 %v644, %v643
        %v740 = vpack.c.b16 %v646, %v645
        %v741 = vpack.c.b16 %v648, %v647
        %v742 = vpack.c.b16 %v650, %v649
        %v743 = vpack.c.b16 %v652, %v651
        %v744 = vpack.c.b16 %v654, %v653
        %v745 = vpack.c.b16 %v656, %v655
        %v746 = vpack.c.b16 %v658, %v657
        %v747 = vpack.c.b16 %v660, %v659
        %v748 = vpack.c.b16 %v662, %v661
        %v749 = vpack.c.b16 %v664, %v663
        %v750 = vpack.c.b16 %v666, %v665
        %v751 = vpack.c.b16 %v668, %v667
        %v752 = vpack.c.b16 %v670, %v669
        %v753 = vpack.c.b16 %v672, %v671
        %v754 = vpack.c.b16 %v674, %v673
        %v755 = vpack.c.b16 %v676, %v675
        %v756 = vpack.c.b16 %v678, %v677
        %v757 = vpack.c.b16 %v680, %v679
        %v758 = vpack.c.b16 %v682, %v681
        %v759 = vpack.c.b16 %v684, %v683
        %v760 = vpack.c.b16 %v686, %v685
        %v761 = vpack.c.b16 %v688, %v687
        %v762 = vpack.c.b16 %v690, %v689
        %v763 = vpack.c.b16 %v692, %v691
        %v764 = vpack.c.b16 %v694, %v693
        %v765 = vpack.c.b16 %v696, %v695
        %v766 = vpack.c.b16 %v698, %v697
        %v767 = vpack.c.b16 %v700, %v699
        %v768 = vpack.c.b16 %v702, %v701
        %v769 = vpack.c.b16 %v704, %v703
        %v770 = vpack.c.b16 %v706, %v705
        %vm771 = vcmask 64512
        %v773 = vsel %vm771, %v707, 0
        %v776 = vsel %vm771, %v708, 0
        %v779 = vsel %vm771, %v709, 0
        %v782 = vsel %vm771, %v710, 0
        %v785 = vsel %vm771, %v711, 0
        %v788 = vsel %vm771, %v712, 0
        %v791 = vsel %vm771, %v713, 0
        %v794 = vsel %vm771, %v714, 0
        %v797 = vsel %vm771, %v715, 0
        %v800 = vsel %vm771, %v716, 0
        %v803 = vsel %vm771, %v717, 0
        %v806 = vsel %vm771, %v718, 0
        %v809 = vsel %vm771, %v719, 0
        %v812 = vsel %vm771, %v720, 0
        %v815 = vsel %vm771, %v721, 0
        %v818 = vsel %vm771, %v722, 0
        %v821 = vsel %vm771, %v723, 0
        %v824 = vsel %vm771, %v724, 0
        %v827 = vsel %vm771, %v725, 0
        %v830 = vsel %vm771, %v726, 0
        %v833 = vsel %vm771, %v727, 0
        %v836 = vsel %vm771, %v728, 0
        %v839 = vsel %vm771, %v729, 0
        %v842 = vsel %vm771, %v730, 0
        %v845 = vsel %vm771, %v731, 0
        %v848 = vsel %vm771, %v732, 0
        %v851 = vsel %vm771, %v733, 0
        %v854 = vsel %vm771, %v734, 0
        %v857 = vsel %vm771, %v735, 0
        %v860 = vsel %vm771, %v736, 0
        %v863 = vsel %vm771, %v737, 0
        %v866 = vsel %vm771, %v738, 0
        %v869 = vsel %vm771, %v739, 0
        %v872 = vsel %vm771, %v740, 0
        %v875 = vsel %vm771, %v741, 0
        %v878 = vsel %vm771, %v742, 0
        %v881 = vsel %vm771, %v743, 0
        %v884 = vsel %vm771, %v744, 0
        %v887 = vsel %vm771, %v745, 0
        %v890 = vsel %vm771, %v746, 0
        %v893 = vsel %vm771, %v747, 0
        %v896 = vsel %vm771, %v748, 0
        %v899 = vsel %vm771, %v749, 0
        %v902 = vsel %vm771, %v750, 0
        %v905 = vsel %vm771, %v751, 0
        %v908 = vsel %vm771, %v752, 0
        %v911 = vsel %vm771, %v753, 0
        %v914 = vsel %vm771, %v754, 0
        %v917 = vsel %vm771, %v755, 0
        %v920 = vsel %vm771, %v756, 0
        %v923 = vsel %vm771, %v757, 0
        %v926 = vsel %vm771, %v758, 0
        %v929 = vsel %vm771, %v759, 0
        %v932 = vsel %vm771, %v760, 0
        %v935 = vsel %vm771, %v761, 0
        %v938 = vsel %vm771, %v762, 0
        %v941 = vsel %vm771, %v763, 0
        %v944 = vsel %vm771, %v764, 0
        %v947 = vsel %vm771, %v765, 0
        %v950 = vsel %vm771, %v766, 0
        %v953 = vsel %vm771, %v767, 0
        %v956 = vsel %vm771, %v768, 0
        %v959 = vsel %vm771, %v769, 0
        %v962 = vsel %vm771, %v770, 0
        %vm964 = vcmask 1043456
        %v966 = vsel %vm964, %v443, 0
        %968 = vmatprep.subr.bf16.mxu0 0
        %969 = vmatpush1.bf16.msra.mxu0 %v966
        %970 = vmatprep.subr.bf16.mxu0 0
        %971 = vmatpush1.bf16.msra.mxu0 0
        %972 = vmatprep.subr.bf16.mxu0 0
        %973 = vmatpush1.bf16.msra.mxu0 0
        %974 = vmatprep.subr.bf16.mxu0 0
        %975 = vmatpush1.bf16.msra.mxu0 0
        %976 = vmatprep.subr.bf16.mxu0 0
        %977 = vmatpush1.bf16.msra.mxu0 0
        %978 = vmatprep.subr.bf16.mxu0 0
        %979 = vmatpush1.bf16.msra.mxu0 0
        %980 = vmatprep.subr.bf16.mxu0 0
        %981 = vmatpush1.bf16.msra.mxu0 0
        %982 = vmatprep.subr.bf16.mxu0 0
        %983 = vmatpush1.bf16.msra.mxu0 0
        %984 = vmatprep.subr.bf16.mxu0 0
        %985 = vmatpush1.bf16.msra.mxu0 0
        %986 = vmatprep.subr.bf16.mxu0 0
        %987 = vmatpush1.bf16.msra.mxu0 0
        %988 = vmatprep.subr.bf16.mxu0 0
        %989 = vmatpush1.bf16.msra.mxu0 0
        %990 = vmatprep.subr.bf16.mxu0 0
        %991 = vmatpush1.bf16.msra.mxu0 0
        %992 = vmatprep.subr.bf16.mxu0 0
        %993 = vmatpush1.bf16.msra.mxu0 0
        %994 = vmatprep.subr.bf16.mxu0 0
        %995 = vmatpush1.bf16.msra.mxu0 0
        %996 = vmatprep.subr.bf16.mxu0 0
        %997 = vmatpush1.bf16.msra.mxu0 0
        %998 = vmatprep.subr.bf16.mxu0 0
        %999 = vmatpush1.bf16.msra.mxu0 0
        %1000 = vmatprep.mubr.bf16.mxu0 0
        %1001 = vmatmul.mubr.bf16.gmra.mrb[0].mxu0 %v773
        %v1002 = vpop.f32.mrb[0].mxu0
        %v1003 = vadd.f32 %v449, %v1002
        %v1004 = vpop.f32.mrb[0].mxu0
        %v1005 = vpop.f32.mrb[0].mxu0
        %v1006 = vadd.f32 %v449, %v1005
        %v1007 = vpop.f32.mrb[0].mxu0
        %1008 = vmatprep.mubr.bf16.mxu0 0
        %1009 = vmatmul.mubr.bf16.gmra.mrb[0].mxu0 %v776
        %v1010 = vpop.f32.mrb[0].mxu0
        %v1011 = vadd.f32 %v449, %v1010
        %v1012 = vpop.f32.mrb[0].mxu0
        %v1013 = vpop.f32.mrb[0].mxu0
        %v1014 = vadd.f32 %v449, %v1013
        %v1015 = vpop.f32.mrb[0].mxu0
        %1016 = vmatprep.mubr.bf16.mxu0 0
        %1017 = vmatmul.mubr.bf16.gmra.mrb[0].mxu0 %v779
        %v1018 = vpop.f32.mrb[0].mxu0
        %v1019 = vadd.f32 %v449, %v1018
        %v1020 = vpop.f32.mrb[0].mxu0
        %v1021 = vpop.f32.mrb[0].mxu0
        %v1022 = vadd.f32 %v449, %v1021
        %v1023 = vpop.f32.mrb[0].mxu0
        %1024 = vmatprep.mubr.bf16.mxu0 0
        %1025 = vmatmul.mubr.bf16.gmra.mrb[0].mxu0 %v782
        %v1026 = vpop.f32.mrb[0].mxu0
        %v1027 = vadd.f32 %v449, %v1026
        %v1028 = vpop.f32.mrb[0].mxu0
        %v1029 = vpop.f32.mrb[0].mxu0
        %v1030 = vadd.f32 %v449, %v1029
        %v1031 = vpop.f32.mrb[0].mxu0
        %1032 = vmatprep.mubr.bf16.mxu0 0
        %1033 = vmatmul.mubr.bf16.gmra.mrb[0].mxu0 %v785
        %v1034 = vpop.f32.mrb[0].mxu0
        %v1035 = vadd.f32 %v449, %v1034
        %v1036 = vpop.f32.mrb[0].mxu0
        %v1037 = vpop.f32.mrb[0].mxu0
        %v1038 = vadd.f32 %v449, %v1037
        %v1039 = vpop.f32.mrb[0].mxu0
        %1040 = vmatprep.mubr.bf16.mxu0 0
        %1041 = vmatmul.mubr.bf16.gmra.mrb[0].mxu0 %v788
        %v1042 = vpop.f32.mrb[0].mxu0
        %v1043 = vadd.f32 %v449, %v1042
        %v1044 = vpop.f32.mrb[0].mxu0
        %v1045 = vpop.f32.mrb[0].mxu0
        %v1046 = vadd.f32 %v449, %v1045
        %v1047 = vpop.f32.mrb[0].mxu0
        %1048 = vmatprep.mubr.bf16.mxu0 0
        %1049 = vmatmul.mubr.bf16.gmra.mrb[0].mxu0 %v791
        %v1050 = vpop.f32.mrb[0].mxu0
        %v1051 = vadd.f32 %v449, %v1050
        %v1052 = vpop.f32.mrb[0].mxu0
        %v1053 = vpop.f32.mrb[0].mxu0
        %v1054 = vadd.f32 %v449, %v1053
        %v1055 = vpop.f32.mrb[0].mxu0
        %1056 = vmatprep.mubr.bf16.mxu0 0
        %1057 = vmatmul.mubr.bf16.gmra.mrb[0].mxu0 %v794
        %v1058 = vpop.f32.mrb[0].mxu0
        %v1059 = vadd.f32 %v449, %v1058
        %v1060 = vpop.f32.mrb[0].mxu0
        %v1061 = vpop.f32.mrb[0].mxu0
        %v1062 = vadd.f32 %v449, %v1061
        %v1063 = vpop.f32.mrb[0].mxu0
        %1064 = vmatprep.mubr.bf16.mxu0 0
        %1065 = vmatmul.mubr.bf16.gmra.mrb[0].mxu0 %v797
        %v1066 = vpop.f32.mrb[0].mxu0
        %v1067 = vadd.f32 %v449, %v1066
        %v1068 = vpop.f32.mrb[0].mxu0
        %v1069 = vpop.f32.mrb[0].mxu0
        %v1070 = vadd.f32 %v449, %v1069
        %v1071 = vpop.f32.mrb[0].mxu0
        %1072 = vmatprep.mubr.bf16.mxu0 0
        %1073 = vmatmul.mubr.bf16.gmra.mrb[0].mxu0 %v800
        %v1074 = vpop.f32.mrb[0].mxu0
        %v1075 = vadd.f32 %v449, %v1074
        %v1076 = vpop.f32.mrb[0].mxu0
        %v1077 = vpop.f32.mrb[0].mxu0
        %v1078 = vadd.f32 %v449, %v1077
        %v1079 = vpop.f32.mrb[0].mxu0
        %1080 = vmatprep.mubr.bf16.mxu0 0
        %1081 = vmatmul.mubr.bf16.gmra.mrb[0].mxu0 %v803
        %v1082 = vpop.f32.mrb[0].mxu0
        %v1083 = vadd.f32 %v449, %v1082
        %v1084 = vpop.f32.mrb[0].mxu0
        %v1085 = vpop.f32.mrb[0].mxu0
        %v1086 = vadd.f32 %v449, %v1085
        %v1087 = vpop.f32.mrb[0].mxu0
        %1088 = vmatprep.mubr.bf16.mxu0 0
        %1089 = vmatmul.mubr.bf16.gmra.mrb[0].mxu0 %v806
        %v1090 = vpop.f32.mrb[0].mxu0
        %v1091 = vadd.f32 %v449, %v1090
        %v1092 = vpop.f32.mrb[0].mxu0
        %v1093 = vpop.f32.mrb[0].mxu0
        %v1094 = vadd.f32 %v449, %v1093
        %v1095 = vpop.f32.mrb[0].mxu0
        %1096 = vmatprep.mubr.bf16.mxu0 0
        %1097 = vmatmul.mubr.bf16.gmra.mrb[0].mxu0 %v809
        %v1098 = vpop.f32.mrb[0].mxu0
        %v1099 = vadd.f32 %v449, %v1098
        %v1100 = vpop.f32.mrb[0].mxu0
        %v1101 = vpop.f32.mrb[0].mxu0
        %v1102 = vadd.f32 %v449, %v1101
        %v1103 = vpop.f32.mrb[0].mxu0
        %1104 = vmatprep.mubr.bf16.mxu0 0
        %1105 = vmatmul.mubr.bf16.gmra.mrb[0].mxu0 %v812
        %v1106 = vpop.f32.mrb[0].mxu0
        %v1107 = vadd.f32 %v449, %v1106
        %v1108 = vpop.f32.mrb[0].mxu0
        %v1109 = vpop.f32.mrb[0].mxu0
        %v1110 = vadd.f32 %v449, %v1109
        %v1111 = vpop.f32.mrb[0].mxu0
        %1112 = vmatprep.mubr.bf16.mxu0 0
        %1113 = vmatmul.mubr.bf16.gmra.mrb[0].mxu0 %v815
        %v1114 = vpop.f32.mrb[0].mxu0
        %v1115 = vadd.f32 %v449, %v1114
        %v1116 = vpop.f32.mrb[0].mxu0
        %v1117 = vpop.f32.mrb[0].mxu0
        %v1118 = vadd.f32 %v449, %v1117
        %v1119 = vpop.f32.mrb[0].mxu0
        %1120 = vmatprep.mubr.bf16.mxu0 0
        %1121 = vmatmul.mubr.bf16.gmra.mrb[0].mxu0 %v818
        %v1122 = vpop.f32.mrb[0].mxu0
        %v1123 = vadd.f32 %v449, %v1122
        %v1124 = vpop.f32.mrb[0].mxu0
        %v1125 = vpop.f32.mrb[0].mxu0
        %v1126 = vadd.f32 %v449, %v1125
        %v1127 = vpop.f32.mrb[0].mxu0
        %1128 = vmatprep.mubr.bf16.mxu0 0
        %1129 = vmatmul.mubr.bf16.gmra.mrb[0].mxu0 %v821
        %v1130 = vpop.f32.mrb[0].mxu0
        %v1131 = vadd.f32 %v449, %v1130
        %v1132 = vpop.f32.mrb[0].mxu0
        %v1133 = vpop.f32.mrb[0].mxu0
        %v1134 = vadd.f32 %v449, %v1133
        %v1135 = vpop.f32.mrb[0].mxu0
        %1136 = vmatprep.mubr.bf16.mxu0 0
        %1137 = vmatmul.mubr.bf16.gmra.mrb[0].mxu0 %v824
        %v1138 = vpop.f32.mrb[0].mxu0
        %v1139 = vadd.f32 %v449, %v1138
        %v1140 = vpop.f32.mrb[0].mxu0
        %v1141 = vpop.f32.mrb[0].mxu0
        %v1142 = vadd.f32 %v449, %v1141
        %v1143 = vpop.f32.mrb[0].mxu0
        %1144 = vmatprep.mubr.bf16.mxu0 0
        %1145 = vmatmul.mubr.bf16.gmra.mrb[0].mxu0 %v827
        %v1146 = vpop.f32.mrb[0].mxu0
        %v1147 = vadd.f32 %v449, %v1146
        %v1148 = vpop.f32.mrb[0].mxu0
        %v1149 = vpop.f32.mrb[0].mxu0
        %v1150 = vadd.f32 %v449, %v1149
        %v1151 = vpop.f32.mrb[0].mxu0
        %1152 = vmatprep.mubr.bf16.mxu0 0
        %1153 = vmatmul.mubr.bf16.gmra.mrb[0].mxu0 %v830
        %v1154 = vpop.f32.mrb[0].mxu0
        %v1155 = vadd.f32 %v449, %v1154
        %v1156 = vpop.f32.mrb[0].mxu0
        %v1157 = vpop.f32.mrb[0].mxu0
        %v1158 = vadd.f32 %v449, %v1157
        %v1159 = vpop.f32.mrb[0].mxu0
        %1160 = vmatprep.mubr.bf16.mxu0 0
        %1161 = vmatmul.mubr.bf16.gmra.mrb[0].mxu0 %v833
        %v1162 = vpop.f32.mrb[0].mxu0
        %v1163 = vadd.f32 %v449, %v1162
        %v1164 = vpop.f32.mrb[0].mxu0
        %v1165 = vpop.f32.mrb[0].mxu0
        %v1166 = vadd.f32 %v449, %v1165
        %v1167 = vpop.f32.mrb[0].mxu0
        %1168 = vmatprep.mubr.bf16.mxu0 0
        %1169 = vmatmul.mubr.bf16.gmra.mrb[0].mxu0 %v836
        %v1170 = vpop.f32.mrb[0].mxu0
        %v1171 = vadd.f32 %v449, %v1170
        %v1172 = vpop.f32.mrb[0].mxu0
        %v1173 = vpop.f32.mrb[0].mxu0
        %v1174 = vadd.f32 %v449, %v1173
        %v1175 = vpop.f32.mrb[0].mxu0
        %1176 = vmatprep.mubr.bf16.mxu0 0
        %1177 = vmatmul.mubr.bf16.gmra.mrb[0].mxu0 %v839
        %v1178 = vpop.f32.mrb[0].mxu0
        %v1179 = vadd.f32 %v449, %v1178
        %v1180 = vpop.f32.mrb[0].mxu0
        %v1181 = vpop.f32.mrb[0].mxu0
        %v1182 = vadd.f32 %v449, %v1181
        %v1183 = vpop.f32.mrb[0].mxu0
        %1184 = vmatprep.mubr.bf16.mxu0 0
        %1185 = vmatmul.mubr.bf16.gmra.mrb[0].mxu0 %v842
        %v1186 = vpop.f32.mrb[0].mxu0
        %v1187 = vadd.f32 %v449, %v1186
        %v1188 = vpop.f32.mrb[0].mxu0
        %v1189 = vpop.f32.mrb[0].mxu0
        %v1190 = vadd.f32 %v449, %v1189
        %v1191 = vpop.f32.mrb[0].mxu0
        %1192 = vmatprep.mubr.bf16.mxu0 0
        %1193 = vmatmul.mubr.bf16.gmra.mrb[0].mxu0 %v845
        %v1194 = vpop.f32.mrb[0].mxu0
        %v1195 = vadd.f32 %v449, %v1194
        %v1196 = vpop.f32.mrb[0].mxu0
        %v1197 = vpop.f32.mrb[0].mxu0
        %v1198 = vadd.f32 %v449, %v1197
        %v1199 = vpop.f32.mrb[0].mxu0
        %1200 = vmatprep.mubr.bf16.mxu0 0
        %1201 = vmatmul.mubr.bf16.gmra.mrb[0].mxu0 %v848
        %v1202 = vpop.f32.mrb[0].mxu0
        %v1203 = vadd.f32 %v449, %v1202
        %v1204 = vpop.f32.mrb[0].mxu0
        %v1205 = vpop.f32.mrb[0].mxu0
        %v1206 = vadd.f32 %v449, %v1205
        %v1207 = vpop.f32.mrb[0].mxu0
        %1208 = vmatprep.mubr.bf16.mxu0 0
        %1209 = vmatmul.mubr.bf16.gmra.mrb[0].mxu0 %v851
        %v1210 = vpop.f32.mrb[0].mxu0
        %v1211 = vadd.f32 %v449, %v1210
        %v1212 = vpop.f32.mrb[0].mxu0
        %v1213 = vpop.f32.mrb[0].mxu0
        %v1214 = vadd.f32 %v449, %v1213
        %v1215 = vpop.f32.mrb[0].mxu0
        %1216 = vmatprep.mubr.bf16.mxu0 0
        %1217 = vmatmul.mubr.bf16.gmra.mrb[0].mxu0 %v854
        %v1218 = vpop.f32.mrb[0].mxu0
        %v1219 = vadd.f32 %v449, %v1218
        %v1220 = vpop.f32.mrb[0].mxu0
        %v1221 = vpop.f32.mrb[0].mxu0
        %v1222 = vadd.f32 %v449, %v1221
        %v1223 = vpop.f32.mrb[0].mxu0
        %1224 = vmatprep.mubr.bf16.mxu0 0
        %1225 = vmatmul.mubr.bf16.gmra.mrb[0].mxu0 %v857
        %v1226 = vpop.f32.mrb[0].mxu0
        %v1227 = vadd.f32 %v449, %v1226
        %v1228 = vpop.f32.mrb[0].mxu0
        %v1229 = vpop.f32.mrb[0].mxu0
        %v1230 = vadd.f32 %v449, %v1229
        %v1231 = vpop.f32.mrb[0].mxu0
        %1232 = vmatprep.mubr.bf16.mxu0 0
        %1233 = vmatmul.mubr.bf16.gmra.mrb[0].mxu0 %v860
        %v1234 = vpop.f32.mrb[0].mxu0
        %v1235 = vadd.f32 %v449, %v1234
        %v1236 = vpop.f32.mrb[0].mxu0
        %v1237 = vpop.f32.mrb[0].mxu0
        %v1238 = vadd.f32 %v449, %v1237
        %v1239 = vpop.f32.mrb[0].mxu0
        %1240 = vmatprep.mubr.bf16.mxu0 0
        %1241 = vmatmul.mubr.bf16.gmra.mrb[0].mxu0 %v863
        %v1242 = vpop.f32.mrb[0].mxu0
        %v1243 = vadd.f32 %v449, %v1242
        %v1244 = vpop.f32.mrb[0].mxu0
        %v1245 = vpop.f32.mrb[0].mxu0
        %v1246 = vadd.f32 %v449, %v1245
        %v1247 = vpop.f32.mrb[0].mxu0
        %1248 = vmatprep.mubr.bf16.mxu0 0
        %1249 = vmatmul.mubr.bf16.gmra.mrb[0].mxu0 %v866
        %v1250 = vpop.f32.mrb[0].mxu0
        %v1251 = vadd.f32 %v449, %v1250
        %v1252 = vpop.f32.mrb[0].mxu0
        %v1253 = vpop.f32.mrb[0].mxu0
        %v1254 = vadd.f32 %v449, %v1253
        %v1255 = vpop.f32.mrb[0].mxu0
        %1256 = vmatprep.mubr.bf16.mxu0 0
        %1257 = vmatmul.mubr.bf16.gmra.mrb[0].mxu0 %v869
        %v1258 = vpop.f32.mrb[0].mxu0
        %v1259 = vadd.f32 %v449, %v1258
        %v1260 = vpop.f32.mrb[0].mxu0
        %v1261 = vpop.f32.mrb[0].mxu0
        %v1262 = vadd.f32 %v449, %v1261
        %v1263 = vpop.f32.mrb[0].mxu0
        %1264 = vmatprep.mubr.bf16.mxu0 0
        %1265 = vmatmul.mubr.bf16.gmra.mrb[0].mxu0 %v872
        %v1266 = vpop.f32.mrb[0].mxu0
        %v1267 = vadd.f32 %v449, %v1266
        %v1268 = vpop.f32.mrb[0].mxu0
        %v1269 = vpop.f32.mrb[0].mxu0
        %v1270 = vadd.f32 %v449, %v1269
        %v1271 = vpop.f32.mrb[0].mxu0
        %1272 = vmatprep.mubr.bf16.mxu0 0
        %1273 = vmatmul.mubr.bf16.gmra.mrb[0].mxu0 %v875
        %v1274 = vpop.f32.mrb[0].mxu0
        %v1275 = vadd.f32 %v449, %v1274
        %v1276 = vpop.f32.mrb[0].mxu0
        %v1277 = vpop.f32.mrb[0].mxu0
        %v1278 = vadd.f32 %v449, %v1277
        %v1279 = vpop.f32.mrb[0].mxu0
        %1280 = vmatprep.mubr.bf16.mxu0 0
        %1281 = vmatmul.mubr.bf16.gmra.mrb[0].mxu0 %v878
        %v1282 = vpop.f32.mrb[0].mxu0
        %v1283 = vadd.f32 %v449, %v1282
        %v1284 = vpop.f32.mrb[0].mxu0
        %v1285 = vpop.f32.mrb[0].mxu0
        %v1286 = vadd.f32 %v449, %v1285
        %v1287 = vpop.f32.mrb[0].mxu0
        %1288 = vmatprep.mubr.bf16.mxu0 0
        %1289 = vmatmul.mubr.bf16.gmra.mrb[0].mxu0 %v881
        %v1290 = vpop.f32.mrb[0].mxu0
        %v1291 = vadd.f32 %v449, %v1290
        %v1292 = vpop.f32.mrb[0].mxu0
        %v1293 = vpop.f32.mrb[0].mxu0
        %v1294 = vadd.f32 %v449, %v1293
        %v1295 = vpop.f32.mrb[0].mxu0
        %1296 = vmatprep.mubr.bf16.mxu0 0
        %1297 = vmatmul.mubr.bf16.gmra.mrb[0].mxu0 %v884
        %v1298 = vpop.f32.mrb[0].mxu0
        %v1299 = vadd.f32 %v449, %v1298
        %v1300 = vpop.f32.mrb[0].mxu0
        %v1301 = vpop.f32.mrb[0].mxu0
        %v1302 = vadd.f32 %v449, %v1301
        %v1303 = vpop.f32.mrb[0].mxu0
        %1304 = vmatprep.mubr.bf16.mxu0 0
        %1305 = vmatmul.mubr.bf16.gmra.mrb[0].mxu0 %v887
        %v1306 = vpop.f32.mrb[0].mxu0
        %v1307 = vadd.f32 %v449, %v1306
        %v1308 = vpop.f32.mrb[0].mxu0
        %v1309 = vpop.f32.mrb[0].mxu0
        %v1310 = vadd.f32 %v449, %v1309
        %v1311 = vpop.f32.mrb[0].mxu0
        %1312 = vmatprep.mubr.bf16.mxu0 0
        %1313 = vmatmul.mubr.bf16.gmra.mrb[0].mxu0 %v890
        %v1314 = vpop.f32.mrb[0].mxu0
        %v1315 = vadd.f32 %v449, %v1314
        %v1316 = vpop.f32.mrb[0].mxu0
        %v1317 = vpop.f32.mrb[0].mxu0
        %v1318 = vadd.f32 %v449, %v1317
        %v1319 = vpop.f32.mrb[0].mxu0
        %1320 = vmatprep.mubr.bf16.mxu0 0
        %1321 = vmatmul.mubr.bf16.gmra.mrb[0].mxu0 %v893
        %v1322 = vpop.f32.mrb[0].mxu0
        %v1323 = vadd.f32 %v449, %v1322
        %v1324 = vpop.f32.mrb[0].mxu0
        %v1325 = vpop.f32.mrb[0].mxu0
        %v1326 = vadd.f32 %v449, %v1325
        %v1327 = vpop.f32.mrb[0].mxu0
        %1328 = vmatprep.mubr.bf16.mxu0 0
        %1329 = vmatmul.mubr.bf16.gmra.mrb[0].mxu0 %v896
        %v1330 = vpop.f32.mrb[0].mxu0
        %v1331 = vadd.f32 %v449, %v1330
        %v1332 = vpop.f32.mrb[0].mxu0
        %v1333 = vpop.f32.mrb[0].mxu0
        %v1334 = vadd.f32 %v449, %v1333
        %v1335 = vpop.f32.mrb[0].mxu0
        %1336 = vmatprep.mubr.bf16.mxu0 0
        %1337 = vmatmul.mubr.bf16.gmra.mrb[0].mxu0 %v899
        %v1338 = vpop.f32.mrb[0].mxu0
        %v1339 = vadd.f32 %v449, %v1338
        %v1340 = vpop.f32.mrb[0].mxu0
        %v1341 = vpop.f32.mrb[0].mxu0
        %v1342 = vadd.f32 %v449, %v1341
        %v1343 = vpop.f32.mrb[0].mxu0
        %1344 = vmatprep.mubr.bf16.mxu0 0
        %1345 = vmatmul.mubr.bf16.gmra.mrb[0].mxu0 %v902
        %v1346 = vpop.f32.mrb[0].mxu0
        %v1347 = vadd.f32 %v449, %v1346
        %v1348 = vpop.f32.mrb[0].mxu0
        %v1349 = vpop.f32.mrb[0].mxu0
        %v1350 = vadd.f32 %v449, %v1349
        %v1351 = vpop.f32.mrb[0].mxu0
        %1352 = vmatprep.mubr.bf16.mxu0 0
        %1353 = vmatmul.mubr.bf16.gmra.mrb[0].mxu0 %v905
        %v1354 = vpop.f32.mrb[0].mxu0
        %v1355 = vadd.f32 %v449, %v1354
        %v1356 = vpop.f32.mrb[0].mxu0
        %v1357 = vpop.f32.mrb[0].mxu0
        %v1358 = vadd.f32 %v449, %v1357
        %v1359 = vpop.f32.mrb[0].mxu0
        %1360 = vmatprep.mubr.bf16.mxu0 0
        %1361 = vmatmul.mubr.bf16.gmra.mrb[0].mxu0 %v908
        %v1362 = vpop.f32.mrb[0].mxu0
        %v1363 = vadd.f32 %v449, %v1362
        %v1364 = vpop.f32.mrb[0].mxu0
        %v1365 = vpop.f32.mrb[0].mxu0
        %v1366 = vadd.f32 %v449, %v1365
        %v1367 = vpop.f32.mrb[0].mxu0
        %1368 = vmatprep.mubr.bf16.mxu0 0
        %1369 = vmatmul.mubr.bf16.gmra.mrb[0].mxu0 %v911
        %v1370 = vpop.f32.mrb[0].mxu0
        %v1371 = vadd.f32 %v449, %v1370
        %v1372 = vpop.f32.mrb[0].mxu0
        %v1373 = vpop.f32.mrb[0].mxu0
        %v1374 = vadd.f32 %v449, %v1373
        %v1375 = vpop.f32.mrb[0].mxu0
        %1376 = vmatprep.mubr.bf16.mxu0 0
        %1377 = vmatmul.mubr.bf16.gmra.mrb[0].mxu0 %v914
        %v1378 = vpop.f32.mrb[0].mxu0
        %v1379 = vadd.f32 %v449, %v1378
        %v1380 = vpop.f32.mrb[0].mxu0
        %v1381 = vpop.f32.mrb[0].mxu0
        %v1382 = vadd.f32 %v449, %v1381
        %v1383 = vpop.f32.mrb[0].mxu0
        %1384 = vmatprep.mubr.bf16.mxu0 0
        %1385 = vmatmul.mubr.bf16.gmra.mrb[0].mxu0 %v917
        %v1386 = vpop.f32.mrb[0].mxu0
        %v1387 = vadd.f32 %v449, %v1386
        %v1388 = vpop.f32.mrb[0].mxu0
        %v1389 = vpop.f32.mrb[0].mxu0
        %v1390 = vadd.f32 %v449, %v1389
        %v1391 = vpop.f32.mrb[0].mxu0
        %1392 = vmatprep.mubr.bf16.mxu0 0
        %1393 = vmatmul.mubr.bf16.gmra.mrb[0].mxu0 %v920
        %v1394 = vpop.f32.mrb[0].mxu0
        %v1395 = vadd.f32 %v449, %v1394
        %v1396 = vpop.f32.mrb[0].mxu0
        %v1397 = vpop.f32.mrb[0].mxu0
        %v1398 = vadd.f32 %v449, %v1397
        %v1399 = vpop.f32.mrb[0].mxu0
        %1400 = vmatprep.mubr.bf16.mxu0 0
        %1401 = vmatmul.mubr.bf16.gmra.mrb[0].mxu0 %v923
        %v1402 = vpop.f32.mrb[0].mxu0
        %v1403 = vadd.f32 %v449, %v1402
        %v1404 = vpop.f32.mrb[0].mxu0
        %v1405 = vpop.f32.mrb[0].mxu0
        %v1406 = vadd.f32 %v449, %v1405
        %v1407 = vpop.f32.mrb[0].mxu0
        %1408 = vmatprep.mubr.bf16.mxu0 0
        %1409 = vmatmul.mubr.bf16.gmra.mrb[0].mxu0 %v926
        %v1410 = vpop.f32.mrb[0].mxu0
        %v1411 = vadd.f32 %v449, %v1410
        %v1412 = vpop.f32.mrb[0].mxu0
        %v1413 = vpop.f32.mrb[0].mxu0
        %v1414 = vadd.f32 %v449, %v1413
        %v1415 = vpop.f32.mrb[0].mxu0
        %1416 = vmatprep.mubr.bf16.mxu0 0
        %1417 = vmatmul.mubr.bf16.gmra.mrb[0].mxu0 %v929
        %v1418 = vpop.f32.mrb[0].mxu0
        %v1419 = vadd.f32 %v449, %v1418
        %v1420 = vpop.f32.mrb[0].mxu0
        %v1421 = vpop.f32.mrb[0].mxu0
        %v1422 = vadd.f32 %v449, %v1421
        %v1423 = vpop.f32.mrb[0].mxu0
        %1424 = vmatprep.mubr.bf16.mxu0 0
        %1425 = vmatmul.mubr.bf16.gmra.mrb[0].mxu0 %v932
        %v1426 = vpop.f32.mrb[0].mxu0
        %v1427 = vadd.f32 %v449, %v1426
        %v1428 = vpop.f32.mrb[0].mxu0
        %v1429 = vpop.f32.mrb[0].mxu0
        %v1430 = vadd.f32 %v449, %v1429
        %v1431 = vpop.f32.mrb[0].mxu0
        %1432 = vmatprep.mubr.bf16.mxu0 0
        %1433 = vmatmul.mubr.bf16.gmra.mrb[0].mxu0 %v935
        %v1434 = vpop.f32.mrb[0].mxu0
        %v1435 = vadd.f32 %v449, %v1434
        %v1436 = vpop.f32.mrb[0].mxu0
        %v1437 = vpop.f32.mrb[0].mxu0
        %v1438 = vadd.f32 %v449, %v1437
        %v1439 = vpop.f32.mrb[0].mxu0
        %1440 = vmatprep.mubr.bf16.mxu0 0
        %1441 = vmatmul.mubr.bf16.gmra.mrb[0].mxu0 %v938
        %v1442 = vpop.f32.mrb[0].mxu0
        %v1443 = vadd.f32 %v449, %v1442
        %v1444 = vpop.f32.mrb[0].mxu0
        %v1445 = vpop.f32.mrb[0].mxu0
        %v1446 = vadd.f32 %v449, %v1445
        %v1447 = vpop.f32.mrb[0].mxu0
        %1448 = vmatprep.mubr.bf16.mxu0 0
        %1449 = vmatmul.mubr.bf16.gmra.mrb[0].mxu0 %v941
        %v1450 = vpop.f32.mrb[0].mxu0
        %v1451 = vadd.f32 %v449, %v1450
        %v1452 = vpop.f32.mrb[0].mxu0
        %v1453 = vpop.f32.mrb[0].mxu0
        %v1454 = vadd.f32 %v449, %v1453
        %v1455 = vpop.f32.mrb[0].mxu0
        %1456 = vmatprep.mubr.bf16.mxu0 0
        %1457 = vmatmul.mubr.bf16.gmra.mrb[0].mxu0 %v944
        %v1458 = vpop.f32.mrb[0].mxu0
        %v1459 = vadd.f32 %v449, %v1458
        %v1460 = vpop.f32.mrb[0].mxu0
        %v1461 = vpop.f32.mrb[0].mxu0
        %v1462 = vadd.f32 %v449, %v1461
        %v1463 = vpop.f32.mrb[0].mxu0
        %1464 = vmatprep.mubr.bf16.mxu0 0
        %1465 = vmatmul.mubr.bf16.gmra.mrb[0].mxu0 %v947
        %v1466 = vpop.f32.mrb[0].mxu0
        %v1467 = vadd.f32 %v449, %v1466
        %v1468 = vpop.f32.mrb[0].mxu0
        %v1469 = vpop.f32.mrb[0].mxu0
        %v1470 = vadd.f32 %v449, %v1469
        %v1471 = vpop.f32.mrb[0].mxu0
        %1472 = vmatprep.mubr.bf16.mxu0 0
        %1473 = vmatmul.mubr.bf16.gmra.mrb[0].mxu0 %v950
        %v1474 = vpop.f32.mrb[0].mxu0
        %v1475 = vadd.f32 %v449, %v1474
        %v1476 = vpop.f32.mrb[0].mxu0
        %v1477 = vpop.f32.mrb[0].mxu0
        %v1478 = vadd.f32 %v449, %v1477
        %v1479 = vpop.f32.mrb[0].mxu0
        %1480 = vmatprep.mubr.bf16.mxu0 0
        %1481 = vmatmul.mubr.bf16.gmra.mrb[0].mxu0 %v953
        %v1482 = vpop.f32.mrb[0].mxu0
        %v1483 = vadd.f32 %v449, %v1482
        %v1484 = vpop.f32.mrb[0].mxu0
        %v1485 = vpop.f32.mrb[0].mxu0
        %v1486 = vadd.f32 %v449, %v1485
        %v1487 = vpop.f32.mrb[0].mxu0
        %1488 = vmatprep.mubr.bf16.mxu0 0
        %1489 = vmatmul.mubr.bf16.gmra.mrb[0].mxu0 %v956
        %v1490 = vpop.f32.mrb[0].mxu0
        %v1491 = vadd.f32 %v449, %v1490
        %v1492 = vpop.f32.mrb[0].mxu0
        %v1493 = vpop.f32.mrb[0].mxu0
        %v1494 = vadd.f32 %v449, %v1493
        %v1495 = vpop.f32.mrb[0].mxu0
        %1496 = vmatprep.mubr.bf16.mxu0 0
        %1497 = vmatmul.mubr.bf16.gmra.mrb[0].mxu0 %v959
        %v1498 = vpop.f32.mrb[0].mxu0
        %v1499 = vadd.f32 %v449, %v1498
        %v1500 = vpop.f32.mrb[0].mxu0
        %v1501 = vpop.f32.mrb[0].mxu0
        %v1502 = vadd.f32 %v449, %v1501
        %v1503 = vpop.f32.mrb[0].mxu0
        %1504 = vmatprep.mubr.bf16.mxu0 0
        %1505 = vmatmul.mubr.bf16.gmra.mrb[0].mxu0 %v962
        %v1506 = vpop.f32.mrb[0].mxu0
        %v1507 = vadd.f32 %v449, %v1506
        %v1508 = vpop.f32.mrb[0].mxu0
        %v1509 = vpop.f32.mrb[0].mxu0
        %v1510 = vadd.f32 %v449, %v1509
        %v1511 = vpop.f32.mrb[0].mxu0
        %1512 = vdwg.mxu0
        %v1513 = vmul.f32 %v1003, 0.2
        %v1514 = vmul.f32 %v1006, 0.2
        %v1515 = vmul.f32 %v1011, 0.2
        %v1516 = vmul.f32 %v1014, 0.2
        %v1517 = vmul.f32 %v1019, 0.2
        %v1518 = vmul.f32 %v1022, 0.2
        %v1519 = vmul.f32 %v1027, 0.2
        %v1520 = vmul.f32 %v1030, 0.2
        %v1521 = vmul.f32 %v1035, 0.2
        %v1522 = vmul.f32 %v1038, 0.2
        %v1523 = vmul.f32 %v1043, 0.2
        %v1524 = vmul.f32 %v1046, 0.2
        %v1525 = vmul.f32 %v1051, 0.2
        %v1526 = vmul.f32 %v1054, 0.2
        %v1527 = vmul.f32 %v1059, 0.2
        %v1528 = vmul.f32 %v1062, 0.2
        %v1529 = vmul.f32 %v1067, 0.2
        %v1530 = vmul.f32 %v1070, 0.2
        %v1531 = vmul.f32 %v1075, 0.2
        %v1532 = vmul.f32 %v1078, 0.2
        %v1533 = vmul.f32 %v1083, 0.2
        %v1534 = vmul.f32 %v1086, 0.2
        %v1535 = vmul.f32 %v1091, 0.2
        %v1536 = vmul.f32 %v1094, 0.2
        %v1537 = vmul.f32 %v1099, 0.2
        %v1538 = vmul.f32 %v1102, 0.2
        %v1539 = vmul.f32 %v1107, 0.2
        %v1540 = vmul.f32 %v1110, 0.2
        %v1541 = vmul.f32 %v1115, 0.2
        %v1542 = vmul.f32 %v1118, 0.2
        %v1543 = vmul.f32 %v1123, 0.2
        %v1544 = vmul.f32 %v1126, 0.2
        %v1545 = vmul.f32 %v1131, 0.2
        %v1546 = vmul.f32 %v1134, 0.2
        %v1547 = vmul.f32 %v1139, 0.2
        %v1548 = vmul.f32 %v1142, 0.2
        %v1549 = vmul.f32 %v1147, 0.2
        %v1550 = vmul.f32 %v1150, 0.2
        %v1551 = vmul.f32 %v1155, 0.2
        %v1552 = vmul.f32 %v1158, 0.2
        %v1553 = vmul.f32 %v1163, 0.2
        %v1554 = vmul.f32 %v1166, 0.2
        %v1555 = vmul.f32 %v1171, 0.2
        %v1556 = vmul.f32 %v1174, 0.2
        %v1557 = vmul.f32 %v1179, 0.2
        %v1558 = vmul.f32 %v1182, 0.2
        %v1559 = vmul.f32 %v1187, 0.2
        %v1560 = vmul.f32 %v1190, 0.2
        %v1561 = vmul.f32 %v1195, 0.2
        %v1562 = vmul.f32 %v1198, 0.2
        %v1563 = vmul.f32 %v1203, 0.2
        %v1564 = vmul.f32 %v1206, 0.2
        %v1565 = vmul.f32 %v1211, 0.2
        %v1566 = vmul.f32 %v1214, 0.2
        %v1567 = vmul.f32 %v1219, 0.2
        %v1568 = vmul.f32 %v1222, 0.2
        %v1569 = vmul.f32 %v1227, 0.2
        %v1570 = vmul.f32 %v1230, 0.2
        %v1571 = vmul.f32 %v1235, 0.2
        %v1572 = vmul.f32 %v1238, 0.2
        %v1573 = vmul.f32 %v1243, 0.2
        %v1574 = vmul.f32 %v1246, 0.2
        %v1575 = vmul.f32 %v1251, 0.2
        %v1576 = vmul.f32 %v1254, 0.2
        %v1577 = vmul.f32 %v1259, 0.2
        %v1578 = vmul.f32 %v1262, 0.2
        %v1579 = vmul.f32 %v1267, 0.2
        %v1580 = vmul.f32 %v1270, 0.2
        %v1581 = vmul.f32 %v1275, 0.2
        %v1582 = vmul.f32 %v1278, 0.2
        %v1583 = vmul.f32 %v1283, 0.2
        %v1584 = vmul.f32 %v1286, 0.2
        %v1585 = vmul.f32 %v1291, 0.2
        %v1586 = vmul.f32 %v1294, 0.2
        %v1587 = vmul.f32 %v1299, 0.2
        %v1588 = vmul.f32 %v1302, 0.2
        %v1589 = vmul.f32 %v1307, 0.2
        %v1590 = vmul.f32 %v1310, 0.2
        %v1591 = vmul.f32 %v1315, 0.2
        %v1592 = vmul.f32 %v1318, 0.2
        %v1593 = vmul.f32 %v1323, 0.2
        %v1594 = vmul.f32 %v1326, 0.2
        %v1595 = vmul.f32 %v1331, 0.2
        %v1596 = vmul.f32 %v1334, 0.2
        %v1597 = vmul.f32 %v1339, 0.2
        %v1598 = vmul.f32 %v1342, 0.2
        %v1599 = vmul.f32 %v1347, 0.2
        %v1600 = vmul.f32 %v1350, 0.2
        %v1601 = vmul.f32 %v1355, 0.2
        %v1602 = vmul.f32 %v1358, 0.2
        %v1603 = vmul.f32 %v1363, 0.2
        %v1604 = vmul.f32 %v1366, 0.2
        %v1605 = vmul.f32 %v1371, 0.2
        %v1606 = vmul.f32 %v1374, 0.2
        %v1607 = vmul.f32 %v1379, 0.2
        %v1608 = vmul.f32 %v1382, 0.2
        %v1609 = vmul.f32 %v1387, 0.2
        %v1610 = vmul.f32 %v1390, 0.2
        %v1611 = vmul.f32 %v1395, 0.2
        %v1612 = vmul.f32 %v1398, 0.2
        %v1613 = vmul.f32 %v1403, 0.2
        %v1614 = vmul.f32 %v1406, 0.2
        %v1615 = vmul.f32 %v1411, 0.2
        %v1616 = vmul.f32 %v1414, 0.2
        %v1617 = vmul.f32 %v1419, 0.2
        %v1618 = vmul.f32 %v1422, 0.2
        %v1619 = vmul.f32 %v1427, 0.2
        %v1620 = vmul.f32 %v1430, 0.2
        %v1621 = vmul.f32 %v1435, 0.2
        %v1622 = vmul.f32 %v1438, 0.2
        %v1623 = vmul.f32 %v1443, 0.2
        %v1624 = vmul.f32 %v1446, 0.2
        %v1625 = vmul.f32 %v1451, 0.2
        %v1626 = vmul.f32 %v1454, 0.2
        %v1627 = vmul.f32 %v1459, 0.2
        %v1628 = vmul.f32 %v1462, 0.2
        %v1629 = vmul.f32 %v1467, 0.2
        %v1630 = vmul.f32 %v1470, 0.2
        %v1631 = vmul.f32 %v1475, 0.2
        %v1632 = vmul.f32 %v1478, 0.2
        %v1633 = vmul.f32 %v1483, 0.2
        %v1634 = vmul.f32 %v1486, 0.2
        %v1635 = vmul.f32 %v1491, 0.2
        %v1636 = vmul.f32 %v1494, 0.2
        %v1637 = vmul.f32 %v1499, 0.2
        %v1638 = vmul.f32 %v1502, 0.2
        %v1639 = vmul.f32 %v1507, 0.2
        %v1640 = vmul.f32 %v1510, 0.2
        %v1641 = vmax.f32 %v1003, %v1513
        %v1642 = vmax.f32 %v1006, %v1514
        %v1643 = vmax.f32 %v1011, %v1515
        %v1644 = vmax.f32 %v1014, %v1516
        %v1645 = vmax.f32 %v1019, %v1517
        %v1646 = vmax.f32 %v1022, %v1518
        %v1647 = vmax.f32 %v1027, %v1519
        %v1648 = vmax.f32 %v1030, %v1520
        %v1649 = vmax.f32 %v1035, %v1521
        %v1650 = vmax.f32 %v1038, %v1522
        %v1651 = vmax.f32 %v1043, %v1523
        %v1652 = vmax.f32 %v1046, %v1524
        %v1653 = vmax.f32 %v1051, %v1525
        %v1654 = vmax.f32 %v1054, %v1526
        %v1655 = vmax.f32 %v1059, %v1527
        %v1656 = vmax.f32 %v1062, %v1528
        %v1657 = vmax.f32 %v1067, %v1529
        %v1658 = vmax.f32 %v1070, %v1530
        %v1659 = vmax.f32 %v1075, %v1531
        %v1660 = vmax.f32 %v1078, %v1532
        %v1661 = vmax.f32 %v1083, %v1533
        %v1662 = vmax.f32 %v1086, %v1534
        %v1663 = vmax.f32 %v1091, %v1535
        %v1664 = vmax.f32 %v1094, %v1536
        %v1665 = vmax.f32 %v1099, %v1537
        %v1666 = vmax.f32 %v1102, %v1538
        %v1667 = vmax.f32 %v1107, %v1539
        %v1668 = vmax.f32 %v1110, %v1540
        %v1669 = vmax.f32 %v1115, %v1541
        %v1670 = vmax.f32 %v1118, %v1542
        %v1671 = vmax.f32 %v1123, %v1543
        %v1672 = vmax.f32 %v1126, %v1544
        %v1673 = vmax.f32 %v1131, %v1545
        %v1674 = vmax.f32 %v1134, %v1546
        %v1675 = vmax.f32 %v1139, %v1547
        %v1676 = vmax.f32 %v1142, %v1548
        %v1677 = vmax.f32 %v1147, %v1549
        %v1678 = vmax.f32 %v1150, %v1550
        %v1679 = vmax.f32 %v1155, %v1551
        %v1680 = vmax.f32 %v1158, %v1552
        %v1681 = vmax.f32 %v1163, %v1553
        %v1682 = vmax.f32 %v1166, %v1554
        %v1683 = vmax.f32 %v1171, %v1555
        %v1684 = vmax.f32 %v1174, %v1556
        %v1685 = vmax.f32 %v1179, %v1557
        %v1686 = vmax.f32 %v1182, %v1558
        %v1687 = vmax.f32 %v1187, %v1559
        %v1688 = vmax.f32 %v1190, %v1560
        %v1689 = vmax.f32 %v1195, %v1561
        %v1690 = vmax.f32 %v1198, %v1562
        %v1691 = vmax.f32 %v1203, %v1563
        %v1692 = vmax.f32 %v1206, %v1564
        %v1693 = vmax.f32 %v1211, %v1565
        %v1694 = vmax.f32 %v1214, %v1566
        %v1695 = vmax.f32 %v1219, %v1567
        %v1696 = vmax.f32 %v1222, %v1568
        %v1697 = vmax.f32 %v1227, %v1569
        %v1698 = vmax.f32 %v1230, %v1570
        %v1699 = vmax.f32 %v1235, %v1571
        %v1700 = vmax.f32 %v1238, %v1572
        %v1701 = vmax.f32 %v1243, %v1573
        %v1702 = vmax.f32 %v1246, %v1574
        %v1703 = vmax.f32 %v1251, %v1575
        %v1704 = vmax.f32 %v1254, %v1576
        %v1705 = vmax.f32 %v1259, %v1577
        %v1706 = vmax.f32 %v1262, %v1578
        %v1707 = vmax.f32 %v1267, %v1579
        %v1708 = vmax.f32 %v1270, %v1580
        %v1709 = vmax.f32 %v1275, %v1581
        %v1710 = vmax.f32 %v1278, %v1582
        %v1711 = vmax.f32 %v1283, %v1583
        %v1712 = vmax.f32 %v1286, %v1584
        %v1713 = vmax.f32 %v1291, %v1585
        %v1714 = vmax.f32 %v1294, %v1586
        %v1715 = vmax.f32 %v1299, %v1587
        %v1716 = vmax.f32 %v1302, %v1588
        %v1717 = vmax.f32 %v1307, %v1589
        %v1718 = vmax.f32 %v1310, %v1590
        %v1719 = vmax.f32 %v1315, %v1591
        %v1720 = vmax.f32 %v1318, %v1592
        %v1721 = vmax.f32 %v1323, %v1593
        %v1722 = vmax.f32 %v1326, %v1594
        %v1723 = vmax.f32 %v1331, %v1595
        %v1724 = vmax.f32 %v1334, %v1596
        %v1725 = vmax.f32 %v1339, %v1597
        %v1726 = vmax.f32 %v1342, %v1598
        %v1727 = vmax.f32 %v1347, %v1599
        %v1728 = vmax.f32 %v1350, %v1600
        %v1729 = vmax.f32 %v1355, %v1601
        %v1730 = vmax.f32 %v1358, %v1602
        %v1731 = vmax.f32 %v1363, %v1603
        %v1732 = vmax.f32 %v1366, %v1604
        %v1733 = vmax.f32 %v1371, %v1605
        %v1734 = vmax.f32 %v1374, %v1606
        %v1735 = vmax.f32 %v1379, %v1607
        %v1736 = vmax.f32 %v1382, %v1608
        %v1737 = vmax.f32 %v1387, %v1609
        %v1738 = vmax.f32 %v1390, %v1610
        %v1739 = vmax.f32 %v1395, %v1611
        %v1740 = vmax.f32 %v1398, %v1612
        %v1741 = vmax.f32 %v1403, %v1613
        %v1742 = vmax.f32 %v1406, %v1614
        %v1743 = vmax.f32 %v1411, %v1615
        %v1744 = vmax.f32 %v1414, %v1616
        %v1745 = vmax.f32 %v1419, %v1617
        %v1746 = vmax.f32 %v1422, %v1618
        %v1747 = vmax.f32 %v1427, %v1619
        %v1748 = vmax.f32 %v1430, %v1620
        %v1749 = vmax.f32 %v1435, %v1621
        %v1750 = vmax.f32 %v1438, %v1622
        %v1751 = vmax.f32 %v1443, %v1623
        %v1752 = vmax.f32 %v1446, %v1624
        %v1753 = vmax.f32 %v1451, %v1625
        %v1754 = vmax.f32 %v1454, %v1626
        %v1755 = vmax.f32 %v1459, %v1627
        %v1756 = vmax.f32 %v1462, %v1628
        %v1757 = vmax.f32 %v1467, %v1629
        %v1758 = vmax.f32 %v1470, %v1630
        %v1759 = vmax.f32 %v1475, %v1631
        %v1760 = vmax.f32 %v1478, %v1632
        %v1761 = vmax.f32 %v1483, %v1633
        %v1762 = vmax.f32 %v1486, %v1634
        %v1763 = vmax.f32 %v1491, %v1635
        %v1764 = vmax.f32 %v1494, %v1636
        %v1765 = vmax.f32 %v1499, %v1637
        %v1766 = vmax.f32 %v1502, %v1638
        %v1767 = vmax.f32 %v1507, %v1639
        %v1768 = vmax.f32 %v1510, %v1640
        %v1769 = vpack.c.bf16 %v1642, %v1641
        %v1770 = vpack.c.bf16 %v1644, %v1643
        %v1771 = vpack.c.bf16 %v1646, %v1645
        %v1772 = vpack.c.bf16 %v1648, %v1647
        %v1773 = vpack.c.bf16 %v1650, %v1649
        %v1774 = vpack.c.bf16 %v1652, %v1651
        %v1775 = vpack.c.bf16 %v1654, %v1653
        %v1776 = vpack.c.bf16 %v1656, %v1655
        %v1777 = vpack.c.bf16 %v1658, %v1657
        %v1778 = vpack.c.bf16 %v1660, %v1659
        %v1779 = vpack.c.bf16 %v1662, %v1661
        %v1780 = vpack.c.bf16 %v1664, %v1663
        %v1781 = vpack.c.bf16 %v1666, %v1665
        %v1782 = vpack.c.bf16 %v1668, %v1667
        %v1783 = vpack.c.bf16 %v1670, %v1669
        %v1784 = vpack.c.bf16 %v1672, %v1671
        %v1785 = vpack.c.bf16 %v1674, %v1673
        %v1786 = vpack.c.bf16 %v1676, %v1675
        %v1787 = vpack.c.bf16 %v1678, %v1677
        %v1788 = vpack.c.bf16 %v1680, %v1679
        %v1789 = vpack.c.bf16 %v1682, %v1681
        %v1790 = vpack.c.bf16 %v1684, %v1683
        %v1791 = vpack.c.bf16 %v1686, %v1685
        %v1792 = vpack.c.bf16 %v1688, %v1687
        %v1793 = vpack.c.bf16 %v1690, %v1689
        %v1794 = vpack.c.bf16 %v1692, %v1691
        %v1795 = vpack.c.bf16 %v1694, %v1693
        %v1796 = vpack.c.bf16 %v1696, %v1695
        %v1797 = vpack.c.bf16 %v1698, %v1697
        %v1798 = vpack.c.bf16 %v1700, %v1699
        %v1799 = vpack.c.bf16 %v1702, %v1701
        %v1800 = vpack.c.bf16 %v1704, %v1703
        %v1801 = vpack.c.bf16 %v1706, %v1705
        %v1802 = vpack.c.bf16 %v1708, %v1707
        %v1803 = vpack.c.bf16 %v1710, %v1709
        %v1804 = vpack.c.bf16 %v1712, %v1711
        %v1805 = vpack.c.bf16 %v1714, %v1713
        %v1806 = vpack.c.bf16 %v1716, %v1715
        %v1807 = vpack.c.bf16 %v1718, %v1717
        %v1808 = vpack.c.bf16 %v1720, %v1719
        %v1809 = vpack.c.bf16 %v1722, %v1721
        %v1810 = vpack.c.bf16 %v1724, %v1723
        %v1811 = vpack.c.bf16 %v1726, %v1725
        %v1812 = vpack.c.bf16 %v1728, %v1727
        %v1813 = vpack.c.bf16 %v1730, %v1729
        %v1814 = vpack.c.bf16 %v1732, %v1731
        %v1815 = vpack.c.bf16 %v1734, %v1733
        %v1816 = vpack.c.bf16 %v1736, %v1735
        %v1817 = vpack.c.bf16 %v1738, %v1737
        %v1818 = vpack.c.bf16 %v1740, %v1739
        %v1819 = vpack.c.bf16 %v1742, %v1741
        %v1820 = vpack.c.bf16 %v1744, %v1743
        %v1821 = vpack.c.bf16 %v1746, %v1745
        %v1822 = vpack.c.bf16 %v1748, %v1747
        %v1823 = vpack.c.bf16 %v1750, %v1749
        %v1824 = vpack.c.bf16 %v1752, %v1751
        %v1825 = vpack.c.bf16 %v1754, %v1753
        %v1826 = vpack.c.bf16 %v1756, %v1755
        %v1827 = vpack.c.bf16 %v1758, %v1757
        %v1828 = vpack.c.bf16 %v1760, %v1759
        %v1829 = vpack.c.bf16 %v1762, %v1761
        %v1830 = vpack.c.bf16 %v1764, %v1763
        %v1831 = vpack.c.bf16 %v1766, %v1765
        %v1832 = vpack.c.bf16 %v1768, %v1767
        %v1833 = vld [vmem:[#allocation8] sm:$0xf]
        %v1834 = vld [vmem:[#allocation8 + $0x4] sm:$0xf]
        %v1835 = vld [vmem:[#allocation8 + $0x8] sm:$0xf]
        %v1836 = vld [vmem:[#allocation8 + $0xc] sm:$0xf]
        %v1837 = vld [vmem:[#allocation8 + $0x10] sm:$0xf]
        %v1838 = vld [vmem:[#allocation8 + $0x14] sm:$0xf]
        %v1839 = vld [vmem:[#allocation8 + $0x18] sm:$0xf]
        %v1840 = vld [vmem:[#allocation8 + $0x1c] sm:$0xf]
        %v1841 = vld [vmem:[#allocation8 + $0x20] sm:$0xf]
        %v1842 = vld [vmem:[#allocation8 + $0x24] sm:$0xf]
        %v1843 = vld [vmem:[#allocation8 + $0x28] sm:$0xf]
        %v1844 = vld [vmem:[#allocation8 + $0x2c] sm:$0xf]
        %v1845 = vld [vmem:[#allocation8 + $0x30] sm:$0xf]
        %v1846 = vld [vmem:[#allocation8 + $0x34] sm:$0xf]
        %v1847 = vld [vmem:[#allocation8 + $0x38] sm:$0xf]
        %v1848 = vld [vmem:[#allocation8 + $0x3c] sm:$0xf]
        %v1849 = vld [vmem:[#allocation10] sm:$0x1]
        %v1851 = vlaneseq
        %v1852 = vshrl.u32 %v1851, 7
        %v1853 = vsub.s32 0, %v1852
        %v1854 = vrot.slane %v1849, %v1853
        %v1872 = vunpack.c.l.b16 %v1833
        %v1873 = vunpack.c.l.b16 %v1834
        %v1874 = vunpack.c.l.b16 %v1835
        %v1875 = vunpack.c.l.b16 %v1836
        %v1876 = vunpack.c.l.b16 %v1837
        %v1877 = vunpack.c.l.b16 %v1838
        %v1878 = vunpack.c.l.b16 %v1839
        %v1879 = vunpack.c.l.b16 %v1840
        %v1880 = vunpack.c.l.b16 %v1841
        %v1881 = vunpack.c.l.b16 %v1842
        %v1882 = vunpack.c.l.b16 %v1843
        %v1883 = vunpack.c.l.b16 %v1844
        %v1884 = vunpack.c.l.b16 %v1845
        %v1885 = vunpack.c.l.b16 %v1846
        %v1886 = vunpack.c.l.b16 %v1847
        %v1887 = vunpack.c.l.b16 %v1848
        %v1888 = vpack.c.b16 %v1873, %v1872
        %v1889 = vpack.c.b16 %v1875, %v1874
        %v1890 = vpack.c.b16 %v1877, %v1876
        %v1891 = vpack.c.b16 %v1879, %v1878
        %v1892 = vpack.c.b16 %v1881, %v1880
        %v1893 = vpack.c.b16 %v1883, %v1882
        %v1894 = vpack.c.b16 %v1885, %v1884
        %v1895 = vpack.c.b16 %v1887, %v1886
        %1904 = vmatprep.subr.bf16.mxu0 0
        %1905 = vmatpush1.bf16.msra.mxu0 %v1888
        %1906 = vmatprep.subr.bf16.mxu0 0
        %1907 = vmatpush1.bf16.msra.mxu0 %v1889
        %1908 = vmatprep.subr.bf16.mxu0 0
        %1909 = vmatpush1.bf16.msra.mxu0 %v1890
        %1910 = vmatprep.subr.bf16.mxu0 0
        %1911 = vmatpush1.bf16.msra.mxu0 %v1891
        %1912 = vmatprep.subr.bf16.mxu0 0
        %1913 = vmatpush1.bf16.msra.mxu0 %v1892
        %1914 = vmatprep.subr.bf16.mxu0 0
        %1915 = vmatpush1.bf16.msra.mxu0 %v1893
        %1916 = vmatprep.subr.bf16.mxu0 0
        %1917 = vmatpush1.bf16.msra.mxu0 %v1894
        %1918 = vmatprep.subr.bf16.mxu0 0
        %1919 = vmatpush1.bf16.msra.mxu0 %v1895
        %1920 = vmatprep.subr.bf16.mxu0 0
        %1921 = vmatpush1.bf16.msra.mxu0 0
        %1922 = vmatprep.subr.bf16.mxu0 0
        %1923 = vmatpush1.bf16.msra.mxu0 0
        %1924 = vmatprep.subr.bf16.mxu0 0
        %1925 = vmatpush1.bf16.msra.mxu0 0
        %1926 = vmatprep.subr.bf16.mxu0 0
        %1927 = vmatpush1.bf16.msra.mxu0 0
        %1928 = vmatprep.subr.bf16.mxu0 0
        %1929 = vmatpush1.bf16.msra.mxu0 0
        %1930 = vmatprep.subr.bf16.mxu0 0
        %1931 = vmatpush1.bf16.msra.mxu0 0
        %1932 = vmatprep.subr.bf16.mxu0 0
        %1933 = vmatpush1.bf16.msra.mxu0 0
        %1934 = vmatprep.subr.bf16.mxu0 0
        %1935 = vmatpush1.bf16.msra.mxu0 0
        %1936 = vmatprep.mubr.bf16.mxu0 0
        %1937 = vmatmul.mubr.bf16.gmra.mrb[0].mxu0 %v1769
        %v1938 = vpop.f32.mrb[0].mxu0
        %v1939 = vadd.f32 %v1854, %v1938
        %v1940 = vpop.f32.mrb[0].mxu0
        %v1941 = vpop.f32.mrb[0].mxu0
        %v1942 = vadd.f32 %v1854, %v1941
        %v1943 = vpop.f32.mrb[0].mxu0
        %1944 = vmatprep.mubr.bf16.mxu0 0
        %1945 = vmatmul.mubr.bf16.gmra.mrb[0].mxu0 %v1770
        %v1946 = vpop.f32.mrb[0].mxu0
        %v1947 = vadd.f32 %v1854, %v1946
        %v1948 = vpop.f32.mrb[0].mxu0
        %v1949 = vpop.f32.mrb[0].mxu0
        %v1950 = vadd.f32 %v1854, %v1949
        %v1951 = vpop.f32.mrb[0].mxu0
        %1952 = vmatprep.mubr.bf16.mxu0 0
        %1953 = vmatmul.mubr.bf16.gmra.mrb[0].mxu0 %v1771
        %v1954 = vpop.f32.mrb[0].mxu0
        %v1955 = vadd.f32 %v1854, %v1954
        %v1956 = vpop.f32.mrb[0].mxu0
        %v1957 = vpop.f32.mrb[0].mxu0
        %v1958 = vadd.f32 %v1854, %v1957
        %v1959 = vpop.f32.mrb[0].mxu0
        %1960 = vmatprep.mubr.bf16.mxu0 0
        %1961 = vmatmul.mubr.bf16.gmra.mrb[0].mxu0 %v1772
        %v1962 = vpop.f32.mrb[0].mxu0
        %v1963 = vadd.f32 %v1854, %v1962
        %v1964 = vpop.f32.mrb[0].mxu0
        %v1965 = vpop.f32.mrb[0].mxu0
        %v1966 = vadd.f32 %v1854, %v1965
        %v1967 = vpop.f32.mrb[0].mxu0
        %1968 = vmatprep.mubr.bf16.mxu0 0
        %1969 = vmatmul.mubr.bf16.gmra.mrb[0].mxu0 %v1773
        %v1970 = vpop.f32.mrb[0].mxu0
        %v1971 = vadd.f32 %v1854, %v1970
        %v1972 = vpop.f32.mrb[0].mxu0
        %v1973 = vpop.f32.mrb[0].mxu0
        %v1974 = vadd.f32 %v1854, %v1973
        %v1975 = vpop.f32.mrb[0].mxu0
        %1976 = vmatprep.mubr.bf16.mxu0 0
        %1977 = vmatmul.mubr.bf16.gmra.mrb[0].mxu0 %v1774
        %v1978 = vpop.f32.mrb[0].mxu0
        %v1979 = vadd.f32 %v1854, %v1978
        %v1980 = vpop.f32.mrb[0].mxu0
        %v1981 = vpop.f32.mrb[0].mxu0
        %v1982 = vadd.f32 %v1854, %v1981
        %v1983 = vpop.f32.mrb[0].mxu0
        %1984 = vmatprep.mubr.bf16.mxu0 0
        %1985 = vmatmul.mubr.bf16.gmra.mrb[0].mxu0 %v1775
        %v1986 = vpop.f32.mrb[0].mxu0
        %v1987 = vadd.f32 %v1854, %v1986
        %v1988 = vpop.f32.mrb[0].mxu0
        %v1989 = vpop.f32.mrb[0].mxu0
        %v1990 = vadd.f32 %v1854, %v1989
        %v1991 = vpop.f32.mrb[0].mxu0
        %1992 = vmatprep.mubr.bf16.mxu0 0
        %1993 = vmatmul.mubr.bf16.gmra.mrb[0].mxu0 %v1776
        %v1994 = vpop.f32.mrb[0].mxu0
        %v1995 = vadd.f32 %v1854, %v1994
        %v1996 = vpop.f32.mrb[0].mxu0
        %v1997 = vpop.f32.mrb[0].mxu0
        %v1998 = vadd.f32 %v1854, %v1997
        %v1999 = vpop.f32.mrb[0].mxu0
        %2000 = vmatprep.mubr.bf16.mxu0 0
        %2001 = vmatmul.mubr.bf16.gmra.mrb[0].mxu0 %v1777
        %v2002 = vpop.f32.mrb[0].mxu0
        %v2003 = vadd.f32 %v1854, %v2002
        %v2004 = vpop.f32.mrb[0].mxu0
        %v2005 = vpop.f32.mrb[0].mxu0
        %v2006 = vadd.f32 %v1854, %v2005
        %v2007 = vpop.f32.mrb[0].mxu0
        %2008 = vmatprep.mubr.bf16.mxu0 0
        %2009 = vmatmul.mubr.bf16.gmra.mrb[0].mxu0 %v1778
        %v2010 = vpop.f32.mrb[0].mxu0
        %v2011 = vadd.f32 %v1854, %v2010
        %v2012 = vpop.f32.mrb[0].mxu0
        %v2013 = vpop.f32.mrb[0].mxu0
        %v2014 = vadd.f32 %v1854, %v2013
        %v2015 = vpop.f32.mrb[0].mxu0
        %2016 = vmatprep.mubr.bf16.mxu0 0
        %2017 = vmatmul.mubr.bf16.gmra.mrb[0].mxu0 %v1779
        %v2018 = vpop.f32.mrb[0].mxu0
        %v2019 = vadd.f32 %v1854, %v2018
        %v2020 = vpop.f32.mrb[0].mxu0
        %v2021 = vpop.f32.mrb[0].mxu0
        %v2022 = vadd.f32 %v1854, %v2021
        %v2023 = vpop.f32.mrb[0].mxu0
        %2024 = vmatprep.mubr.bf16.mxu0 0
        %2025 = vmatmul.mubr.bf16.gmra.mrb[0].mxu0 %v1780
        %v2026 = vpop.f32.mrb[0].mxu0
        %v2027 = vadd.f32 %v1854, %v2026
        %v2028 = vpop.f32.mrb[0].mxu0
        %v2029 = vpop.f32.mrb[0].mxu0
        %v2030 = vadd.f32 %v1854, %v2029
        %v2031 = vpop.f32.mrb[0].mxu0
        %2032 = vmatprep.mubr.bf16.mxu0 0
        %2033 = vmatmul.mubr.bf16.gmra.mrb[0].mxu0 %v1781
        %v2034 = vpop.f32.mrb[0].mxu0
        %v2035 = vadd.f32 %v1854, %v2034
        %v2036 = vpop.f32.mrb[0].mxu0
        %v2037 = vpop.f32.mrb[0].mxu0
        %v2038 = vadd.f32 %v1854, %v2037
        %v2039 = vpop.f32.mrb[0].mxu0
        %2040 = vmatprep.mubr.bf16.mxu0 0
        %2041 = vmatmul.mubr.bf16.gmra.mrb[0].mxu0 %v1782
        %v2042 = vpop.f32.mrb[0].mxu0
        %v2043 = vadd.f32 %v1854, %v2042
        %v2044 = vpop.f32.mrb[0].mxu0
        %v2045 = vpop.f32.mrb[0].mxu0
        %v2046 = vadd.f32 %v1854, %v2045
        %v2047 = vpop.f32.mrb[0].mxu0
        %2048 = vmatprep.mubr.bf16.mxu0 0
        %2049 = vmatmul.mubr.bf16.gmra.mrb[0].mxu0 %v1783
        %v2050 = vpop.f32.mrb[0].mxu0
        %v2051 = vadd.f32 %v1854, %v2050
        %v2052 = vpop.f32.mrb[0].mxu0
        %v2053 = vpop.f32.mrb[0].mxu0
        %v2054 = vadd.f32 %v1854, %v2053
        %v2055 = vpop.f32.mrb[0].mxu0
        %2056 = vmatprep.mubr.bf16.mxu0 0
        %2057 = vmatmul.mubr.bf16.gmra.mrb[0].mxu0 %v1784
        %v2058 = vpop.f32.mrb[0].mxu0
        %v2059 = vadd.f32 %v1854, %v2058
        %v2060 = vpop.f32.mrb[0].mxu0
        %v2061 = vpop.f32.mrb[0].mxu0
        %v2062 = vadd.f32 %v1854, %v2061
        %v2063 = vpop.f32.mrb[0].mxu0
        %2064 = vmatprep.mubr.bf16.mxu0 0
        %2065 = vmatmul.mubr.bf16.gmra.mrb[0].mxu0 %v1785
        %v2066 = vpop.f32.mrb[0].mxu0
        %v2067 = vadd.f32 %v1854, %v2066
        %v2068 = vpop.f32.mrb[0].mxu0
        %v2069 = vpop.f32.mrb[0].mxu0
        %v2070 = vadd.f32 %v1854, %v2069
        %v2071 = vpop.f32.mrb[0].mxu0
        %2072 = vmatprep.mubr.bf16.mxu0 0
        %2073 = vmatmul.mubr.bf16.gmra.mrb[0].mxu0 %v1786
        %v2074 = vpop.f32.mrb[0].mxu0
        %v2075 = vadd.f32 %v1854, %v2074
        %v2076 = vpop.f32.mrb[0].mxu0
        %v2077 = vpop.f32.mrb[0].mxu0
        %v2078 = vadd.f32 %v1854, %v2077
        %v2079 = vpop.f32.mrb[0].mxu0
        %2080 = vmatprep.mubr.bf16.mxu0 0
        %2081 = vmatmul.mubr.bf16.gmra.mrb[0].mxu0 %v1787
        %v2082 = vpop.f32.mrb[0].mxu0
        %v2083 = vadd.f32 %v1854, %v2082
        %v2084 = vpop.f32.mrb[0].mxu0
        %v2085 = vpop.f32.mrb[0].mxu0
        %v2086 = vadd.f32 %v1854, %v2085
        %v2087 = vpop.f32.mrb[0].mxu0
        %2088 = vmatprep.mubr.bf16.mxu0 0
        %2089 = vmatmul.mubr.bf16.gmra.mrb[0].mxu0 %v1788
        %v2090 = vpop.f32.mrb[0].mxu0
        %v2091 = vadd.f32 %v1854, %v2090
        %v2092 = vpop.f32.mrb[0].mxu0
        %v2093 = vpop.f32.mrb[0].mxu0
        %v2094 = vadd.f32 %v1854, %v2093
        %v2095 = vpop.f32.mrb[0].mxu0
        %2096 = vmatprep.mubr.bf16.mxu0 0
        %2097 = vmatmul.mubr.bf16.gmra.mrb[0].mxu0 %v1789
        %v2098 = vpop.f32.mrb[0].mxu0
        %v2099 = vadd.f32 %v1854, %v2098
        %v2100 = vpop.f32.mrb[0].mxu0
        %v2101 = vpop.f32.mrb[0].mxu0
        %v2102 = vadd.f32 %v1854, %v2101
        %v2103 = vpop.f32.mrb[0].mxu0
        %2104 = vmatprep.mubr.bf16.mxu0 0
        %2105 = vmatmul.mubr.bf16.gmra.mrb[0].mxu0 %v1790
        %v2106 = vpop.f32.mrb[0].mxu0
        %v2107 = vadd.f32 %v1854, %v2106
        %v2108 = vpop.f32.mrb[0].mxu0
        %v2109 = vpop.f32.mrb[0].mxu0
        %v2110 = vadd.f32 %v1854, %v2109
        %v2111 = vpop.f32.mrb[0].mxu0
        %2112 = vmatprep.mubr.bf16.mxu0 0
        %2113 = vmatmul.mubr.bf16.gmra.mrb[0].mxu0 %v1791
        %v2114 = vpop.f32.mrb[0].mxu0
        %v2115 = vadd.f32 %v1854, %v2114
        %v2116 = vpop.f32.mrb[0].mxu0
        %v2117 = vpop.f32.mrb[0].mxu0
        %v2118 = vadd.f32 %v1854, %v2117
        %v2119 = vpop.f32.mrb[0].mxu0
        %2120 = vmatprep.mubr.bf16.mxu0 0
        %2121 = vmatmul.mubr.bf16.gmra.mrb[0].mxu0 %v1792
        %v2122 = vpop.f32.mrb[0].mxu0
        %v2123 = vadd.f32 %v1854, %v2122
        %v2124 = vpop.f32.mrb[0].mxu0
        %v2125 = vpop.f32.mrb[0].mxu0
        %v2126 = vadd.f32 %v1854, %v2125
        %v2127 = vpop.f32.mrb[0].mxu0
        %2128 = vmatprep.mubr.bf16.mxu0 0
        %2129 = vmatmul.mubr.bf16.gmra.mrb[0].mxu0 %v1793
        %v2130 = vpop.f32.mrb[0].mxu0
        %v2131 = vadd.f32 %v1854, %v2130
        %v2132 = vpop.f32.mrb[0].mxu0
        %v2133 = vpop.f32.mrb[0].mxu0
        %v2134 = vadd.f32 %v1854, %v2133
        %v2135 = vpop.f32.mrb[0].mxu0
        %2136 = vmatprep.mubr.bf16.mxu0 0
        %2137 = vmatmul.mubr.bf16.gmra.mrb[0].mxu0 %v1794
        %v2138 = vpop.f32.mrb[0].mxu0
        %v2139 = vadd.f32 %v1854, %v2138
        %v2140 = vpop.f32.mrb[0].mxu0
        %v2141 = vpop.f32.mrb[0].mxu0
        %v2142 = vadd.f32 %v1854, %v2141
        %v2143 = vpop.f32.mrb[0].mxu0
        %2144 = vmatprep.mubr.bf16.mxu0 0
        %2145 = vmatmul.mubr.bf16.gmra.mrb[0].mxu0 %v1795
        %v2146 = vpop.f32.mrb[0].mxu0
        %v2147 = vadd.f32 %v1854, %v2146
        %v2148 = vpop.f32.mrb[0].mxu0
        %v2149 = vpop.f32.mrb[0].mxu0
        %v2150 = vadd.f32 %v1854, %v2149
        %v2151 = vpop.f32.mrb[0].mxu0
        %2152 = vmatprep.mubr.bf16.mxu0 0
        %2153 = vmatmul.mubr.bf16.gmra.mrb[0].mxu0 %v1796
        %v2154 = vpop.f32.mrb[0].mxu0
        %v2155 = vadd.f32 %v1854, %v2154
        %v2156 = vpop.f32.mrb[0].mxu0
        %v2157 = vpop.f32.mrb[0].mxu0
        %v2158 = vadd.f32 %v1854, %v2157
        %v2159 = vpop.f32.mrb[0].mxu0
        %2160 = vmatprep.mubr.bf16.mxu0 0
        %2161 = vmatmul.mubr.bf16.gmra.mrb[0].mxu0 %v1797
        %v2162 = vpop.f32.mrb[0].mxu0
        %v2163 = vadd.f32 %v1854, %v2162
        %v2164 = vpop.f32.mrb[0].mxu0
        %v2165 = vpop.f32.mrb[0].mxu0
        %v2166 = vadd.f32 %v1854, %v2165
        %v2167 = vpop.f32.mrb[0].mxu0
        %2168 = vmatprep.mubr.bf16.mxu0 0
        %2169 = vmatmul.mubr.bf16.gmra.mrb[0].mxu0 %v1798
        %v2170 = vpop.f32.mrb[0].mxu0
        %v2171 = vadd.f32 %v1854, %v2170
        %v2172 = vpop.f32.mrb[0].mxu0
        %v2173 = vpop.f32.mrb[0].mxu0
        %v2174 = vadd.f32 %v1854, %v2173
        %v2175 = vpop.f32.mrb[0].mxu0
        %2176 = vmatprep.mubr.bf16.mxu0 0
        %2177 = vmatmul.mubr.bf16.gmra.mrb[0].mxu0 %v1799
        %v2178 = vpop.f32.mrb[0].mxu0
        %v2179 = vadd.f32 %v1854, %v2178
        %v2180 = vpop.f32.mrb[0].mxu0
        %v2181 = vpop.f32.mrb[0].mxu0
        %v2182 = vadd.f32 %v1854, %v2181
        %v2183 = vpop.f32.mrb[0].mxu0
        %2184 = vmatprep.mubr.bf16.mxu0 0
        %2185 = vmatmul.mubr.bf16.gmra.mrb[0].mxu0 %v1800
        %v2186 = vpop.f32.mrb[0].mxu0
        %v2187 = vadd.f32 %v1854, %v2186
        %v2188 = vpop.f32.mrb[0].mxu0
        %v2189 = vpop.f32.mrb[0].mxu0
        %v2190 = vadd.f32 %v1854, %v2189
        %v2191 = vpop.f32.mrb[0].mxu0
        %2192 = vmatprep.mubr.bf16.mxu0 0
        %2193 = vmatmul.mubr.bf16.gmra.mrb[0].mxu0 %v1801
        %v2194 = vpop.f32.mrb[0].mxu0
        %v2195 = vadd.f32 %v1854, %v2194
        %v2196 = vpop.f32.mrb[0].mxu0
        %v2197 = vpop.f32.mrb[0].mxu0
        %v2198 = vadd.f32 %v1854, %v2197
        %v2199 = vpop.f32.mrb[0].mxu0
        %2200 = vmatprep.mubr.bf16.mxu0 0
        %2201 = vmatmul.mubr.bf16.gmra.mrb[0].mxu0 %v1802
        %v2202 = vpop.f32.mrb[0].mxu0
        %v2203 = vadd.f32 %v1854, %v2202
        %v2204 = vpop.f32.mrb[0].mxu0
        %v2205 = vpop.f32.mrb[0].mxu0
        %v2206 = vadd.f32 %v1854, %v2205
        %v2207 = vpop.f32.mrb[0].mxu0
        %2208 = vmatprep.mubr.bf16.mxu0 0
        %2209 = vmatmul.mubr.bf16.gmra.mrb[0].mxu0 %v1803
        %v2210 = vpop.f32.mrb[0].mxu0
        %v2211 = vadd.f32 %v1854, %v2210
        %v2212 = vpop.f32.mrb[0].mxu0
        %v2213 = vpop.f32.mrb[0].mxu0
        %v2214 = vadd.f32 %v1854, %v2213
        %v2215 = vpop.f32.mrb[0].mxu0
        %2216 = vmatprep.mubr.bf16.mxu0 0
        %2217 = vmatmul.mubr.bf16.gmra.mrb[0].mxu0 %v1804
        %v2218 = vpop.f32.mrb[0].mxu0
        %v2219 = vadd.f32 %v1854, %v2218
        %v2220 = vpop.f32.mrb[0].mxu0
        %v2221 = vpop.f32.mrb[0].mxu0
        %v2222 = vadd.f32 %v1854, %v2221
        %v2223 = vpop.f32.mrb[0].mxu0
        %2224 = vmatprep.mubr.bf16.mxu0 0
        %2225 = vmatmul.mubr.bf16.gmra.mrb[0].mxu0 %v1805
        %v2226 = vpop.f32.mrb[0].mxu0
        %v2227 = vadd.f32 %v1854, %v2226
        %v2228 = vpop.f32.mrb[0].mxu0
        %v2229 = vpop.f32.mrb[0].mxu0
        %v2230 = vadd.f32 %v1854, %v2229
        %v2231 = vpop.f32.mrb[0].mxu0
        %2232 = vmatprep.mubr.bf16.mxu0 0
        %2233 = vmatmul.mubr.bf16.gmra.mrb[0].mxu0 %v1806
        %v2234 = vpop.f32.mrb[0].mxu0
        %v2235 = vadd.f32 %v1854, %v2234
        %v2236 = vpop.f32.mrb[0].mxu0
        %v2237 = vpop.f32.mrb[0].mxu0
        %v2238 = vadd.f32 %v1854, %v2237
        %v2239 = vpop.f32.mrb[0].mxu0
        %2240 = vmatprep.mubr.bf16.mxu0 0
        %2241 = vmatmul.mubr.bf16.gmra.mrb[0].mxu0 %v1807
        %v2242 = vpop.f32.mrb[0].mxu0
        %v2243 = vadd.f32 %v1854, %v2242
        %v2244 = vpop.f32.mrb[0].mxu0
        %v2245 = vpop.f32.mrb[0].mxu0
        %v2246 = vadd.f32 %v1854, %v2245
        %v2247 = vpop.f32.mrb[0].mxu0
        %2248 = vmatprep.mubr.bf16.mxu0 0
        %2249 = vmatmul.mubr.bf16.gmra.mrb[0].mxu0 %v1808
        %v2250 = vpop.f32.mrb[0].mxu0
        %v2251 = vadd.f32 %v1854, %v2250
        %v2252 = vpop.f32.mrb[0].mxu0
        %v2253 = vpop.f32.mrb[0].mxu0
        %v2254 = vadd.f32 %v1854, %v2253
        %v2255 = vpop.f32.mrb[0].mxu0
        %2256 = vmatprep.mubr.bf16.mxu0 0
        %2257 = vmatmul.mubr.bf16.gmra.mrb[0].mxu0 %v1809
        %v2258 = vpop.f32.mrb[0].mxu0
        %v2259 = vadd.f32 %v1854, %v2258
        %v2260 = vpop.f32.mrb[0].mxu0
        %v2261 = vpop.f32.mrb[0].mxu0
        %v2262 = vadd.f32 %v1854, %v2261
        %v2263 = vpop.f32.mrb[0].mxu0
        %2264 = vmatprep.mubr.bf16.mxu0 0
        %2265 = vmatmul.mubr.bf16.gmra.mrb[0].mxu0 %v1810
        %v2266 = vpop.f32.mrb[0].mxu0
        %v2267 = vadd.f32 %v1854, %v2266
        %v2268 = vpop.f32.mrb[0].mxu0
        %v2269 = vpop.f32.mrb[0].mxu0
        %v2270 = vadd.f32 %v1854, %v2269
        %v2271 = vpop.f32.mrb[0].mxu0
        %2272 = vmatprep.mubr.bf16.mxu0 0
        %2273 = vmatmul.mubr.bf16.gmra.mrb[0].mxu0 %v1811
        %v2274 = vpop.f32.mrb[0].mxu0
        %v2275 = vadd.f32 %v1854, %v2274
        %v2276 = vpop.f32.mrb[0].mxu0
        %v2277 = vpop.f32.mrb[0].mxu0
        %v2278 = vadd.f32 %v1854, %v2277
        %v2279 = vpop.f32.mrb[0].mxu0
        %2280 = vmatprep.mubr.bf16.mxu0 0
        %2281 = vmatmul.mubr.bf16.gmra.mrb[0].mxu0 %v1812
        %v2282 = vpop.f32.mrb[0].mxu0
        %v2283 = vadd.f32 %v1854, %v2282
        %v2284 = vpop.f32.mrb[0].mxu0
        %v2285 = vpop.f32.mrb[0].mxu0
        %v2286 = vadd.f32 %v1854, %v2285
        %v2287 = vpop.f32.mrb[0].mxu0
        %2288 = vmatprep.mubr.bf16.mxu0 0
        %2289 = vmatmul.mubr.bf16.gmra.mrb[0].mxu0 %v1813
        %v2290 = vpop.f32.mrb[0].mxu0
        %v2291 = vadd.f32 %v1854, %v2290
        %v2292 = vpop.f32.mrb[0].mxu0
        %v2293 = vpop.f32.mrb[0].mxu0
        %v2294 = vadd.f32 %v1854, %v2293
        %v2295 = vpop.f32.mrb[0].mxu0
        %2296 = vmatprep.mubr.bf16.mxu0 0
        %2297 = vmatmul.mubr.bf16.gmra.mrb[0].mxu0 %v1814
        %v2298 = vpop.f32.mrb[0].mxu0
        %v2299 = vadd.f32 %v1854, %v2298
        %v2300 = vpop.f32.mrb[0].mxu0
        %v2301 = vpop.f32.mrb[0].mxu0
        %v2302 = vadd.f32 %v1854, %v2301
        %v2303 = vpop.f32.mrb[0].mxu0
        %2304 = vmatprep.mubr.bf16.mxu0 0
        %2305 = vmatmul.mubr.bf16.gmra.mrb[0].mxu0 %v1815
        %v2306 = vpop.f32.mrb[0].mxu0
        %v2307 = vadd.f32 %v1854, %v2306
        %v2308 = vpop.f32.mrb[0].mxu0
        %v2309 = vpop.f32.mrb[0].mxu0
        %v2310 = vadd.f32 %v1854, %v2309
        %v2311 = vpop.f32.mrb[0].mxu0
        %2312 = vmatprep.mubr.bf16.mxu0 0
        %2313 = vmatmul.mubr.bf16.gmra.mrb[0].mxu0 %v1816
        %v2314 = vpop.f32.mrb[0].mxu0
        %v2315 = vadd.f32 %v1854, %v2314
        %v2316 = vpop.f32.mrb[0].mxu0
        %v2317 = vpop.f32.mrb[0].mxu0
        %v2318 = vadd.f32 %v1854, %v2317
        %v2319 = vpop.f32.mrb[0].mxu0
        %2320 = vmatprep.mubr.bf16.mxu0 0
        %2321 = vmatmul.mubr.bf16.gmra.mrb[0].mxu0 %v1817
        %v2322 = vpop.f32.mrb[0].mxu0
        %v2323 = vadd.f32 %v1854, %v2322
        %v2324 = vpop.f32.mrb[0].mxu0
        %v2325 = vpop.f32.mrb[0].mxu0
        %v2326 = vadd.f32 %v1854, %v2325
        %v2327 = vpop.f32.mrb[0].mxu0
        %2328 = vmatprep.mubr.bf16.mxu0 0
        %2329 = vmatmul.mubr.bf16.gmra.mrb[0].mxu0 %v1818
        %v2330 = vpop.f32.mrb[0].mxu0
        %v2331 = vadd.f32 %v1854, %v2330
        %v2332 = vpop.f32.mrb[0].mxu0
        %v2333 = vpop.f32.mrb[0].mxu0
        %v2334 = vadd.f32 %v1854, %v2333
        %v2335 = vpop.f32.mrb[0].mxu0
        %2336 = vmatprep.mubr.bf16.mxu0 0
        %2337 = vmatmul.mubr.bf16.gmra.mrb[0].mxu0 %v1819
        %v2338 = vpop.f32.mrb[0].mxu0
        %v2339 = vadd.f32 %v1854, %v2338
        %v2340 = vpop.f32.mrb[0].mxu0
        %v2341 = vpop.f32.mrb[0].mxu0
        %v2342 = vadd.f32 %v1854, %v2341
        %v2343 = vpop.f32.mrb[0].mxu0
        %2344 = vmatprep.mubr.bf16.mxu0 0
        %2345 = vmatmul.mubr.bf16.gmra.mrb[0].mxu0 %v1820
        %v2346 = vpop.f32.mrb[0].mxu0
        %v2347 = vadd.f32 %v1854, %v2346
        %v2348 = vpop.f32.mrb[0].mxu0
        %v2349 = vpop.f32.mrb[0].mxu0
        %v2350 = vadd.f32 %v1854, %v2349
        %v2351 = vpop.f32.mrb[0].mxu0
        %2352 = vmatprep.mubr.bf16.mxu0 0
        %2353 = vmatmul.mubr.bf16.gmra.mrb[0].mxu0 %v1821
        %v2354 = vpop.f32.mrb[0].mxu0
        %v2355 = vadd.f32 %v1854, %v2354
        %v2356 = vpop.f32.mrb[0].mxu0
        %v2357 = vpop.f32.mrb[0].mxu0
        %v2358 = vadd.f32 %v1854, %v2357
        %v2359 = vpop.f32.mrb[0].mxu0
        %2360 = vmatprep.mubr.bf16.mxu0 0
        %2361 = vmatmul.mubr.bf16.gmra.mrb[0].mxu0 %v1822
        %v2362 = vpop.f32.mrb[0].mxu0
        %v2363 = vadd.f32 %v1854, %v2362
        %v2364 = vpop.f32.mrb[0].mxu0
        %v2365 = vpop.f32.mrb[0].mxu0
        %v2366 = vadd.f32 %v1854, %v2365
        %v2367 = vpop.f32.mrb[0].mxu0
        %2368 = vmatprep.mubr.bf16.mxu0 0
        %2369 = vmatmul.mubr.bf16.gmra.mrb[0].mxu0 %v1823
        %v2370 = vpop.f32.mrb[0].mxu0
        %v2371 = vadd.f32 %v1854, %v2370
        %v2372 = vpop.f32.mrb[0].mxu0
        %v2373 = vpop.f32.mrb[0].mxu0
        %v2374 = vadd.f32 %v1854, %v2373
        %v2375 = vpop.f32.mrb[0].mxu0
        %2376 = vmatprep.mubr.bf16.mxu0 0
        %2377 = vmatmul.mubr.bf16.gmra.mrb[0].mxu0 %v1824
        %v2378 = vpop.f32.mrb[0].mxu0
        %v2379 = vadd.f32 %v1854, %v2378
        %v2380 = vpop.f32.mrb[0].mxu0
        %v2381 = vpop.f32.mrb[0].mxu0
        %v2382 = vadd.f32 %v1854, %v2381
        %v2383 = vpop.f32.mrb[0].mxu0
        %2384 = vmatprep.mubr.bf16.mxu0 0
        %2385 = vmatmul.mubr.bf16.gmra.mrb[0].mxu0 %v1825
        %v2386 = vpop.f32.mrb[0].mxu0
        %v2387 = vadd.f32 %v1854, %v2386
        %v2388 = vpop.f32.mrb[0].mxu0
        %v2389 = vpop.f32.mrb[0].mxu0
        %v2390 = vadd.f32 %v1854, %v2389
        %v2391 = vpop.f32.mrb[0].mxu0
        %2392 = vmatprep.mubr.bf16.mxu0 0
        %2393 = vmatmul.mubr.bf16.gmra.mrb[0].mxu0 %v1826
        %v2394 = vpop.f32.mrb[0].mxu0
        %v2395 = vadd.f32 %v1854, %v2394
        %v2396 = vpop.f32.mrb[0].mxu0
        %v2397 = vpop.f32.mrb[0].mxu0
        %v2398 = vadd.f32 %v1854, %v2397
        %v2399 = vpop.f32.mrb[0].mxu0
        %2400 = vmatprep.mubr.bf16.mxu0 0
        %2401 = vmatmul.mubr.bf16.gmra.mrb[0].mxu0 %v1827
        %v2402 = vpop.f32.mrb[0].mxu0
        %v2403 = vadd.f32 %v1854, %v2402
        %v2404 = vpop.f32.mrb[0].mxu0
        %v2405 = vpop.f32.mrb[0].mxu0
        %v2406 = vadd.f32 %v1854, %v2405
        %v2407 = vpop.f32.mrb[0].mxu0
        %2408 = vmatprep.mubr.bf16.mxu0 0
        %2409 = vmatmul.mubr.bf16.gmra.mrb[0].mxu0 %v1828
        %v2410 = vpop.f32.mrb[0].mxu0
        %v2411 = vadd.f32 %v1854, %v2410
        %v2412 = vpop.f32.mrb[0].mxu0
        %v2413 = vpop.f32.mrb[0].mxu0
        %v2414 = vadd.f32 %v1854, %v2413
        %v2415 = vpop.f32.mrb[0].mxu0
        %2416 = vmatprep.mubr.bf16.mxu0 0
        %2417 = vmatmul.mubr.bf16.gmra.mrb[0].mxu0 %v1829
        %v2418 = vpop.f32.mrb[0].mxu0
        %v2419 = vadd.f32 %v1854, %v2418
        %v2420 = vpop.f32.mrb[0].mxu0
        %v2421 = vpop.f32.mrb[0].mxu0
        %v2422 = vadd.f32 %v1854, %v2421
        %v2423 = vpop.f32.mrb[0].mxu0
        %2424 = vmatprep.mubr.bf16.mxu0 0
        %2425 = vmatmul.mubr.bf16.gmra.mrb[0].mxu0 %v1830
        %v2426 = vpop.f32.mrb[0].mxu0
        %v2427 = vadd.f32 %v1854, %v2426
        %v2428 = vpop.f32.mrb[0].mxu0
        %v2429 = vpop.f32.mrb[0].mxu0
        %v2430 = vadd.f32 %v1854, %v2429
        %v2431 = vpop.f32.mrb[0].mxu0
        %2432 = vmatprep.mubr.bf16.mxu0 0
        %2433 = vmatmul.mubr.bf16.gmra.mrb[0].mxu0 %v1831
        %v2434 = vpop.f32.mrb[0].mxu0
        %v2435 = vadd.f32 %v1854, %v2434
        %v2436 = vpop.f32.mrb[0].mxu0
        %v2437 = vpop.f32.mrb[0].mxu0
        %v2438 = vadd.f32 %v1854, %v2437
        %v2439 = vpop.f32.mrb[0].mxu0
        %2440 = vmatprep.mubr.bf16.mxu0 0
        %2441 = vmatmul.mubr.bf16.gmra.mrb[0].mxu0 %v1832
        %v2442 = vpop.f32.mrb[0].mxu0
        %v2443 = vadd.f32 %v1854, %v2442
        %v2444 = vpop.f32.mrb[0].mxu0
        %v2445 = vpop.f32.mrb[0].mxu0
        %v2446 = vadd.f32 %v1854, %v2445
        %v2447 = vpop.f32.mrb[0].mxu0
        %2448 = vdwg.mxu0
        %v2449 = vmul.f32 %v1939, 0.2
        %v2450 = vmul.f32 %v1942, 0.2
        %v2451 = vmul.f32 %v1947, 0.2
        %v2452 = vmul.f32 %v1950, 0.2
        %v2453 = vmul.f32 %v1955, 0.2
        %v2454 = vmul.f32 %v1958, 0.2
        %v2455 = vmul.f32 %v1963, 0.2
        %v2456 = vmul.f32 %v1966, 0.2
        %v2457 = vmul.f32 %v1971, 0.2
        %v2458 = vmul.f32 %v1974, 0.2
        %v2459 = vmul.f32 %v1979, 0.2
        %v2460 = vmul.f32 %v1982, 0.2
        %v2461 = vmul.f32 %v1987, 0.2
        %v2462 = vmul.f32 %v1990, 0.2
        %v2463 = vmul.f32 %v1995, 0.2
        %v2464 = vmul.f32 %v1998, 0.2
        %v2465 = vmul.f32 %v2003, 0.2
        %v2466 = vmul.f32 %v2006, 0.2
        %v2467 = vmul.f32 %v2011, 0.2
        %v2468 = vmul.f32 %v2014, 0.2
        %v2469 = vmul.f32 %v2019, 0.2
        %v2470 = vmul.f32 %v2022, 0.2
        %v2471 = vmul.f32 %v2027, 0.2
        %v2472 = vmul.f32 %v2030, 0.2
        %v2473 = vmul.f32 %v2035, 0.2
        %v2474 = vmul.f32 %v2038, 0.2
        %v2475 = vmul.f32 %v2043, 0.2
        %v2476 = vmul.f32 %v2046, 0.2
        %v2477 = vmul.f32 %v2051, 0.2
        %v2478 = vmul.f32 %v2054, 0.2
        %v2479 = vmul.f32 %v2059, 0.2
        %v2480 = vmul.f32 %v2062, 0.2
        %v2481 = vmul.f32 %v2067, 0.2
        %v2482 = vmul.f32 %v2070, 0.2
        %v2483 = vmul.f32 %v2075, 0.2
        %v2484 = vmul.f32 %v2078, 0.2
        %v2485 = vmul.f32 %v2083, 0.2
        %v2486 = vmul.f32 %v2086, 0.2
        %v2487 = vmul.f32 %v2091, 0.2
        %v2488 = vmul.f32 %v2094, 0.2
        %v2489 = vmul.f32 %v2099, 0.2
        %v2490 = vmul.f32 %v2102, 0.2
        %v2491 = vmul.f32 %v2107, 0.2
        %v2492 = vmul.f32 %v2110, 0.2
        %v2493 = vmul.f32 %v2115, 0.2
        %v2494 = vmul.f32 %v2118, 0.2
        %v2495 = vmul.f32 %v2123, 0.2
        %v2496 = vmul.f32 %v2126, 0.2
        %v2497 = vmul.f32 %v2131, 0.2
        %v2498 = vmul.f32 %v2134, 0.2
        %v2499 = vmul.f32 %v2139, 0.2
        %v2500 = vmul.f32 %v2142, 0.2
        %v2501 = vmul.f32 %v2147, 0.2
        %v2502 = vmul.f32 %v2150, 0.2
        %v2503 = vmul.f32 %v2155, 0.2
        %v2504 = vmul.f32 %v2158, 0.2
        %v2505 = vmul.f32 %v2163, 0.2
        %v2506 = vmul.f32 %v2166, 0.2
        %v2507 = vmul.f32 %v2171, 0.2
        %v2508 = vmul.f32 %v2174, 0.2
        %v2509 = vmul.f32 %v2179, 0.2
        %v2510 = vmul.f32 %v2182, 0.2
        %v2511 = vmul.f32 %v2187, 0.2
        %v2512 = vmul.f32 %v2190, 0.2
        %v2513 = vmul.f32 %v2195, 0.2
        %v2514 = vmul.f32 %v2198, 0.2
        %v2515 = vmul.f32 %v2203, 0.2
        %v2516 = vmul.f32 %v2206, 0.2
        %v2517 = vmul.f32 %v2211, 0.2
        %v2518 = vmul.f32 %v2214, 0.2
        %v2519 = vmul.f32 %v2219, 0.2
        %v2520 = vmul.f32 %v2222, 0.2
        %v2521 = vmul.f32 %v2227, 0.2
        %v2522 = vmul.f32 %v2230, 0.2
        %v2523 = vmul.f32 %v2235, 0.2
        %v2524 = vmul.f32 %v2238, 0.2
        %v2525 = vmul.f32 %v2243, 0.2
        %v2526 = vmul.f32 %v2246, 0.2
        %v2527 = vmul.f32 %v2251, 0.2
        %v2528 = vmul.f32 %v2254, 0.2
        %v2529 = vmul.f32 %v2259, 0.2
        %v2530 = vmul.f32 %v2262, 0.2
        %v2531 = vmul.f32 %v2267, 0.2
        %v2532 = vmul.f32 %v2270, 0.2
        %v2533 = vmul.f32 %v2275, 0.2
        %v2534 = vmul.f32 %v2278, 0.2
        %v2535 = vmul.f32 %v2283, 0.2
        %v2536 = vmul.f32 %v2286, 0.2
        %v2537 = vmul.f32 %v2291, 0.2
        %v2538 = vmul.f32 %v2294, 0.2
        %v2539 = vmul.f32 %v2299, 0.2
        %v2540 = vmul.f32 %v2302, 0.2
        %v2541 = vmul.f32 %v2307, 0.2
        %v2542 = vmul.f32 %v2310, 0.2
        %v2543 = vmul.f32 %v2315, 0.2
        %v2544 = vmul.f32 %v2318, 0.2
        %v2545 = vmul.f32 %v2323, 0.2
        %v2546 = vmul.f32 %v2326, 0.2
        %v2547 = vmul.f32 %v2331, 0.2
        %v2548 = vmul.f32 %v2334, 0.2
        %v2549 = vmul.f32 %v2339, 0.2
        %v2550 = vmul.f32 %v2342, 0.2
        %v2551 = vmul.f32 %v2347, 0.2
        %v2552 = vmul.f32 %v2350, 0.2
        %v2553 = vmul.f32 %v2355, 0.2
        %v2554 = vmul.f32 %v2358, 0.2
        %v2555 = vmul.f32 %v2363, 0.2
        %v2556 = vmul.f32 %v2366, 0.2
        %v2557 = vmul.f32 %v2371, 0.2
        %v2558 = vmul.f32 %v2374, 0.2
        %v2559 = vmul.f32 %v2379, 0.2
        %v2560 = vmul.f32 %v2382, 0.2
        %v2561 = vmul.f32 %v2387, 0.2
        %v2562 = vmul.f32 %v2390, 0.2
        %v2563 = vmul.f32 %v2395, 0.2
        %v2564 = vmul.f32 %v2398, 0.2
        %v2565 = vmul.f32 %v2403, 0.2
        %v2566 = vmul.f32 %v2406, 0.2
        %v2567 = vmul.f32 %v2411, 0.2
        %v2568 = vmul.f32 %v2414, 0.2
        %v2569 = vmul.f32 %v2419, 0.2
        %v2570 = vmul.f32 %v2422, 0.2
        %v2571 = vmul.f32 %v2427, 0.2
        %v2572 = vmul.f32 %v2430, 0.2
        %v2573 = vmul.f32 %v2435, 0.2
        %v2574 = vmul.f32 %v2438, 0.2
        %v2575 = vmul.f32 %v2443, 0.2
        %v2576 = vmul.f32 %v2446, 0.2
        %v2577 = vmax.f32 %v1939, %v2449
        %v2578 = vmax.f32 %v1942, %v2450
        %v2579 = vmax.f32 %v1947, %v2451
        %v2580 = vmax.f32 %v1950, %v2452
        %v2581 = vmax.f32 %v1955, %v2453
        %v2582 = vmax.f32 %v1958, %v2454
        %v2583 = vmax.f32 %v1963, %v2455
        %v2584 = vmax.f32 %v1966, %v2456
        %v2585 = vmax.f32 %v1971, %v2457
        %v2586 = vmax.f32 %v1974, %v2458
        %v2587 = vmax.f32 %v1979, %v2459
        %v2588 = vmax.f32 %v1982, %v2460
        %v2589 = vmax.f32 %v1987, %v2461
        %v2590 = vmax.f32 %v1990, %v2462
        %v2591 = vmax.f32 %v1995, %v2463
        %v2592 = vmax.f32 %v1998, %v2464
        %v2593 = vmax.f32 %v2003, %v2465
        %v2594 = vmax.f32 %v2006, %v2466
        %v2595 = vmax.f32 %v2011, %v2467
        %v2596 = vmax.f32 %v2014, %v2468
        %v2597 = vmax.f32 %v2019, %v2469
        %v2598 = vmax.f32 %v2022, %v2470
        %v2599 = vmax.f32 %v2027, %v2471
        %v2600 = vmax.f32 %v2030, %v2472
        %v2601 = vmax.f32 %v2035, %v2473
        %v2602 = vmax.f32 %v2038, %v2474
        %v2603 = vmax.f32 %v2043, %v2475
        %v2604 = vmax.f32 %v2046, %v2476
        %v2605 = vmax.f32 %v2051, %v2477
        %v2606 = vmax.f32 %v2054, %v2478
        %v2607 = vmax.f32 %v2059, %v2479
        %v2608 = vmax.f32 %v2062, %v2480
        %v2609 = vmax.f32 %v2067, %v2481
        %v2610 = vmax.f32 %v2070, %v2482
        %v2611 = vmax.f32 %v2075, %v2483
        %v2612 = vmax.f32 %v2078, %v2484
        %v2613 = vmax.f32 %v2083, %v2485
        %v2614 = vmax.f32 %v2086, %v2486
        %v2615 = vmax.f32 %v2091, %v2487
        %v2616 = vmax.f32 %v2094, %v2488
        %v2617 = vmax.f32 %v2099, %v2489
        %v2618 = vmax.f32 %v2102, %v2490
        %v2619 = vmax.f32 %v2107, %v2491
        %v2620 = vmax.f32 %v2110, %v2492
        %v2621 = vmax.f32 %v2115, %v2493
        %v2622 = vmax.f32 %v2118, %v2494
        %v2623 = vmax.f32 %v2123, %v2495
        %v2624 = vmax.f32 %v2126, %v2496
        %v2625 = vmax.f32 %v2131, %v2497
        %v2626 = vmax.f32 %v2134, %v2498
        %v2627 = vmax.f32 %v2139, %v2499
        %v2628 = vmax.f32 %v2142, %v2500
        %v2629 = vmax.f32 %v2147, %v2501
        %v2630 = vmax.f32 %v2150, %v2502
        %v2631 = vmax.f32 %v2155, %v2503
        %v2632 = vmax.f32 %v2158, %v2504
        %v2633 = vmax.f32 %v2163, %v2505
        %v2634 = vmax.f32 %v2166, %v2506
        %v2635 = vmax.f32 %v2171, %v2507
        %v2636 = vmax.f32 %v2174, %v2508
        %v2637 = vmax.f32 %v2179, %v2509
        %v2638 = vmax.f32 %v2182, %v2510
        %v2639 = vmax.f32 %v2187, %v2511
        %v2640 = vmax.f32 %v2190, %v2512
        %v2641 = vmax.f32 %v2195, %v2513
        %v2642 = vmax.f32 %v2198, %v2514
        %v2643 = vmax.f32 %v2203, %v2515
        %v2644 = vmax.f32 %v2206, %v2516
        %v2645 = vmax.f32 %v2211, %v2517
        %v2646 = vmax.f32 %v2214, %v2518
        %v2647 = vmax.f32 %v2219, %v2519
        %v2648 = vmax.f32 %v2222, %v2520
        %v2649 = vmax.f32 %v2227, %v2521
        %v2650 = vmax.f32 %v2230, %v2522
        %v2651 = vmax.f32 %v2235, %v2523
        %v2652 = vmax.f32 %v2238, %v2524
        %v2653 = vmax.f32 %v2243, %v2525
        %v2654 = vmax.f32 %v2246, %v2526
        %v2655 = vmax.f32 %v2251, %v2527
        %v2656 = vmax.f32 %v2254, %v2528
        %v2657 = vmax.f32 %v2259, %v2529
        %v2658 = vmax.f32 %v2262, %v2530
        %v2659 = vmax.f32 %v2267, %v2531
        %v2660 = vmax.f32 %v2270, %v2532
        %v2661 = vmax.f32 %v2275, %v2533
        %v2662 = vmax.f32 %v2278, %v2534
        %v2663 = vmax.f32 %v2283, %v2535
        %v2664 = vmax.f32 %v2286, %v2536
        %v2665 = vmax.f32 %v2291, %v2537
        %v2666 = vmax.f32 %v2294, %v2538
        %v2667 = vmax.f32 %v2299, %v2539
        %v2668 = vmax.f32 %v2302, %v2540
        %v2669 = vmax.f32 %v2307, %v2541
        %v2670 = vmax.f32 %v2310, %v2542
        %v2671 = vmax.f32 %v2315, %v2543
        %v2672 = vmax.f32 %v2318, %v2544
        %v2673 = vmax.f32 %v2323, %v2545
        %v2674 = vmax.f32 %v2326, %v2546
        %v2675 = vmax.f32 %v2331, %v2547
        %v2676 = vmax.f32 %v2334, %v2548
        %v2677 = vmax.f32 %v2339, %v2549
        %v2678 = vmax.f32 %v2342, %v2550
        %v2679 = vmax.f32 %v2347, %v2551
        %v2680 = vmax.f32 %v2350, %v2552
        %v2681 = vmax.f32 %v2355, %v2553
        %v2682 = vmax.f32 %v2358, %v2554
        %v2683 = vmax.f32 %v2363, %v2555
        %v2684 = vmax.f32 %v2366, %v2556
        %v2685 = vmax.f32 %v2371, %v2557
        %v2686 = vmax.f32 %v2374, %v2558
        %v2687 = vmax.f32 %v2379, %v2559
        %v2688 = vmax.f32 %v2382, %v2560
        %v2689 = vmax.f32 %v2387, %v2561
        %v2690 = vmax.f32 %v2390, %v2562
        %v2691 = vmax.f32 %v2395, %v2563
        %v2692 = vmax.f32 %v2398, %v2564
        %v2693 = vmax.f32 %v2403, %v2565
        %v2694 = vmax.f32 %v2406, %v2566
        %v2695 = vmax.f32 %v2411, %v2567
        %v2696 = vmax.f32 %v2414, %v2568
        %v2697 = vmax.f32 %v2419, %v2569
        %v2698 = vmax.f32 %v2422, %v2570
        %v2699 = vmax.f32 %v2427, %v2571
        %v2700 = vmax.f32 %v2430, %v2572
        %v2701 = vmax.f32 %v2435, %v2573
        %v2702 = vmax.f32 %v2438, %v2574
        %v2703 = vmax.f32 %v2443, %v2575
        %v2704 = vmax.f32 %v2446, %v2576
        %v2705 = vunpack.c.l.bf16 %v315
        %v2706 = vunpack.c.l.bf16 %v316
        %v2707 = vunpack.c.l.bf16 %v317
        %v2708 = vunpack.c.l.bf16 %v318
        %v2709 = vunpack.c.l.bf16 %v319
        %v2710 = vunpack.c.l.bf16 %v320
        %v2711 = vunpack.c.l.bf16 %v321
        %v2712 = vunpack.c.l.bf16 %v322
        %v2713 = vunpack.c.l.bf16 %v323
        %v2714 = vunpack.c.l.bf16 %v324
        %v2715 = vunpack.c.l.bf16 %v325
        %v2716 = vunpack.c.l.bf16 %v326
        %v2717 = vunpack.c.l.bf16 %v327
        %v2718 = vunpack.c.l.bf16 %v328
        %v2719 = vunpack.c.l.bf16 %v329
        %v2720 = vunpack.c.l.bf16 %v330
        %v2721 = vunpack.c.l.bf16 %v331
        %v2722 = vunpack.c.l.bf16 %v332
        %v2723 = vunpack.c.l.bf16 %v333
        %v2724 = vunpack.c.l.bf16 %v334
        %v2725 = vunpack.c.l.bf16 %v335
        %v2726 = vunpack.c.l.bf16 %v336
        %v2727 = vunpack.c.l.bf16 %v337
        %v2728 = vunpack.c.l.bf16 %v338
        %v2729 = vunpack.c.l.bf16 %v339
        %v2730 = vunpack.c.l.bf16 %v340
        %v2731 = vunpack.c.l.bf16 %v341
        %v2732 = vunpack.c.l.bf16 %v342
        %v2733 = vunpack.c.l.bf16 %v343
        %v2734 = vunpack.c.l.bf16 %v344
        %v2735 = vunpack.c.l.bf16 %v345
        %v2736 = vunpack.c.l.bf16 %v346
        %v2737 = vunpack.c.l.bf16 %v347
        %v2738 = vunpack.c.l.bf16 %v348
        %v2739 = vunpack.c.l.bf16 %v349
        %v2740 = vunpack.c.l.bf16 %v350
        %v2741 = vunpack.c.l.bf16 %v351
        %v2742 = vunpack.c.l.bf16 %v352
        %v2743 = vunpack.c.l.bf16 %v353
        %v2744 = vunpack.c.l.bf16 %v354
        %v2745 = vunpack.c.l.bf16 %v355
        %v2746 = vunpack.c.l.bf16 %v356
        %v2747 = vunpack.c.l.bf16 %v357
        %v2748 = vunpack.c.l.bf16 %v358
        %v2749 = vunpack.c.l.bf16 %v359
        %v2750 = vunpack.c.l.bf16 %v360
        %v2751 = vunpack.c.l.bf16 %v361
        %v2752 = vunpack.c.l.bf16 %v362
        %v2753 = vunpack.c.l.bf16 %v363
        %v2754 = vunpack.c.l.bf16 %v364
        %v2755 = vunpack.c.l.bf16 %v365
        %v2756 = vunpack.c.l.bf16 %v366
        %v2757 = vunpack.c.l.bf16 %v367
        %v2758 = vunpack.c.l.bf16 %v368
        %v2759 = vunpack.c.l.bf16 %v369
        %v2760 = vunpack.c.l.bf16 %v370
        %v2761 = vunpack.c.l.bf16 %v371
        %v2762 = vunpack.c.l.bf16 %v372
        %v2763 = vunpack.c.l.bf16 %v373
        %v2764 = vunpack.c.l.bf16 %v374
        %v2765 = vunpack.c.l.bf16 %v375
        %v2766 = vunpack.c.l.bf16 %v376
        %v2767 = vunpack.c.l.bf16 %v377
        %v2768 = vunpack.c.l.bf16 %v378
        %v2769 = vunpack.c.l.bf16 %v379
        %v2770 = vunpack.c.l.bf16 %v380
        %v2771 = vunpack.c.l.bf16 %v381
        %v2772 = vunpack.c.l.bf16 %v382
        %v2773 = vunpack.c.l.bf16 %v383
        %v2774 = vunpack.c.l.bf16 %v384
        %v2775 = vunpack.c.l.bf16 %v385
        %v2776 = vunpack.c.l.bf16 %v386
        %v2777 = vunpack.c.l.bf16 %v387
        %v2778 = vunpack.c.l.bf16 %v388
        %v2779 = vunpack.c.l.bf16 %v389
        %v2780 = vunpack.c.l.bf16 %v390
        %v2781 = vunpack.c.l.bf16 %v391
        %v2782 = vunpack.c.l.bf16 %v392
        %v2783 = vunpack.c.l.bf16 %v393
        %v2784 = vunpack.c.l.bf16 %v394
        %v2785 = vunpack.c.l.bf16 %v395
        %v2786 = vunpack.c.l.bf16 %v396
        %v2787 = vunpack.c.l.bf16 %v397
        %v2788 = vunpack.c.l.bf16 %v398
        %v2789 = vunpack.c.l.bf16 %v399
        %v2790 = vunpack.c.l.bf16 %v400
        %v2791 = vunpack.c.l.bf16 %v401
        %v2792 = vunpack.c.l.bf16 %v402
        %v2793 = vunpack.c.l.bf16 %v403
        %v2794 = vunpack.c.l.bf16 %v404
        %v2795 = vunpack.c.l.bf16 %v405
        %v2796 = vunpack.c.l.bf16 %v406
        %v2797 = vunpack.c.l.bf16 %v407
        %v2798 = vunpack.c.l.bf16 %v408
        %v2799 = vunpack.c.l.bf16 %v409
        %v2800 = vunpack.c.l.bf16 %v410
        %v2801 = vunpack.c.l.bf16 %v411
        %v2802 = vunpack.c.l.bf16 %v412
        %v2803 = vunpack.c.l.bf16 %v413
        %v2804 = vunpack.c.l.bf16 %v414
        %v2805 = vunpack.c.l.bf16 %v415
        %v2806 = vunpack.c.l.bf16 %v416
        %v2807 = vunpack.c.l.bf16 %v417
        %v2808 = vunpack.c.l.bf16 %v418
        %v2809 = vunpack.c.l.bf16 %v419
        %v2810 = vunpack.c.l.bf16 %v420
        %v2811 = vunpack.c.l.bf16 %v421
        %v2812 = vunpack.c.l.bf16 %v422
        %v2813 = vunpack.c.l.bf16 %v423
        %v2814 = vunpack.c.l.bf16 %v424
        %v2815 = vunpack.c.l.bf16 %v425
        %v2816 = vunpack.c.l.bf16 %v426
        %v2817 = vunpack.c.l.bf16 %v427
        %v2818 = vunpack.c.l.bf16 %v428
        %v2819 = vunpack.c.l.bf16 %v429
        %v2820 = vunpack.c.l.bf16 %v430
        %v2821 = vunpack.c.l.bf16 %v431
        %v2822 = vunpack.c.l.bf16 %v432
        %v2823 = vunpack.c.l.bf16 %v433
        %v2824 = vunpack.c.l.bf16 %v434
        %v2825 = vunpack.c.l.bf16 %v435
        %v2826 = vunpack.c.l.bf16 %v436
        %v2827 = vunpack.c.l.bf16 %v437
        %v2828 = vunpack.c.l.bf16 %v438
        %v2829 = vunpack.c.l.bf16 %v439
        %v2830 = vunpack.c.l.bf16 %v440
        %v2831 = vunpack.c.l.bf16 %v441
        %v2832 = vunpack.c.l.bf16 %v442
        %v2833 = vmul.f32 %v2705, %v2705
        %v2834 = vmul.f32 %v2706, %v2706
        %v2835 = vmul.f32 %v2707, %v2707
        %v2836 = vmul.f32 %v2708, %v2708
        %v2837 = vmul.f32 %v2709, %v2709
        %v2838 = vmul.f32 %v2710, %v2710
        %v2839 = vmul.f32 %v2711, %v2711
        %v2840 = vmul.f32 %v2712, %v2712
        %v2841 = vmul.f32 %v2713, %v2713
        %v2842 = vmul.f32 %v2714, %v2714
        %v2843 = vmul.f32 %v2715, %v2715
        %v2844 = vmul.f32 %v2716, %v2716
        %v2845 = vmul.f32 %v2717, %v2717
        %v2846 = vmul.f32 %v2718, %v2718
        %v2847 = vmul.f32 %v2719, %v2719
        %v2848 = vmul.f32 %v2720, %v2720
        %v2849 = vmul.f32 %v2721, %v2721
        %v2850 = vmul.f32 %v2722, %v2722
        %v2851 = vmul.f32 %v2723, %v2723
        %v2852 = vmul.f32 %v2724, %v2724
        %v2853 = vmul.f32 %v2725, %v2725
        %v2854 = vmul.f32 %v2726, %v2726
        %v2855 = vmul.f32 %v2727, %v2727
        %v2856 = vmul.f32 %v2728, %v2728
        %v2857 = vmul.f32 %v2729, %v2729
        %v2858 = vmul.f32 %v2730, %v2730
        %v2859 = vmul.f32 %v2731, %v2731
        %v2860 = vmul.f32 %v2732, %v2732
        %v2861 = vmul.f32 %v2733, %v2733
        %v2862 = vmul.f32 %v2734, %v2734
        %v2863 = vmul.f32 %v2735, %v2735
        %v2864 = vmul.f32 %v2736, %v2736
        %v2865 = vmul.f32 %v2737, %v2737
        %v2866 = vmul.f32 %v2738, %v2738
        %v2867 = vmul.f32 %v2739, %v2739
        %v2868 = vmul.f32 %v2740, %v2740
        %v2869 = vmul.f32 %v2741, %v2741
        %v2870 = vmul.f32 %v2742, %v2742
        %v2871 = vmul.f32 %v2743, %v2743
        %v2872 = vmul.f32 %v2744, %v2744
        %v2873 = vmul.f32 %v2745, %v2745
        %v2874 = vmul.f32 %v2746, %v2746
        %v2875 = vmul.f32 %v2747, %v2747
        %v2876 = vmul.f32 %v2748, %v2748
        %v2877 = vmul.f32 %v2749, %v2749
        %v2878 = vmul.f32 %v2750, %v2750
        %v2879 = vmul.f32 %v2751, %v2751
        %v2880 = vmul.f32 %v2752, %v2752
        %v2881 = vmul.f32 %v2753, %v2753
        %v2882 = vmul.f32 %v2754, %v2754
        %v2883 = vmul.f32 %v2755, %v2755
        %v2884 = vmul.f32 %v2756, %v2756
        %v2885 = vmul.f32 %v2757, %v2757
        %v2886 = vmul.f32 %v2758, %v2758
        %v2887 = vmul.f32 %v2759, %v2759
        %v2888 = vmul.f32 %v2760, %v2760
        %v2889 = vmul.f32 %v2761, %v2761
        %v2890 = vmul.f32 %v2762, %v2762
        %v2891 = vmul.f32 %v2763, %v2763
        %v2892 = vmul.f32 %v2764, %v2764
        %v2893 = vmul.f32 %v2765, %v2765
        %v2894 = vmul.f32 %v2766, %v2766
        %v2895 = vmul.f32 %v2767, %v2767
        %v2896 = vmul.f32 %v2768, %v2768
        %v2897 = vmul.f32 %v2769, %v2769
        %v2898 = vmul.f32 %v2770, %v2770
        %v2899 = vmul.f32 %v2771, %v2771
        %v2900 = vmul.f32 %v2772, %v2772
        %v2901 = vmul.f32 %v2773, %v2773
        %v2902 = vmul.f32 %v2774, %v2774
        %v2903 = vmul.f32 %v2775, %v2775
        %v2904 = vmul.f32 %v2776, %v2776
        %v2905 = vmul.f32 %v2777, %v2777
        %v2906 = vmul.f32 %v2778, %v2778
        %v2907 = vmul.f32 %v2779, %v2779
        %v2908 = vmul.f32 %v2780, %v2780
        %v2909 = vmul.f32 %v2781, %v2781
        %v2910 = vmul.f32 %v2782, %v2782
        %v2911 = vmul.f32 %v2783, %v2783
        %v2912 = vmul.f32 %v2784, %v2784
        %v2913 = vmul.f32 %v2785, %v2785
        %v2914 = vmul.f32 %v2786, %v2786
        %v2915 = vmul.f32 %v2787, %v2787
        %v2916 = vmul.f32 %v2788, %v2788
        %v2917 = vmul.f32 %v2789, %v2789
        %v2918 = vmul.f32 %v2790, %v2790
        %v2919 = vmul.f32 %v2791, %v2791
        %v2920 = vmul.f32 %v2792, %v2792
        %v2921 = vmul.f32 %v2793, %v2793
        %v2922 = vmul.f32 %v2794, %v2794
        %v2923 = vmul.f32 %v2795, %v2795
        %v2924 = vmul.f32 %v2796, %v2796
        %v2925 = vmul.f32 %v2797, %v2797
        %v2926 = vmul.f32 %v2798, %v2798
        %v2927 = vmul.f32 %v2799, %v2799
        %v2928 = vmul.f32 %v2800, %v2800
        %v2929 = vmul.f32 %v2801, %v2801
        %v2930 = vmul.f32 %v2802, %v2802
        %v2931 = vmul.f32 %v2803, %v2803
        %v2932 = vmul.f32 %v2804, %v2804
        %v2933 = vmul.f32 %v2805, %v2805
        %v2934 = vmul.f32 %v2806, %v2806
        %v2935 = vmul.f32 %v2807, %v2807
        %v2936 = vmul.f32 %v2808, %v2808
        %v2937 = vmul.f32 %v2809, %v2809
        %v2938 = vmul.f32 %v2810, %v2810
        %v2939 = vmul.f32 %v2811, %v2811
        %v2940 = vmul.f32 %v2812, %v2812
        %v2941 = vmul.f32 %v2813, %v2813
        %v2942 = vmul.f32 %v2814, %v2814
        %v2943 = vmul.f32 %v2815, %v2815
        %v2944 = vmul.f32 %v2816, %v2816
        %v2945 = vmul.f32 %v2817, %v2817
        %v2946 = vmul.f32 %v2818, %v2818
        %v2947 = vmul.f32 %v2819, %v2819
        %v2948 = vmul.f32 %v2820, %v2820
        %v2949 = vmul.f32 %v2821, %v2821
        %v2950 = vmul.f32 %v2822, %v2822
        %v2951 = vmul.f32 %v2823, %v2823
        %v2952 = vmul.f32 %v2824, %v2824
        %v2953 = vmul.f32 %v2825, %v2825
        %v2954 = vmul.f32 %v2826, %v2826
        %v2955 = vmul.f32 %v2827, %v2827
        %v2956 = vmul.f32 %v2828, %v2828
        %v2957 = vmul.f32 %v2829, %v2829
        %v2958 = vmul.f32 %v2830, %v2830
        %v2959 = vmul.f32 %v2831, %v2831
        %v2960 = vmul.f32 %v2832, %v2832
        %vm2961 = vcmask 23552
        %v2962 = vsel %vm2961, %v2833, 0.0
        %2963 = vadd.xlane.f32.xlu0 %v2962
        %v2964 = vpop.xlane.xlu0 %2963
        %v2965 = vsel %vm2961, %v2834, 0.0
        %2966 = vadd.xlane.f32.xlu0 %v2965
        %v2967 = vpop.xlane.xlu0 %2966
        %v2968 = vsel %vm2961, %v2835, 0.0
        %2969 = vadd.xlane.f32.xlu0 %v2968
        %v2970 = vpop.xlane.xlu0 %2969
        %v2971 = vsel %vm2961, %v2836, 0.0
        %2972 = vadd.xlane.f32.xlu0 %v2971
        %v2973 = vpop.xlane.xlu0 %2972
        %v2974 = vsel %vm2961, %v2837, 0.0
        %2975 = vadd.xlane.f32.xlu0 %v2974
        %v2976 = vpop.xlane.xlu0 %2975
        %v2977 = vsel %vm2961, %v2838, 0.0
        %2978 = vadd.xlane.f32.xlu0 %v2977
        %v2979 = vpop.xlane.xlu0 %2978
        %v2980 = vsel %vm2961, %v2839, 0.0
        %2981 = vadd.xlane.f32.xlu0 %v2980
        %v2982 = vpop.xlane.xlu0 %2981
        %v2983 = vsel %vm2961, %v2840, 0.0
        %2984 = vadd.xlane.f32.xlu0 %v2983
        %v2985 = vpop.xlane.xlu0 %2984
        %v2986 = vsel %vm2961, %v2841, 0.0
        %2987 = vadd.xlane.f32.xlu0 %v2986
        %v2988 = vpop.xlane.xlu0 %2987
        %v2989 = vsel %vm2961, %v2842, 0.0
        %2990 = vadd.xlane.f32.xlu0 %v2989
        %v2991 = vpop.xlane.xlu0 %2990
        %v2992 = vsel %vm2961, %v2843, 0.0
        %2993 = vadd.xlane.f32.xlu0 %v2992
        %v2994 = vpop.xlane.xlu0 %2993
        %v2995 = vsel %vm2961, %v2844, 0.0
        %2996 = vadd.xlane.f32.xlu0 %v2995
        %v2997 = vpop.xlane.xlu0 %2996
        %v2998 = vsel %vm2961, %v2845, 0.0
        %2999 = vadd.xlane.f32.xlu0 %v2998
        %v3000 = vpop.xlane.xlu0 %2999
        %v3001 = vsel %vm2961, %v2846, 0.0
        %3002 = vadd.xlane.f32.xlu0 %v3001
        %v3003 = vpop.xlane.xlu0 %3002
        %v3004 = vsel %vm2961, %v2847, 0.0
        %3005 = vadd.xlane.f32.xlu0 %v3004
        %v3006 = vpop.xlane.xlu0 %3005
        %v3007 = vsel %vm2961, %v2848, 0.0
        %3008 = vadd.xlane.f32.xlu0 %v3007
        %v3009 = vpop.xlane.xlu0 %3008
        %v3010 = vsel %vm2961, %v2849, 0.0
        %3011 = vadd.xlane.f32.xlu0 %v3010
        %v3012 = vpop.xlane.xlu0 %3011
        %v3013 = vsel %vm2961, %v2850, 0.0
        %3014 = vadd.xlane.f32.xlu0 %v3013
        %v3015 = vpop.xlane.xlu0 %3014
        %v3016 = vsel %vm2961, %v2851, 0.0
        %3017 = vadd.xlane.f32.xlu0 %v3016
        %v3018 = vpop.xlane.xlu0 %3017
        %v3019 = vsel %vm2961, %v2852, 0.0
        %3020 = vadd.xlane.f32.xlu0 %v3019
        %v3021 = vpop.xlane.xlu0 %3020
        %v3022 = vsel %vm2961, %v2853, 0.0
        %3023 = vadd.xlane.f32.xlu0 %v3022
        %v3024 = vpop.xlane.xlu0 %3023
        %v3025 = vsel %vm2961, %v2854, 0.0
        %3026 = vadd.xlane.f32.xlu0 %v3025
        %v3027 = vpop.xlane.xlu0 %3026
        %v3028 = vsel %vm2961, %v2855, 0.0
        %3029 = vadd.xlane.f32.xlu0 %v3028
        %v3030 = vpop.xlane.xlu0 %3029
        %v3031 = vsel %vm2961, %v2856, 0.0
        %3032 = vadd.xlane.f32.xlu0 %v3031
        %v3033 = vpop.xlane.xlu0 %3032
        %v3034 = vsel %vm2961, %v2857, 0.0
        %3035 = vadd.xlane.f32.xlu0 %v3034
        %v3036 = vpop.xlane.xlu0 %3035
        %v3037 = vsel %vm2961, %v2858, 0.0
        %3038 = vadd.xlane.f32.xlu0 %v3037
        %v3039 = vpop.xlane.xlu0 %3038
        %v3040 = vsel %vm2961, %v2859, 0.0
        %3041 = vadd.xlane.f32.xlu0 %v3040
        %v3042 = vpop.xlane.xlu0 %3041
        %v3043 = vsel %vm2961, %v2860, 0.0
        %3044 = vadd.xlane.f32.xlu0 %v3043
        %v3045 = vpop.xlane.xlu0 %3044
        %v3046 = vsel %vm2961, %v2861, 0.0
        %3047 = vadd.xlane.f32.xlu0 %v3046
        %v3048 = vpop.xlane.xlu0 %3047
        %v3049 = vsel %vm2961, %v2862, 0.0
        %3050 = vadd.xlane.f32.xlu0 %v3049
        %v3051 = vpop.xlane.xlu0 %3050
        %v3052 = vsel %vm2961, %v2863, 0.0
        %3053 = vadd.xlane.f32.xlu0 %v3052
        %v3054 = vpop.xlane.xlu0 %3053
        %v3055 = vsel %vm2961, %v2864, 0.0
        %3056 = vadd.xlane.f32.xlu0 %v3055
        %v3057 = vpop.xlane.xlu0 %3056
        %v3058 = vsel %vm2961, %v2865, 0.0
        %3059 = vadd.xlane.f32.xlu0 %v3058
        %v3060 = vpop.xlane.xlu0 %3059
        %v3061 = vsel %vm2961, %v2866, 0.0
        %3062 = vadd.xlane.f32.xlu0 %v3061
        %v3063 = vpop.xlane.xlu0 %3062
        %v3064 = vsel %vm2961, %v2867, 0.0
        %3065 = vadd.xlane.f32.xlu0 %v3064
        %v3066 = vpop.xlane.xlu0 %3065
        %v3067 = vsel %vm2961, %v2868, 0.0
        %3068 = vadd.xlane.f32.xlu0 %v3067
        %v3069 = vpop.xlane.xlu0 %3068
        %v3070 = vsel %vm2961, %v2869, 0.0
        %3071 = vadd.xlane.f32.xlu0 %v3070
        %v3072 = vpop.xlane.xlu0 %3071
        %v3073 = vsel %vm2961, %v2870, 0.0
        %3074 = vadd.xlane.f32.xlu0 %v3073
        %v3075 = vpop.xlane.xlu0 %3074
        %v3076 = vsel %vm2961, %v2871, 0.0
        %3077 = vadd.xlane.f32.xlu0 %v3076
        %v3078 = vpop.xlane.xlu0 %3077
        %v3079 = vsel %vm2961, %v2872, 0.0
        %3080 = vadd.xlane.f32.xlu0 %v3079
        %v3081 = vpop.xlane.xlu0 %3080
        %v3082 = vsel %vm2961, %v2873, 0.0
        %3083 = vadd.xlane.f32.xlu0 %v3082
        %v3084 = vpop.xlane.xlu0 %3083
        %v3085 = vsel %vm2961, %v2874, 0.0
        %3086 = vadd.xlane.f32.xlu0 %v3085
        %v3087 = vpop.xlane.xlu0 %3086
        %v3088 = vsel %vm2961, %v2875, 0.0
        %3089 = vadd.xlane.f32.xlu0 %v3088
        %v3090 = vpop.xlane.xlu0 %3089
        %v3091 = vsel %vm2961, %v2876, 0.0
        %3092 = vadd.xlane.f32.xlu0 %v3091
        %v3093 = vpop.xlane.xlu0 %3092
        %v3094 = vsel %vm2961, %v2877, 0.0
        %3095 = vadd.xlane.f32.xlu0 %v3094
        %v3096 = vpop.xlane.xlu0 %3095
        %v3097 = vsel %vm2961, %v2878, 0.0
        %3098 = vadd.xlane.f32.xlu0 %v3097
        %v3099 = vpop.xlane.xlu0 %3098
        %v3100 = vsel %vm2961, %v2879, 0.0
        %3101 = vadd.xlane.f32.xlu0 %v3100
        %v3102 = vpop.xlane.xlu0 %3101
        %v3103 = vsel %vm2961, %v2880, 0.0
        %3104 = vadd.xlane.f32.xlu0 %v3103
        %v3105 = vpop.xlane.xlu0 %3104
        %v3106 = vsel %vm2961, %v2881, 0.0
        %3107 = vadd.xlane.f32.xlu0 %v3106
        %v3108 = vpop.xlane.xlu0 %3107
        %v3109 = vsel %vm2961, %v2882, 0.0
        %3110 = vadd.xlane.f32.xlu0 %v3109
        %v3111 = vpop.xlane.xlu0 %3110
        %v3112 = vsel %vm2961, %v2883, 0.0
        %3113 = vadd.xlane.f32.xlu0 %v3112
        %v3114 = vpop.xlane.xlu0 %3113
        %v3115 = vsel %vm2961, %v2884, 0.0
        %3116 = vadd.xlane.f32.xlu0 %v3115
        %v3117 = vpop.xlane.xlu0 %3116
        %v3118 = vsel %vm2961, %v2885, 0.0
        %3119 = vadd.xlane.f32.xlu0 %v3118
        %v3120 = vpop.xlane.xlu0 %3119
        %v3121 = vsel %vm2961, %v2886, 0.0
        %3122 = vadd.xlane.f32.xlu0 %v3121
        %v3123 = vpop.xlane.xlu0 %3122
        %v3124 = vsel %vm2961, %v2887, 0.0
        %3125 = vadd.xlane.f32.xlu0 %v3124
        %v3126 = vpop.xlane.xlu0 %3125
        %v3127 = vsel %vm2961, %v2888, 0.0
        %3128 = vadd.xlane.f32.xlu0 %v3127
        %v3129 = vpop.xlane.xlu0 %3128
        %v3130 = vsel %vm2961, %v2889, 0.0
        %3131 = vadd.xlane.f32.xlu0 %v3130
        %v3132 = vpop.xlane.xlu0 %3131
        %v3133 = vsel %vm2961, %v2890, 0.0
        %3134 = vadd.xlane.f32.xlu0 %v3133
        %v3135 = vpop.xlane.xlu0 %3134
        %v3136 = vsel %vm2961, %v2891, 0.0
        %3137 = vadd.xlane.f32.xlu0 %v3136
        %v3138 = vpop.xlane.xlu0 %3137
        %v3139 = vsel %vm2961, %v2892, 0.0
        %3140 = vadd.xlane.f32.xlu0 %v3139
        %v3141 = vpop.xlane.xlu0 %3140
        %v3142 = vsel %vm2961, %v2893, 0.0
        %3143 = vadd.xlane.f32.xlu0 %v3142
        %v3144 = vpop.xlane.xlu0 %3143
        %v3145 = vsel %vm2961, %v2894, 0.0
        %3146 = vadd.xlane.f32.xlu0 %v3145
        %v3147 = vpop.xlane.xlu0 %3146
        %v3148 = vsel %vm2961, %v2895, 0.0
        %3149 = vadd.xlane.f32.xlu0 %v3148
        %v3150 = vpop.xlane.xlu0 %3149
        %v3151 = vsel %vm2961, %v2896, 0.0
        %3152 = vadd.xlane.f32.xlu0 %v3151
        %v3153 = vpop.xlane.xlu0 %3152
        %v3154 = vsel %vm2961, %v2897, 0.0
        %3155 = vadd.xlane.f32.xlu0 %v3154
        %v3156 = vpop.xlane.xlu0 %3155
        %v3157 = vsel %vm2961, %v2898, 0.0
        %3158 = vadd.xlane.f32.xlu0 %v3157
        %v3159 = vpop.xlane.xlu0 %3158
        %v3160 = vsel %vm2961, %v2899, 0.0
        %3161 = vadd.xlane.f32.xlu0 %v3160
        %v3162 = vpop.xlane.xlu0 %3161
        %v3163 = vsel %vm2961, %v2900, 0.0
        %3164 = vadd.xlane.f32.xlu0 %v3163
        %v3165 = vpop.xlane.xlu0 %3164
        %v3166 = vsel %vm2961, %v2901, 0.0
        %3167 = vadd.xlane.f32.xlu0 %v3166
        %v3168 = vpop.xlane.xlu0 %3167
        %v3169 = vsel %vm2961, %v2902, 0.0
        %3170 = vadd.xlane.f32.xlu0 %v3169
        %v3171 = vpop.xlane.xlu0 %3170
        %v3172 = vsel %vm2961, %v2903, 0.0
        %3173 = vadd.xlane.f32.xlu0 %v3172
        %v3174 = vpop.xlane.xlu0 %3173
        %v3175 = vsel %vm2961, %v2904, 0.0
        %3176 = vadd.xlane.f32.xlu0 %v3175
        %v3177 = vpop.xlane.xlu0 %3176
        %v3178 = vsel %vm2961, %v2905, 0.0
        %3179 = vadd.xlane.f32.xlu0 %v3178
        %v3180 = vpop.xlane.xlu0 %3179
        %v3181 = vsel %vm2961, %v2906, 0.0
        %3182 = vadd.xlane.f32.xlu0 %v3181
        %v3183 = vpop.xlane.xlu0 %3182
        %v3184 = vsel %vm2961, %v2907, 0.0
        %3185 = vadd.xlane.f32.xlu0 %v3184
        %v3186 = vpop.xlane.xlu0 %3185
        %v3187 = vsel %vm2961, %v2908, 0.0
        %3188 = vadd.xlane.f32.xlu0 %v3187
        %v3189 = vpop.xlane.xlu0 %3188
        %v3190 = vsel %vm2961, %v2909, 0.0
        %3191 = vadd.xlane.f32.xlu0 %v3190
        %v3192 = vpop.xlane.xlu0 %3191
        %v3193 = vsel %vm2961, %v2910, 0.0
        %3194 = vadd.xlane.f32.xlu0 %v3193
        %v3195 = vpop.xlane.xlu0 %3194
        %v3196 = vsel %vm2961, %v2911, 0.0
        %3197 = vadd.xlane.f32.xlu0 %v3196
        %v3198 = vpop.xlane.xlu0 %3197
        %v3199 = vsel %vm2961, %v2912, 0.0
        %3200 = vadd.xlane.f32.xlu0 %v3199
        %v3201 = vpop.xlane.xlu0 %3200
        %v3202 = vsel %vm2961, %v2913, 0.0
        %3203 = vadd.xlane.f32.xlu0 %v3202
        %v3204 = vpop.xlane.xlu0 %3203
        %v3205 = vsel %vm2961, %v2914, 0.0
        %3206 = vadd.xlane.f32.xlu0 %v3205
        %v3207 = vpop.xlane.xlu0 %3206
        %v3208 = vsel %vm2961, %v2915, 0.0
        %3209 = vadd.xlane.f32.xlu0 %v3208
        %v3210 = vpop.xlane.xlu0 %3209
        %v3211 = vsel %vm2961, %v2916, 0.0
        %3212 = vadd.xlane.f32.xlu0 %v3211
        %v3213 = vpop.xlane.xlu0 %3212
        %v3214 = vsel %vm2961, %v2917, 0.0
        %3215 = vadd.xlane.f32.xlu0 %v3214
        %v3216 = vpop.xlane.xlu0 %3215
        %v3217 = vsel %vm2961, %v2918, 0.0
        %3218 = vadd.xlane.f32.xlu0 %v3217
        %v3219 = vpop.xlane.xlu0 %3218
        %v3220 = vsel %vm2961, %v2919, 0.0
        %3221 = vadd.xlane.f32.xlu0 %v3220
        %v3222 = vpop.xlane.xlu0 %3221
        %v3223 = vsel %vm2961, %v2920, 0.0
        %3224 = vadd.xlane.f32.xlu0 %v3223
        %v3225 = vpop.xlane.xlu0 %3224
        %v3226 = vsel %vm2961, %v2921, 0.0
        %3227 = vadd.xlane.f32.xlu0 %v3226
        %v3228 = vpop.xlane.xlu0 %3227
        %v3229 = vsel %vm2961, %v2922, 0.0
        %3230 = vadd.xlane.f32.xlu0 %v3229
        %v3231 = vpop.xlane.xlu0 %3230
        %v3232 = vsel %vm2961, %v2923, 0.0
        %3233 = vadd.xlane.f32.xlu0 %v3232
        %v3234 = vpop.xlane.xlu0 %3233
        %v3235 = vsel %vm2961, %v2924, 0.0
        %3236 = vadd.xlane.f32.xlu0 %v3235
        %v3237 = vpop.xlane.xlu0 %3236
        %v3238 = vsel %vm2961, %v2925, 0.0
        %3239 = vadd.xlane.f32.xlu0 %v3238
        %v3240 = vpop.xlane.xlu0 %3239
        %v3241 = vsel %vm2961, %v2926, 0.0
        %3242 = vadd.xlane.f32.xlu0 %v3241
        %v3243 = vpop.xlane.xlu0 %3242
        %v3244 = vsel %vm2961, %v2927, 0.0
        %3245 = vadd.xlane.f32.xlu0 %v3244
        %v3246 = vpop.xlane.xlu0 %3245
        %v3247 = vsel %vm2961, %v2928, 0.0
        %3248 = vadd.xlane.f32.xlu0 %v3247
        %v3249 = vpop.xlane.xlu0 %3248
        %v3250 = vsel %vm2961, %v2929, 0.0
        %3251 = vadd.xlane.f32.xlu0 %v3250
        %v3252 = vpop.xlane.xlu0 %3251
        %v3253 = vsel %vm2961, %v2930, 0.0
        %3254 = vadd.xlane.f32.xlu0 %v3253
        %v3255 = vpop.xlane.xlu0 %3254
        %v3256 = vsel %vm2961, %v2931, 0.0
        %3257 = vadd.xlane.f32.xlu0 %v3256
        %v3258 = vpop.xlane.xlu0 %3257
        %v3259 = vsel %vm2961, %v2932, 0.0
        %3260 = vadd.xlane.f32.xlu0 %v3259
        %v3261 = vpop.xlane.xlu0 %3260
        %v3262 = vsel %vm2961, %v2933, 0.0
        %3263 = vadd.xlane.f32.xlu0 %v3262
        %v3264 = vpop.xlane.xlu0 %3263
        %v3265 = vsel %vm2961, %v2934, 0.0
        %3266 = vadd.xlane.f32.xlu0 %v3265
        %v3267 = vpop.xlane.xlu0 %3266
        %v3268 = vsel %vm2961, %v2935, 0.0
        %3269 = vadd.xlane.f32.xlu0 %v3268
        %v3270 = vpop.xlane.xlu0 %3269
        %v3271 = vsel %vm2961, %v2936, 0.0
        %3272 = vadd.xlane.f32.xlu0 %v3271
        %v3273 = vpop.xlane.xlu0 %3272
        %v3274 = vsel %vm2961, %v2937, 0.0
        %3275 = vadd.xlane.f32.xlu0 %v3274
        %v3276 = vpop.xlane.xlu0 %3275
        %v3277 = vsel %vm2961, %v2938, 0.0
        %3278 = vadd.xlane.f32.xlu0 %v3277
        %v3279 = vpop.xlane.xlu0 %3278
        %v3280 = vsel %vm2961, %v2939, 0.0
        %3281 = vadd.xlane.f32.xlu0 %v3280
        %v3282 = vpop.xlane.xlu0 %3281
        %v3283 = vsel %vm2961, %v2940, 0.0
        %3284 = vadd.xlane.f32.xlu0 %v3283
        %v3285 = vpop.xlane.xlu0 %3284
        %v3286 = vsel %vm2961, %v2941, 0.0
        %3287 = vadd.xlane.f32.xlu0 %v3286
        %v3288 = vpop.xlane.xlu0 %3287
        %v3289 = vsel %vm2961, %v2942, 0.0
        %3290 = vadd.xlane.f32.xlu0 %v3289
        %v3291 = vpop.xlane.xlu0 %3290
        %v3292 = vsel %vm2961, %v2943, 0.0
        %3293 = vadd.xlane.f32.xlu0 %v3292
        %v3294 = vpop.xlane.xlu0 %3293
        %v3295 = vsel %vm2961, %v2944, 0.0
        %3296 = vadd.xlane.f32.xlu0 %v3295
        %v3297 = vpop.xlane.xlu0 %3296
        %v3298 = vsel %vm2961, %v2945, 0.0
        %3299 = vadd.xlane.f32.xlu0 %v3298
        %v3300 = vpop.xlane.xlu0 %3299
        %v3301 = vsel %vm2961, %v2946, 0.0
        %3302 = vadd.xlane.f32.xlu0 %v3301
        %v3303 = vpop.xlane.xlu0 %3302
        %v3304 = vsel %vm2961, %v2947, 0.0
        %3305 = vadd.xlane.f32.xlu0 %v3304
        %v3306 = vpop.xlane.xlu0 %3305
        %v3307 = vsel %vm2961, %v2948, 0.0
        %3308 = vadd.xlane.f32.xlu0 %v3307
        %v3309 = vpop.xlane.xlu0 %3308
        %v3310 = vsel %vm2961, %v2949, 0.0
        %3311 = vadd.xlane.f32.xlu0 %v3310
        %v3312 = vpop.xlane.xlu0 %3311
        %v3313 = vsel %vm2961, %v2950, 0.0
        %3314 = vadd.xlane.f32.xlu0 %v3313
        %v3315 = vpop.xlane.xlu0 %3314
        %v3316 = vsel %vm2961, %v2951, 0.0
        %3317 = vadd.xlane.f32.xlu0 %v3316
        %v3318 = vpop.xlane.xlu0 %3317
        %v3319 = vsel %vm2961, %v2952, 0.0
        %3320 = vadd.xlane.f32.xlu0 %v3319
        %v3321 = vpop.xlane.xlu0 %3320
        %v3322 = vsel %vm2961, %v2953, 0.0
        %3323 = vadd.xlane.f32.xlu0 %v3322
        %v3324 = vpop.xlane.xlu0 %3323
        %v3325 = vsel %vm2961, %v2954, 0.0
        %3326 = vadd.xlane.f32.xlu0 %v3325
        %v3327 = vpop.xlane.xlu0 %3326
        %v3328 = vsel %vm2961, %v2955, 0.0
        %3329 = vadd.xlane.f32.xlu0 %v3328
        %v3330 = vpop.xlane.xlu0 %3329
        %v3331 = vsel %vm2961, %v2956, 0.0
        %3332 = vadd.xlane.f32.xlu0 %v3331
        %v3333 = vpop.xlane.xlu0 %3332
        %v3334 = vsel %vm2961, %v2957, 0.0
        %3335 = vadd.xlane.f32.xlu0 %v3334
        %v3336 = vpop.xlane.xlu0 %3335
        %v3337 = vsel %vm2961, %v2958, 0.0
        %3338 = vadd.xlane.f32.xlu0 %v3337
        %v3339 = vpop.xlane.xlu0 %3338
        %v3340 = vsel %vm2961, %v2959, 0.0
        %3341 = vadd.xlane.f32.xlu0 %v3340
        %v3342 = vpop.xlane.xlu0 %3341
        %v3343 = vsel %vm2961, %v2960, 0.0
        %3344 = vadd.xlane.f32.xlu0 %v3343
        %v3345 = vpop.xlane.xlu0 %3344
        %v3346 = vrsqrt.pop %v2964
        %v3347 = vmul.f32 %v2964, %v3346
        %vm3348 = vcmp.eq.f32.partialorder %v2964, inf
        %v3349 = vsel %vm3348, %v2964, %v3347
        %vm3350 = vcmp.eq.f32.partialorder %v2964, 0.0
        %v3351 = vand.u32 %v2964, 2147483648
        %v3352 = vsel %vm3350, %v3351, %v3349
        %v3353 = vrsqrt.pop %v2967
        %v3354 = vmul.f32 %v2967, %v3353
        %vm3355 = vcmp.eq.f32.partialorder %v2967, inf
        %v3356 = vsel %vm3355, %v2967, %v3354
        %vm3357 = vcmp.eq.f32.partialorder %v2967, 0.0
        %v3358 = vand.u32 %v2967, 2147483648
        %v3359 = vsel %vm3357, %v3358, %v3356
        %v3360 = vrsqrt.pop %v2970
        %v3361 = vmul.f32 %v2970, %v3360
        %vm3362 = vcmp.eq.f32.partialorder %v2970, inf
        %v3363 = vsel %vm3362, %v2970, %v3361
        %vm3364 = vcmp.eq.f32.partialorder %v2970, 0.0
        %v3365 = vand.u32 %v2970, 2147483648
        %v3366 = vsel %vm3364, %v3365, %v3363
        %v3367 = vrsqrt.pop %v2973
        %v3368 = vmul.f32 %v2973, %v3367
        %vm3369 = vcmp.eq.f32.partialorder %v2973, inf
        %v3370 = vsel %vm3369, %v2973, %v3368
        %vm3371 = vcmp.eq.f32.partialorder %v2973, 0.0
        %v3372 = vand.u32 %v2973, 2147483648
        %v3373 = vsel %vm3371, %v3372, %v3370
        %v3374 = vrsqrt.pop %v2976
        %v3375 = vmul.f32 %v2976, %v3374
        %vm3376 = vcmp.eq.f32.partialorder %v2976, inf
        %v3377 = vsel %vm3376, %v2976, %v3375
        %vm3378 = vcmp.eq.f32.partialorder %v2976, 0.0
        %v3379 = vand.u32 %v2976, 2147483648
        %v3380 = vsel %vm3378, %v3379, %v3377
        %v3381 = vrsqrt.pop %v2979
        %v3382 = vmul.f32 %v2979, %v3381
        %vm3383 = vcmp.eq.f32.partialorder %v2979, inf
        %v3384 = vsel %vm3383, %v2979, %v3382
        %vm3385 = vcmp.eq.f32.partialorder %v2979, 0.0
        %v3386 = vand.u32 %v2979, 2147483648
        %v3387 = vsel %vm3385, %v3386, %v3384
        %v3388 = vrsqrt.pop %v2982
        %v3389 = vmul.f32 %v2982, %v3388
        %vm3390 = vcmp.eq.f32.partialorder %v2982, inf
        %v3391 = vsel %vm3390, %v2982, %v3389
        %vm3392 = vcmp.eq.f32.partialorder %v2982, 0.0
        %v3393 = vand.u32 %v2982, 2147483648
        %v3394 = vsel %vm3392, %v3393, %v3391
        %v3395 = vrsqrt.pop %v2985
        %v3396 = vmul.f32 %v2985, %v3395
        %vm3397 = vcmp.eq.f32.partialorder %v2985, inf
        %v3398 = vsel %vm3397, %v2985, %v3396
        %vm3399 = vcmp.eq.f32.partialorder %v2985, 0.0
        %v3400 = vand.u32 %v2985, 2147483648
        %v3401 = vsel %vm3399, %v3400, %v3398
        %v3402 = vrsqrt.pop %v2988
        %v3403 = vmul.f32 %v2988, %v3402
        %vm3404 = vcmp.eq.f32.partialorder %v2988, inf
        %v3405 = vsel %vm3404, %v2988, %v3403
        %vm3406 = vcmp.eq.f32.partialorder %v2988, 0.0
        %v3407 = vand.u32 %v2988, 2147483648
        %v3408 = vsel %vm3406, %v3407, %v3405
        %v3409 = vrsqrt.pop %v2991
        %v3410 = vmul.f32 %v2991, %v3409
        %vm3411 = vcmp.eq.f32.partialorder %v2991, inf
        %v3412 = vsel %vm3411, %v2991, %v3410
        %vm3413 = vcmp.eq.f32.partialorder %v2991, 0.0
        %v3414 = vand.u32 %v2991, 2147483648
        %v3415 = vsel %vm3413, %v3414, %v3412
        %v3416 = vrsqrt.pop %v2994
        %v3417 = vmul.f32 %v2994, %v3416
        %vm3418 = vcmp.eq.f32.partialorder %v2994, inf
        %v3419 = vsel %vm3418, %v2994, %v3417
        %vm3420 = vcmp.eq.f32.partialorder %v2994, 0.0
        %v3421 = vand.u32 %v2994, 2147483648
        %v3422 = vsel %vm3420, %v3421, %v3419
        %v3423 = vrsqrt.pop %v2997
        %v3424 = vmul.f32 %v2997, %v3423
        %vm3425 = vcmp.eq.f32.partialorder %v2997, inf
        %v3426 = vsel %vm3425, %v2997, %v3424
        %vm3427 = vcmp.eq.f32.partialorder %v2997, 0.0
        %v3428 = vand.u32 %v2997, 2147483648
        %v3429 = vsel %vm3427, %v3428, %v3426
        %v3430 = vrsqrt.pop %v3000
        %v3431 = vmul.f32 %v3000, %v3430
        %vm3432 = vcmp.eq.f32.partialorder %v3000, inf
        %v3433 = vsel %vm3432, %v3000, %v3431
        %vm3434 = vcmp.eq.f32.partialorder %v3000, 0.0
        %v3435 = vand.u32 %v3000, 2147483648
        %v3436 = vsel %vm3434, %v3435, %v3433
        %v3437 = vrsqrt.pop %v3003
        %v3438 = vmul.f32 %v3003, %v3437
        %vm3439 = vcmp.eq.f32.partialorder %v3003, inf
        %v3440 = vsel %vm3439, %v3003, %v3438
        %vm3441 = vcmp.eq.f32.partialorder %v3003, 0.0
        %v3442 = vand.u32 %v3003, 2147483648
        %v3443 = vsel %vm3441, %v3442, %v3440
        %v3444 = vrsqrt.pop %v3006
        %v3445 = vmul.f32 %v3006, %v3444
        %vm3446 = vcmp.eq.f32.partialorder %v3006, inf
        %v3447 = vsel %vm3446, %v3006, %v3445
        %vm3448 = vcmp.eq.f32.partialorder %v3006, 0.0
        %v3449 = vand.u32 %v3006, 2147483648
        %v3450 = vsel %vm3448, %v3449, %v3447
        %v3451 = vrsqrt.pop %v3009
        %v3452 = vmul.f32 %v3009, %v3451
        %vm3453 = vcmp.eq.f32.partialorder %v3009, inf
        %v3454 = vsel %vm3453, %v3009, %v3452
        %vm3455 = vcmp.eq.f32.partialorder %v3009, 0.0
        %v3456 = vand.u32 %v3009, 2147483648
        %v3457 = vsel %vm3455, %v3456, %v3454
        %v3458 = vrsqrt.pop %v3012
        %v3459 = vmul.f32 %v3012, %v3458
        %vm3460 = vcmp.eq.f32.partialorder %v3012, inf
        %v3461 = vsel %vm3460, %v3012, %v3459
        %vm3462 = vcmp.eq.f32.partialorder %v3012, 0.0
        %v3463 = vand.u32 %v3012, 2147483648
        %v3464 = vsel %vm3462, %v3463, %v3461
        %v3465 = vrsqrt.pop %v3015
        %v3466 = vmul.f32 %v3015, %v3465
        %vm3467 = vcmp.eq.f32.partialorder %v3015, inf
        %v3468 = vsel %vm3467, %v3015, %v3466
        %vm3469 = vcmp.eq.f32.partialorder %v3015, 0.0
        %v3470 = vand.u32 %v3015, 2147483648
        %v3471 = vsel %vm3469, %v3470, %v3468
        %v3472 = vrsqrt.pop %v3018
        %v3473 = vmul.f32 %v3018, %v3472
        %vm3474 = vcmp.eq.f32.partialorder %v3018, inf
        %v3475 = vsel %vm3474, %v3018, %v3473
        %vm3476 = vcmp.eq.f32.partialorder %v3018, 0.0
        %v3477 = vand.u32 %v3018, 2147483648
        %v3478 = vsel %vm3476, %v3477, %v3475
        %v3479 = vrsqrt.pop %v3021
        %v3480 = vmul.f32 %v3021, %v3479
        %vm3481 = vcmp.eq.f32.partialorder %v3021, inf
        %v3482 = vsel %vm3481, %v3021, %v3480
        %vm3483 = vcmp.eq.f32.partialorder %v3021, 0.0
        %v3484 = vand.u32 %v3021, 2147483648
        %v3485 = vsel %vm3483, %v3484, %v3482
        %v3486 = vrsqrt.pop %v3024
        %v3487 = vmul.f32 %v3024, %v3486
        %vm3488 = vcmp.eq.f32.partialorder %v3024, inf
        %v3489 = vsel %vm3488, %v3024, %v3487
        %vm3490 = vcmp.eq.f32.partialorder %v3024, 0.0
        %v3491 = vand.u32 %v3024, 2147483648
        %v3492 = vsel %vm3490, %v3491, %v3489
        %v3493 = vrsqrt.pop %v3027
        %v3494 = vmul.f32 %v3027, %v3493
        %vm3495 = vcmp.eq.f32.partialorder %v3027, inf
        %v3496 = vsel %vm3495, %v3027, %v3494
        %vm3497 = vcmp.eq.f32.partialorder %v3027, 0.0
        %v3498 = vand.u32 %v3027, 2147483648
        %v3499 = vsel %vm3497, %v3498, %v3496
        %v3500 = vrsqrt.pop %v3030
        %v3501 = vmul.f32 %v3030, %v3500
        %vm3502 = vcmp.eq.f32.partialorder %v3030, inf
        %v3503 = vsel %vm3502, %v3030, %v3501
        %vm3504 = vcmp.eq.f32.partialorder %v3030, 0.0
        %v3505 = vand.u32 %v3030, 2147483648
        %v3506 = vsel %vm3504, %v3505, %v3503
        %v3507 = vrsqrt.pop %v3033
        %v3508 = vmul.f32 %v3033, %v3507
        %vm3509 = vcmp.eq.f32.partialorder %v3033, inf
        %v3510 = vsel %vm3509, %v3033, %v3508
        %vm3511 = vcmp.eq.f32.partialorder %v3033, 0.0
        %v3512 = vand.u32 %v3033, 2147483648
        %v3513 = vsel %vm3511, %v3512, %v3510
        %v3514 = vrsqrt.pop %v3036
        %v3515 = vmul.f32 %v3036, %v3514
        %vm3516 = vcmp.eq.f32.partialorder %v3036, inf
        %v3517 = vsel %vm3516, %v3036, %v3515
        %vm3518 = vcmp.eq.f32.partialorder %v3036, 0.0
        %v3519 = vand.u32 %v3036, 2147483648
        %v3520 = vsel %vm3518, %v3519, %v3517
        %v3521 = vrsqrt.pop %v3039
        %v3522 = vmul.f32 %v3039, %v3521
        %vm3523 = vcmp.eq.f32.partialorder %v3039, inf
        %v3524 = vsel %vm3523, %v3039, %v3522
        %vm3525 = vcmp.eq.f32.partialorder %v3039, 0.0
        %v3526 = vand.u32 %v3039, 2147483648
        %v3527 = vsel %vm3525, %v3526, %v3524
        %v3528 = vrsqrt.pop %v3042
        %v3529 = vmul.f32 %v3042, %v3528
        %vm3530 = vcmp.eq.f32.partialorder %v3042, inf
        %v3531 = vsel %vm3530, %v3042, %v3529
        %vm3532 = vcmp.eq.f32.partialorder %v3042, 0.0
        %v3533 = vand.u32 %v3042, 2147483648
        %v3534 = vsel %vm3532, %v3533, %v3531
        %v3535 = vrsqrt.pop %v3045
        %v3536 = vmul.f32 %v3045, %v3535
        %vm3537 = vcmp.eq.f32.partialorder %v3045, inf
        %v3538 = vsel %vm3537, %v3045, %v3536
        %vm3539 = vcmp.eq.f32.partialorder %v3045, 0.0
        %v3540 = vand.u32 %v3045, 2147483648
        %v3541 = vsel %vm3539, %v3540, %v3538
        %v3542 = vrsqrt.pop %v3048
        %v3543 = vmul.f32 %v3048, %v3542
        %vm3544 = vcmp.eq.f32.partialorder %v3048, inf
        %v3545 = vsel %vm3544, %v3048, %v3543
        %vm3546 = vcmp.eq.f32.partialorder %v3048, 0.0
        %v3547 = vand.u32 %v3048, 2147483648
        %v3548 = vsel %vm3546, %v3547, %v3545
        %v3549 = vrsqrt.pop %v3051
        %v3550 = vmul.f32 %v3051, %v3549
        %vm3551 = vcmp.eq.f32.partialorder %v3051, inf
        %v3552 = vsel %vm3551, %v3051, %v3550
        %vm3553 = vcmp.eq.f32.partialorder %v3051, 0.0
        %v3554 = vand.u32 %v3051, 2147483648
        %v3555 = vsel %vm3553, %v3554, %v3552
        %v3556 = vrsqrt.pop %v3054
        %v3557 = vmul.f32 %v3054, %v3556
        %vm3558 = vcmp.eq.f32.partialorder %v3054, inf
        %v3559 = vsel %vm3558, %v3054, %v3557
        %vm3560 = vcmp.eq.f32.partialorder %v3054, 0.0
        %v3561 = vand.u32 %v3054, 2147483648
        %v3562 = vsel %vm3560, %v3561, %v3559
        %v3563 = vrsqrt.pop %v3057
        %v3564 = vmul.f32 %v3057, %v3563
        %vm3565 = vcmp.eq.f32.partialorder %v3057, inf
        %v3566 = vsel %vm3565, %v3057, %v3564
        %vm3567 = vcmp.eq.f32.partialorder %v3057, 0.0
        %v3568 = vand.u32 %v3057, 2147483648
        %v3569 = vsel %vm3567, %v3568, %v3566
        %v3570 = vrsqrt.pop %v3060
        %v3571 = vmul.f32 %v3060, %v3570
        %vm3572 = vcmp.eq.f32.partialorder %v3060, inf
        %v3573 = vsel %vm3572, %v3060, %v3571
        %vm3574 = vcmp.eq.f32.partialorder %v3060, 0.0
        %v3575 = vand.u32 %v3060, 2147483648
        %v3576 = vsel %vm3574, %v3575, %v3573
        %v3577 = vrsqrt.pop %v3063
        %v3578 = vmul.f32 %v3063, %v3577
        %vm3579 = vcmp.eq.f32.partialorder %v3063, inf
        %v3580 = vsel %vm3579, %v3063, %v3578
        %vm3581 = vcmp.eq.f32.partialorder %v3063, 0.0
        %v3582 = vand.u32 %v3063, 2147483648
        %v3583 = vsel %vm3581, %v3582, %v3580
        %v3584 = vrsqrt.pop %v3066
        %v3585 = vmul.f32 %v3066, %v3584
        %vm3586 = vcmp.eq.f32.partialorder %v3066, inf
        %v3587 = vsel %vm3586, %v3066, %v3585
        %vm3588 = vcmp.eq.f32.partialorder %v3066, 0.0
        %v3589 = vand.u32 %v3066, 2147483648
        %v3590 = vsel %vm3588, %v3589, %v3587
        %v3591 = vrsqrt.pop %v3069
        %v3592 = vmul.f32 %v3069, %v3591
        %vm3593 = vcmp.eq.f32.partialorder %v3069, inf
        %v3594 = vsel %vm3593, %v3069, %v3592
        %vm3595 = vcmp.eq.f32.partialorder %v3069, 0.0
        %v3596 = vand.u32 %v3069, 2147483648
        %v3597 = vsel %vm3595, %v3596, %v3594
        %v3598 = vrsqrt.pop %v3072
        %v3599 = vmul.f32 %v3072, %v3598
        %vm3600 = vcmp.eq.f32.partialorder %v3072, inf
        %v3601 = vsel %vm3600, %v3072, %v3599
        %vm3602 = vcmp.eq.f32.partialorder %v3072, 0.0
        %v3603 = vand.u32 %v3072, 2147483648
        %v3604 = vsel %vm3602, %v3603, %v3601
        %v3605 = vrsqrt.pop %v3075
        %v3606 = vmul.f32 %v3075, %v3605
        %vm3607 = vcmp.eq.f32.partialorder %v3075, inf
        %v3608 = vsel %vm3607, %v3075, %v3606
        %vm3609 = vcmp.eq.f32.partialorder %v3075, 0.0
        %v3610 = vand.u32 %v3075, 2147483648
        %v3611 = vsel %vm3609, %v3610, %v3608
        %v3612 = vrsqrt.pop %v3078
        %v3613 = vmul.f32 %v3078, %v3612
        %vm3614 = vcmp.eq.f32.partialorder %v3078, inf
        %v3615 = vsel %vm3614, %v3078, %v3613
        %vm3616 = vcmp.eq.f32.partialorder %v3078, 0.0
        %v3617 = vand.u32 %v3078, 2147483648
        %v3618 = vsel %vm3616, %v3617, %v3615
        %v3619 = vrsqrt.pop %v3081
        %v3620 = vmul.f32 %v3081, %v3619
        %vm3621 = vcmp.eq.f32.partialorder %v3081, inf
        %v3622 = vsel %vm3621, %v3081, %v3620
        %vm3623 = vcmp.eq.f32.partialorder %v3081, 0.0
        %v3624 = vand.u32 %v3081, 2147483648
        %v3625 = vsel %vm3623, %v3624, %v3622
        %v3626 = vrsqrt.pop %v3084
        %v3627 = vmul.f32 %v3084, %v3626
        %vm3628 = vcmp.eq.f32.partialorder %v3084, inf
        %v3629 = vsel %vm3628, %v3084, %v3627
        %vm3630 = vcmp.eq.f32.partialorder %v3084, 0.0
        %v3631 = vand.u32 %v3084, 2147483648
        %v3632 = vsel %vm3630, %v3631, %v3629
        %v3633 = vrsqrt.pop %v3087
        %v3634 = vmul.f32 %v3087, %v3633
        %vm3635 = vcmp.eq.f32.partialorder %v3087, inf
        %v3636 = vsel %vm3635, %v3087, %v3634
        %vm3637 = vcmp.eq.f32.partialorder %v3087, 0.0
        %v3638 = vand.u32 %v3087, 2147483648
        %v3639 = vsel %vm3637, %v3638, %v3636
        %v3640 = vrsqrt.pop %v3090
        %v3641 = vmul.f32 %v3090, %v3640
        %vm3642 = vcmp.eq.f32.partialorder %v3090, inf
        %v3643 = vsel %vm3642, %v3090, %v3641
        %vm3644 = vcmp.eq.f32.partialorder %v3090, 0.0
        %v3645 = vand.u32 %v3090, 2147483648
        %v3646 = vsel %vm3644, %v3645, %v3643
        %v3647 = vrsqrt.pop %v3093
        %v3648 = vmul.f32 %v3093, %v3647
        %vm3649 = vcmp.eq.f32.partialorder %v3093, inf
        %v3650 = vsel %vm3649, %v3093, %v3648
        %vm3651 = vcmp.eq.f32.partialorder %v3093, 0.0
        %v3652 = vand.u32 %v3093, 2147483648
        %v3653 = vsel %vm3651, %v3652, %v3650
        %v3654 = vrsqrt.pop %v3096
        %v3655 = vmul.f32 %v3096, %v3654
        %vm3656 = vcmp.eq.f32.partialorder %v3096, inf
        %v3657 = vsel %vm3656, %v3096, %v3655
        %vm3658 = vcmp.eq.f32.partialorder %v3096, 0.0
        %v3659 = vand.u32 %v3096, 2147483648
        %v3660 = vsel %vm3658, %v3659, %v3657
        %v3661 = vrsqrt.pop %v3099
        %v3662 = vmul.f32 %v3099, %v3661
        %vm3663 = vcmp.eq.f32.partialorder %v3099, inf
        %v3664 = vsel %vm3663, %v3099, %v3662
        %vm3665 = vcmp.eq.f32.partialorder %v3099, 0.0
        %v3666 = vand.u32 %v3099, 2147483648
        %v3667 = vsel %vm3665, %v3666, %v3664
        %v3668 = vrsqrt.pop %v3102
        %v3669 = vmul.f32 %v3102, %v3668
        %vm3670 = vcmp.eq.f32.partialorder %v3102, inf
        %v3671 = vsel %vm3670, %v3102, %v3669
        %vm3672 = vcmp.eq.f32.partialorder %v3102, 0.0
        %v3673 = vand.u32 %v3102, 2147483648
        %v3674 = vsel %vm3672, %v3673, %v3671
        %v3675 = vrsqrt.pop %v3105
        %v3676 = vmul.f32 %v3105, %v3675
        %vm3677 = vcmp.eq.f32.partialorder %v3105, inf
        %v3678 = vsel %vm3677, %v3105, %v3676
        %vm3679 = vcmp.eq.f32.partialorder %v3105, 0.0
        %v3680 = vand.u32 %v3105, 2147483648
        %v3681 = vsel %vm3679, %v3680, %v3678
        %v3682 = vrsqrt.pop %v3108
        %v3683 = vmul.f32 %v3108, %v3682
        %vm3684 = vcmp.eq.f32.partialorder %v3108, inf
        %v3685 = vsel %vm3684, %v3108, %v3683
        %vm3686 = vcmp.eq.f32.partialorder %v3108, 0.0
        %v3687 = vand.u32 %v3108, 2147483648
        %v3688 = vsel %vm3686, %v3687, %v3685
        %v3689 = vrsqrt.pop %v3111
        %v3690 = vmul.f32 %v3111, %v3689
        %vm3691 = vcmp.eq.f32.partialorder %v3111, inf
        %v3692 = vsel %vm3691, %v3111, %v3690
        %vm3693 = vcmp.eq.f32.partialorder %v3111, 0.0
        %v3694 = vand.u32 %v3111, 2147483648
        %v3695 = vsel %vm3693, %v3694, %v3692
        %v3696 = vrsqrt.pop %v3114
        %v3697 = vmul.f32 %v3114, %v3696
        %vm3698 = vcmp.eq.f32.partialorder %v3114, inf
        %v3699 = vsel %vm3698, %v3114, %v3697
        %vm3700 = vcmp.eq.f32.partialorder %v3114, 0.0
        %v3701 = vand.u32 %v3114, 2147483648
        %v3702 = vsel %vm3700, %v3701, %v3699
        %v3703 = vrsqrt.pop %v3117
        %v3704 = vmul.f32 %v3117, %v3703
        %vm3705 = vcmp.eq.f32.partialorder %v3117, inf
        %v3706 = vsel %vm3705, %v3117, %v3704
        %vm3707 = vcmp.eq.f32.partialorder %v3117, 0.0
        %v3708 = vand.u32 %v3117, 2147483648
        %v3709 = vsel %vm3707, %v3708, %v3706
        %v3710 = vrsqrt.pop %v3120
        %v3711 = vmul.f32 %v3120, %v3710
        %vm3712 = vcmp.eq.f32.partialorder %v3120, inf
        %v3713 = vsel %vm3712, %v3120, %v3711
        %vm3714 = vcmp.eq.f32.partialorder %v3120, 0.0
        %v3715 = vand.u32 %v3120, 2147483648
        %v3716 = vsel %vm3714, %v3715, %v3713
        %v3717 = vrsqrt.pop %v3123
        %v3718 = vmul.f32 %v3123, %v3717
        %vm3719 = vcmp.eq.f32.partialorder %v3123, inf
        %v3720 = vsel %vm3719, %v3123, %v3718
        %vm3721 = vcmp.eq.f32.partialorder %v3123, 0.0
        %v3722 = vand.u32 %v3123, 2147483648
        %v3723 = vsel %vm3721, %v3722, %v3720
        %v3724 = vrsqrt.pop %v3126
        %v3725 = vmul.f32 %v3126, %v3724
        %vm3726 = vcmp.eq.f32.partialorder %v3126, inf
        %v3727 = vsel %vm3726, %v3126, %v3725
        %vm3728 = vcmp.eq.f32.partialorder %v3126, 0.0
        %v3729 = vand.u32 %v3126, 2147483648
        %v3730 = vsel %vm3728, %v3729, %v3727
        %v3731 = vrsqrt.pop %v3129
        %v3732 = vmul.f32 %v3129, %v3731
        %vm3733 = vcmp.eq.f32.partialorder %v3129, inf
        %v3734 = vsel %vm3733, %v3129, %v3732
        %vm3735 = vcmp.eq.f32.partialorder %v3129, 0.0
        %v3736 = vand.u32 %v3129, 2147483648
        %v3737 = vsel %vm3735, %v3736, %v3734
        %v3738 = vrsqrt.pop %v3132
        %v3739 = vmul.f32 %v3132, %v3738
        %vm3740 = vcmp.eq.f32.partialorder %v3132, inf
        %v3741 = vsel %vm3740, %v3132, %v3739
        %vm3742 = vcmp.eq.f32.partialorder %v3132, 0.0
        %v3743 = vand.u32 %v3132, 2147483648
        %v3744 = vsel %vm3742, %v3743, %v3741
        %v3745 = vrsqrt.pop %v3135
        %v3746 = vmul.f32 %v3135, %v3745
        %vm3747 = vcmp.eq.f32.partialorder %v3135, inf
        %v3748 = vsel %vm3747, %v3135, %v3746
        %vm3749 = vcmp.eq.f32.partialorder %v3135, 0.0
        %v3750 = vand.u32 %v3135, 2147483648
        %v3751 = vsel %vm3749, %v3750, %v3748
        %v3752 = vrsqrt.pop %v3138
        %v3753 = vmul.f32 %v3138, %v3752
        %vm3754 = vcmp.eq.f32.partialorder %v3138, inf
        %v3755 = vsel %vm3754, %v3138, %v3753
        %vm3756 = vcmp.eq.f32.partialorder %v3138, 0.0
        %v3757 = vand.u32 %v3138, 2147483648
        %v3758 = vsel %vm3756, %v3757, %v3755
        %v3759 = vrsqrt.pop %v3141
        %v3760 = vmul.f32 %v3141, %v3759
        %vm3761 = vcmp.eq.f32.partialorder %v3141, inf
        %v3762 = vsel %vm3761, %v3141, %v3760
        %vm3763 = vcmp.eq.f32.partialorder %v3141, 0.0
        %v3764 = vand.u32 %v3141, 2147483648
        %v3765 = vsel %vm3763, %v3764, %v3762
        %v3766 = vrsqrt.pop %v3144
        %v3767 = vmul.f32 %v3144, %v3766
        %vm3768 = vcmp.eq.f32.partialorder %v3144, inf
        %v3769 = vsel %vm3768, %v3144, %v3767
        %vm3770 = vcmp.eq.f32.partialorder %v3144, 0.0
        %v3771 = vand.u32 %v3144, 2147483648
        %v3772 = vsel %vm3770, %v3771, %v3769
        %v3773 = vrsqrt.pop %v3147
        %v3774 = vmul.f32 %v3147, %v3773
        %vm3775 = vcmp.eq.f32.partialorder %v3147, inf
        %v3776 = vsel %vm3775, %v3147, %v3774
        %vm3777 = vcmp.eq.f32.partialorder %v3147, 0.0
        %v3778 = vand.u32 %v3147, 2147483648
        %v3779 = vsel %vm3777, %v3778, %v3776
        %v3780 = vrsqrt.pop %v3150
        %v3781 = vmul.f32 %v3150, %v3780
        %vm3782 = vcmp.eq.f32.partialorder %v3150, inf
        %v3783 = vsel %vm3782, %v3150, %v3781
        %vm3784 = vcmp.eq.f32.partialorder %v3150, 0.0
        %v3785 = vand.u32 %v3150, 2147483648
        %v3786 = vsel %vm3784, %v3785, %v3783
        %v3787 = vrsqrt.pop %v3153
        %v3788 = vmul.f32 %v3153, %v3787
        %vm3789 = vcmp.eq.f32.partialorder %v3153, inf
        %v3790 = vsel %vm3789, %v3153, %v3788
        %vm3791 = vcmp.eq.f32.partialorder %v3153, 0.0
        %v3792 = vand.u32 %v3153, 2147483648
        %v3793 = vsel %vm3791, %v3792, %v3790
        %v3794 = vrsqrt.pop %v3156
        %v3795 = vmul.f32 %v3156, %v3794
        %vm3796 = vcmp.eq.f32.partialorder %v3156, inf
        %v3797 = vsel %vm3796, %v3156, %v3795
        %vm3798 = vcmp.eq.f32.partialorder %v3156, 0.0
        %v3799 = vand.u32 %v3156, 2147483648
        %v3800 = vsel %vm3798, %v3799, %v3797
        %v3801 = vrsqrt.pop %v3159
        %v3802 = vmul.f32 %v3159, %v3801
        %vm3803 = vcmp.eq.f32.partialorder %v3159, inf
        %v3804 = vsel %vm3803, %v3159, %v3802
        %vm3805 = vcmp.eq.f32.partialorder %v3159, 0.0
        %v3806 = vand.u32 %v3159, 2147483648
        %v3807 = vsel %vm3805, %v3806, %v3804
        %v3808 = vrsqrt.pop %v3162
        %v3809 = vmul.f32 %v3162, %v3808
        %vm3810 = vcmp.eq.f32.partialorder %v3162, inf
        %v3811 = vsel %vm3810, %v3162, %v3809
        %vm3812 = vcmp.eq.f32.partialorder %v3162, 0.0
        %v3813 = vand.u32 %v3162, 2147483648
        %v3814 = vsel %vm3812, %v3813, %v3811
        %v3815 = vrsqrt.pop %v3165
        %v3816 = vmul.f32 %v3165, %v3815
        %vm3817 = vcmp.eq.f32.partialorder %v3165, inf
        %v3818 = vsel %vm3817, %v3165, %v3816
        %vm3819 = vcmp.eq.f32.partialorder %v3165, 0.0
        %v3820 = vand.u32 %v3165, 2147483648
        %v3821 = vsel %vm3819, %v3820, %v3818
        %v3822 = vrsqrt.pop %v3168
        %v3823 = vmul.f32 %v3168, %v3822
        %vm3824 = vcmp.eq.f32.partialorder %v3168, inf
        %v3825 = vsel %vm3824, %v3168, %v3823
        %vm3826 = vcmp.eq.f32.partialorder %v3168, 0.0
        %v3827 = vand.u32 %v3168, 2147483648
        %v3828 = vsel %vm3826, %v3827, %v3825
        %v3829 = vrsqrt.pop %v3171
        %v3830 = vmul.f32 %v3171, %v3829
        %vm3831 = vcmp.eq.f32.partialorder %v3171, inf
        %v3832 = vsel %vm3831, %v3171, %v3830
        %vm3833 = vcmp.eq.f32.partialorder %v3171, 0.0
        %v3834 = vand.u32 %v3171, 2147483648
        %v3835 = vsel %vm3833, %v3834, %v3832
        %v3836 = vrsqrt.pop %v3174
        %v3837 = vmul.f32 %v3174, %v3836
        %vm3838 = vcmp.eq.f32.partialorder %v3174, inf
        %v3839 = vsel %vm3838, %v3174, %v3837
        %vm3840 = vcmp.eq.f32.partialorder %v3174, 0.0
        %v3841 = vand.u32 %v3174, 2147483648
        %v3842 = vsel %vm3840, %v3841, %v3839
        %v3843 = vrsqrt.pop %v3177
        %v3844 = vmul.f32 %v3177, %v3843
        %vm3845 = vcmp.eq.f32.partialorder %v3177, inf
        %v3846 = vsel %vm3845, %v3177, %v3844
        %vm3847 = vcmp.eq.f32.partialorder %v3177, 0.0
        %v3848 = vand.u32 %v3177, 2147483648
        %v3849 = vsel %vm3847, %v3848, %v3846
        %v3850 = vrsqrt.pop %v3180
        %v3851 = vmul.f32 %v3180, %v3850
        %vm3852 = vcmp.eq.f32.partialorder %v3180, inf
        %v3853 = vsel %vm3852, %v3180, %v3851
        %vm3854 = vcmp.eq.f32.partialorder %v3180, 0.0
        %v3855 = vand.u32 %v3180, 2147483648
        %v3856 = vsel %vm3854, %v3855, %v3853
        %v3857 = vrsqrt.pop %v3183
        %v3858 = vmul.f32 %v3183, %v3857
        %vm3859 = vcmp.eq.f32.partialorder %v3183, inf
        %v3860 = vsel %vm3859, %v3183, %v3858
        %vm3861 = vcmp.eq.f32.partialorder %v3183, 0.0
        %v3862 = vand.u32 %v3183, 2147483648
        %v3863 = vsel %vm3861, %v3862, %v3860
        %v3864 = vrsqrt.pop %v3186
        %v3865 = vmul.f32 %v3186, %v3864
        %vm3866 = vcmp.eq.f32.partialorder %v3186, inf
        %v3867 = vsel %vm3866, %v3186, %v3865
        %vm3868 = vcmp.eq.f32.partialorder %v3186, 0.0
        %v3869 = vand.u32 %v3186, 2147483648
        %v3870 = vsel %vm3868, %v3869, %v3867
        %v3871 = vrsqrt.pop %v3189
        %v3872 = vmul.f32 %v3189, %v3871
        %vm3873 = vcmp.eq.f32.partialorder %v3189, inf
        %v3874 = vsel %vm3873, %v3189, %v3872
        %vm3875 = vcmp.eq.f32.partialorder %v3189, 0.0
        %v3876 = vand.u32 %v3189, 2147483648
        %v3877 = vsel %vm3875, %v3876, %v3874
        %v3878 = vrsqrt.pop %v3192
        %v3879 = vmul.f32 %v3192, %v3878
        %vm3880 = vcmp.eq.f32.partialorder %v3192, inf
        %v3881 = vsel %vm3880, %v3192, %v3879
        %vm3882 = vcmp.eq.f32.partialorder %v3192, 0.0
        %v3883 = vand.u32 %v3192, 2147483648
        %v3884 = vsel %vm3882, %v3883, %v3881
        %v3885 = vrsqrt.pop %v3195
        %v3886 = vmul.f32 %v3195, %v3885
        %vm3887 = vcmp.eq.f32.partialorder %v3195, inf
        %v3888 = vsel %vm3887, %v3195, %v3886
        %vm3889 = vcmp.eq.f32.partialorder %v3195, 0.0
        %v3890 = vand.u32 %v3195, 2147483648
        %v3891 = vsel %vm3889, %v3890, %v3888
        %v3892 = vrsqrt.pop %v3198
        %v3893 = vmul.f32 %v3198, %v3892
        %vm3894 = vcmp.eq.f32.partialorder %v3198, inf
        %v3895 = vsel %vm3894, %v3198, %v3893
        %vm3896 = vcmp.eq.f32.partialorder %v3198, 0.0
        %v3897 = vand.u32 %v3198, 2147483648
        %v3898 = vsel %vm3896, %v3897, %v3895
        %v3899 = vrsqrt.pop %v3201
        %v3900 = vmul.f32 %v3201, %v3899
        %vm3901 = vcmp.eq.f32.partialorder %v3201, inf
        %v3902 = vsel %vm3901, %v3201, %v3900
        %vm3903 = vcmp.eq.f32.partialorder %v3201, 0.0
        %v3904 = vand.u32 %v3201, 2147483648
        %v3905 = vsel %vm3903, %v3904, %v3902
        %v3906 = vrsqrt.pop %v3204
        %v3907 = vmul.f32 %v3204, %v3906
        %vm3908 = vcmp.eq.f32.partialorder %v3204, inf
        %v3909 = vsel %vm3908, %v3204, %v3907
        %vm3910 = vcmp.eq.f32.partialorder %v3204, 0.0
        %v3911 = vand.u32 %v3204, 2147483648
        %v3912 = vsel %vm3910, %v3911, %v3909
        %v3913 = vrsqrt.pop %v3207
        %v3914 = vmul.f32 %v3207, %v3913
        %vm3915 = vcmp.eq.f32.partialorder %v3207, inf
        %v3916 = vsel %vm3915, %v3207, %v3914
        %vm3917 = vcmp.eq.f32.partialorder %v3207, 0.0
        %v3918 = vand.u32 %v3207, 2147483648
        %v3919 = vsel %vm3917, %v3918, %v3916
        %v3920 = vrsqrt.pop %v3210
        %v3921 = vmul.f32 %v3210, %v3920
        %vm3922 = vcmp.eq.f32.partialorder %v3210, inf
        %v3923 = vsel %vm3922, %v3210, %v3921
        %vm3924 = vcmp.eq.f32.partialorder %v3210, 0.0
        %v3925 = vand.u32 %v3210, 2147483648
        %v3926 = vsel %vm3924, %v3925, %v3923
        %v3927 = vrsqrt.pop %v3213
        %v3928 = vmul.f32 %v3213, %v3927
        %vm3929 = vcmp.eq.f32.partialorder %v3213, inf
        %v3930 = vsel %vm3929, %v3213, %v3928
        %vm3931 = vcmp.eq.f32.partialorder %v3213, 0.0
        %v3932 = vand.u32 %v3213, 2147483648
        %v3933 = vsel %vm3931, %v3932, %v3930
        %v3934 = vrsqrt.pop %v3216
        %v3935 = vmul.f32 %v3216, %v3934
        %vm3936 = vcmp.eq.f32.partialorder %v3216, inf
        %v3937 = vsel %vm3936, %v3216, %v3935
        %vm3938 = vcmp.eq.f32.partialorder %v3216, 0.0
        %v3939 = vand.u32 %v3216, 2147483648
        %v3940 = vsel %vm3938, %v3939, %v3937
        %v3941 = vrsqrt.pop %v3219
        %v3942 = vmul.f32 %v3219, %v3941
        %vm3943 = vcmp.eq.f32.partialorder %v3219, inf
        %v3944 = vsel %vm3943, %v3219, %v3942
        %vm3945 = vcmp.eq.f32.partialorder %v3219, 0.0
        %v3946 = vand.u32 %v3219, 2147483648
        %v3947 = vsel %vm3945, %v3946, %v3944
        %v3948 = vrsqrt.pop %v3222
        %v3949 = vmul.f32 %v3222, %v3948
        %vm3950 = vcmp.eq.f32.partialorder %v3222, inf
        %v3951 = vsel %vm3950, %v3222, %v3949
        %vm3952 = vcmp.eq.f32.partialorder %v3222, 0.0
        %v3953 = vand.u32 %v3222, 2147483648
        %v3954 = vsel %vm3952, %v3953, %v3951
        %v3955 = vrsqrt.pop %v3225
        %v3956 = vmul.f32 %v3225, %v3955
        %vm3957 = vcmp.eq.f32.partialorder %v3225, inf
        %v3958 = vsel %vm3957, %v3225, %v3956
        %vm3959 = vcmp.eq.f32.partialorder %v3225, 0.0
        %v3960 = vand.u32 %v3225, 2147483648
        %v3961 = vsel %vm3959, %v3960, %v3958
        %v3962 = vrsqrt.pop %v3228
        %v3963 = vmul.f32 %v3228, %v3962
        %vm3964 = vcmp.eq.f32.partialorder %v3228, inf
        %v3965 = vsel %vm3964, %v3228, %v3963
        %vm3966 = vcmp.eq.f32.partialorder %v3228, 0.0
        %v3967 = vand.u32 %v3228, 2147483648
        %v3968 = vsel %vm3966, %v3967, %v3965
        %v3969 = vrsqrt.pop %v3231
        %v3970 = vmul.f32 %v3231, %v3969
        %vm3971 = vcmp.eq.f32.partialorder %v3231, inf
        %v3972 = vsel %vm3971, %v3231, %v3970
        %vm3973 = vcmp.eq.f32.partialorder %v3231, 0.0
        %v3974 = vand.u32 %v3231, 2147483648
        %v3975 = vsel %vm3973, %v3974, %v3972
        %v3976 = vrsqrt.pop %v3234
        %v3977 = vmul.f32 %v3234, %v3976
        %vm3978 = vcmp.eq.f32.partialorder %v3234, inf
        %v3979 = vsel %vm3978, %v3234, %v3977
        %vm3980 = vcmp.eq.f32.partialorder %v3234, 0.0
        %v3981 = vand.u32 %v3234, 2147483648
        %v3982 = vsel %vm3980, %v3981, %v3979
        %v3983 = vrsqrt.pop %v3237
        %v3984 = vmul.f32 %v3237, %v3983
        %vm3985 = vcmp.eq.f32.partialorder %v3237, inf
        %v3986 = vsel %vm3985, %v3237, %v3984
        %vm3987 = vcmp.eq.f32.partialorder %v3237, 0.0
        %v3988 = vand.u32 %v3237, 2147483648
        %v3989 = vsel %vm3987, %v3988, %v3986
        %v3990 = vrsqrt.pop %v3240
        %v3991 = vmul.f32 %v3240, %v3990
        %vm3992 = vcmp.eq.f32.partialorder %v3240, inf
        %v3993 = vsel %vm3992, %v3240, %v3991
        %vm3994 = vcmp.eq.f32.partialorder %v3240, 0.0
        %v3995 = vand.u32 %v3240, 2147483648
        %v3996 = vsel %vm3994, %v3995, %v3993
        %v3997 = vrsqrt.pop %v3243
        %v3998 = vmul.f32 %v3243, %v3997
        %vm3999 = vcmp.eq.f32.partialorder %v3243, inf
        %v4000 = vsel %vm3999, %v3243, %v3998
        %vm4001 = vcmp.eq.f32.partialorder %v3243, 0.0
        %v4002 = vand.u32 %v3243, 2147483648
        %v4003 = vsel %vm4001, %v4002, %v4000
        %v4004 = vrsqrt.pop %v3246
        %v4005 = vmul.f32 %v3246, %v4004
        %vm4006 = vcmp.eq.f32.partialorder %v3246, inf
        %v4007 = vsel %vm4006, %v3246, %v4005
        %vm4008 = vcmp.eq.f32.partialorder %v3246, 0.0
        %v4009 = vand.u32 %v3246, 2147483648
        %v4010 = vsel %vm4008, %v4009, %v4007
        %v4011 = vrsqrt.pop %v3249
        %v4012 = vmul.f32 %v3249, %v4011
        %vm4013 = vcmp.eq.f32.partialorder %v3249, inf
        %v4014 = vsel %vm4013, %v3249, %v4012
        %vm4015 = vcmp.eq.f32.partialorder %v3249, 0.0
        %v4016 = vand.u32 %v3249, 2147483648
        %v4017 = vsel %vm4015, %v4016, %v4014
        %v4018 = vrsqrt.pop %v3252
        %v4019 = vmul.f32 %v3252, %v4018
        %vm4020 = vcmp.eq.f32.partialorder %v3252, inf
        %v4021 = vsel %vm4020, %v3252, %v4019
        %vm4022 = vcmp.eq.f32.partialorder %v3252, 0.0
        %v4023 = vand.u32 %v3252, 2147483648
        %v4024 = vsel %vm4022, %v4023, %v4021
        %v4025 = vrsqrt.pop %v3255
        %v4026 = vmul.f32 %v3255, %v4025
        %vm4027 = vcmp.eq.f32.partialorder %v3255, inf
        %v4028 = vsel %vm4027, %v3255, %v4026
        %vm4029 = vcmp.eq.f32.partialorder %v3255, 0.0
        %v4030 = vand.u32 %v3255, 2147483648
        %v4031 = vsel %vm4029, %v4030, %v4028
        %v4032 = vrsqrt.pop %v3258
        %v4033 = vmul.f32 %v3258, %v4032
        %vm4034 = vcmp.eq.f32.partialorder %v3258, inf
        %v4035 = vsel %vm4034, %v3258, %v4033
        %vm4036 = vcmp.eq.f32.partialorder %v3258, 0.0
        %v4037 = vand.u32 %v3258, 2147483648
        %v4038 = vsel %vm4036, %v4037, %v4035
        %v4039 = vrsqrt.pop %v3261
        %v4040 = vmul.f32 %v3261, %v4039
        %vm4041 = vcmp.eq.f32.partialorder %v3261, inf
        %v4042 = vsel %vm4041, %v3261, %v4040
        %vm4043 = vcmp.eq.f32.partialorder %v3261, 0.0
        %v4044 = vand.u32 %v3261, 2147483648
        %v4045 = vsel %vm4043, %v4044, %v4042
        %v4046 = vrsqrt.pop %v3264
        %v4047 = vmul.f32 %v3264, %v4046
        %vm4048 = vcmp.eq.f32.partialorder %v3264, inf
        %v4049 = vsel %vm4048, %v3264, %v4047
        %vm4050 = vcmp.eq.f32.partialorder %v3264, 0.0
        %v4051 = vand.u32 %v3264, 2147483648
        %v4052 = vsel %vm4050, %v4051, %v4049
        %v4053 = vrsqrt.pop %v3267
        %v4054 = vmul.f32 %v3267, %v4053
        %vm4055 = vcmp.eq.f32.partialorder %v3267, inf
        %v4056 = vsel %vm4055, %v3267, %v4054
        %vm4057 = vcmp.eq.f32.partialorder %v3267, 0.0
        %v4058 = vand.u32 %v3267, 2147483648
        %v4059 = vsel %vm4057, %v4058, %v4056
        %v4060 = vrsqrt.pop %v3270
        %v4061 = vmul.f32 %v3270, %v4060
        %vm4062 = vcmp.eq.f32.partialorder %v3270, inf
        %v4063 = vsel %vm4062, %v3270, %v4061
        %vm4064 = vcmp.eq.f32.partialorder %v3270, 0.0
        %v4065 = vand.u32 %v3270, 2147483648
        %v4066 = vsel %vm4064, %v4065, %v4063
        %v4067 = vrsqrt.pop %v3273
        %v4068 = vmul.f32 %v3273, %v4067
        %vm4069 = vcmp.eq.f32.partialorder %v3273, inf
        %v4070 = vsel %vm4069, %v3273, %v4068
        %vm4071 = vcmp.eq.f32.partialorder %v3273, 0.0
        %v4072 = vand.u32 %v3273, 2147483648
        %v4073 = vsel %vm4071, %v4072, %v4070
        %v4074 = vrsqrt.pop %v3276
        %v4075 = vmul.f32 %v3276, %v4074
        %vm4076 = vcmp.eq.f32.partialorder %v3276, inf
        %v4077 = vsel %vm4076, %v3276, %v4075
        %vm4078 = vcmp.eq.f32.partialorder %v3276, 0.0
        %v4079 = vand.u32 %v3276, 2147483648
        %v4080 = vsel %vm4078, %v4079, %v4077
        %v4081 = vrsqrt.pop %v3279
        %v4082 = vmul.f32 %v3279, %v4081
        %vm4083 = vcmp.eq.f32.partialorder %v3279, inf
        %v4084 = vsel %vm4083, %v3279, %v4082
        %vm4085 = vcmp.eq.f32.partialorder %v3279, 0.0
        %v4086 = vand.u32 %v3279, 2147483648
        %v4087 = vsel %vm4085, %v4086, %v4084
        %v4088 = vrsqrt.pop %v3282
        %v4089 = vmul.f32 %v3282, %v4088
        %vm4090 = vcmp.eq.f32.partialorder %v3282, inf
        %v4091 = vsel %vm4090, %v3282, %v4089
        %vm4092 = vcmp.eq.f32.partialorder %v3282, 0.0
        %v4093 = vand.u32 %v3282, 2147483648
        %v4094 = vsel %vm4092, %v4093, %v4091
        %v4095 = vrsqrt.pop %v3285
        %v4096 = vmul.f32 %v3285, %v4095
        %vm4097 = vcmp.eq.f32.partialorder %v3285, inf
        %v4098 = vsel %vm4097, %v3285, %v4096
        %vm4099 = vcmp.eq.f32.partialorder %v3285, 0.0
        %v4100 = vand.u32 %v3285, 2147483648
        %v4101 = vsel %vm4099, %v4100, %v4098
        %v4102 = vrsqrt.pop %v3288
        %v4103 = vmul.f32 %v3288, %v4102
        %vm4104 = vcmp.eq.f32.partialorder %v3288, inf
        %v4105 = vsel %vm4104, %v3288, %v4103
        %vm4106 = vcmp.eq.f32.partialorder %v3288, 0.0
        %v4107 = vand.u32 %v3288, 2147483648
        %v4108 = vsel %vm4106, %v4107, %v4105
        %v4109 = vrsqrt.pop %v3291
        %v4110 = vmul.f32 %v3291, %v4109
        %vm4111 = vcmp.eq.f32.partialorder %v3291, inf
        %v4112 = vsel %vm4111, %v3291, %v4110
        %vm4113 = vcmp.eq.f32.partialorder %v3291, 0.0
        %v4114 = vand.u32 %v3291, 2147483648
        %v4115 = vsel %vm4113, %v4114, %v4112
        %v4116 = vrsqrt.pop %v3294
        %v4117 = vmul.f32 %v3294, %v4116
        %vm4118 = vcmp.eq.f32.partialorder %v3294, inf
        %v4119 = vsel %vm4118, %v3294, %v4117
        %vm4120 = vcmp.eq.f32.partialorder %v3294, 0.0
        %v4121 = vand.u32 %v3294, 2147483648
        %v4122 = vsel %vm4120, %v4121, %v4119
        %v4123 = vrsqrt.pop %v3297
        %v4124 = vmul.f32 %v3297, %v4123
        %vm4125 = vcmp.eq.f32.partialorder %v3297, inf
        %v4126 = vsel %vm4125, %v3297, %v4124
        %vm4127 = vcmp.eq.f32.partialorder %v3297, 0.0
        %v4128 = vand.u32 %v3297, 2147483648
        %v4129 = vsel %vm4127, %v4128, %v4126
        %v4130 = vrsqrt.pop %v3300
        %v4131 = vmul.f32 %v3300, %v4130
        %vm4132 = vcmp.eq.f32.partialorder %v3300, inf
        %v4133 = vsel %vm4132, %v3300, %v4131
        %vm4134 = vcmp.eq.f32.partialorder %v3300, 0.0
        %v4135 = vand.u32 %v3300, 2147483648
        %v4136 = vsel %vm4134, %v4135, %v4133
        %v4137 = vrsqrt.pop %v3303
        %v4138 = vmul.f32 %v3303, %v4137
        %vm4139 = vcmp.eq.f32.partialorder %v3303, inf
        %v4140 = vsel %vm4139, %v3303, %v4138
        %vm4141 = vcmp.eq.f32.partialorder %v3303, 0.0
        %v4142 = vand.u32 %v3303, 2147483648
        %v4143 = vsel %vm4141, %v4142, %v4140
        %v4144 = vrsqrt.pop %v3306
        %v4145 = vmul.f32 %v3306, %v4144
        %vm4146 = vcmp.eq.f32.partialorder %v3306, inf
        %v4147 = vsel %vm4146, %v3306, %v4145
        %vm4148 = vcmp.eq.f32.partialorder %v3306, 0.0
        %v4149 = vand.u32 %v3306, 2147483648
        %v4150 = vsel %vm4148, %v4149, %v4147
        %v4151 = vrsqrt.pop %v3309
        %v4152 = vmul.f32 %v3309, %v4151
        %vm4153 = vcmp.eq.f32.partialorder %v3309, inf
        %v4154 = vsel %vm4153, %v3309, %v4152
        %vm4155 = vcmp.eq.f32.partialorder %v3309, 0.0
        %v4156 = vand.u32 %v3309, 2147483648
        %v4157 = vsel %vm4155, %v4156, %v4154
        %v4158 = vrsqrt.pop %v3312
        %v4159 = vmul.f32 %v3312, %v4158
        %vm4160 = vcmp.eq.f32.partialorder %v3312, inf
        %v4161 = vsel %vm4160, %v3312, %v4159
        %vm4162 = vcmp.eq.f32.partialorder %v3312, 0.0
        %v4163 = vand.u32 %v3312, 2147483648
        %v4164 = vsel %vm4162, %v4163, %v4161
        %v4165 = vrsqrt.pop %v3315
        %v4166 = vmul.f32 %v3315, %v4165
        %vm4167 = vcmp.eq.f32.partialorder %v3315, inf
        %v4168 = vsel %vm4167, %v3315, %v4166
        %vm4169 = vcmp.eq.f32.partialorder %v3315, 0.0
        %v4170 = vand.u32 %v3315, 2147483648
        %v4171 = vsel %vm4169, %v4170, %v4168
        %v4172 = vrsqrt.pop %v3318
        %v4173 = vmul.f32 %v3318, %v4172
        %vm4174 = vcmp.eq.f32.partialorder %v3318, inf
        %v4175 = vsel %vm4174, %v3318, %v4173
        %vm4176 = vcmp.eq.f32.partialorder %v3318, 0.0
        %v4177 = vand.u32 %v3318, 2147483648
        %v4178 = vsel %vm4176, %v4177, %v4175
        %v4179 = vrsqrt.pop %v3321
        %v4180 = vmul.f32 %v3321, %v4179
        %vm4181 = vcmp.eq.f32.partialorder %v3321, inf
        %v4182 = vsel %vm4181, %v3321, %v4180
        %vm4183 = vcmp.eq.f32.partialorder %v3321, 0.0
        %v4184 = vand.u32 %v3321, 2147483648
        %v4185 = vsel %vm4183, %v4184, %v4182
        %v4186 = vrsqrt.pop %v3324
        %v4187 = vmul.f32 %v3324, %v4186
        %vm4188 = vcmp.eq.f32.partialorder %v3324, inf
        %v4189 = vsel %vm4188, %v3324, %v4187
        %vm4190 = vcmp.eq.f32.partialorder %v3324, 0.0
        %v4191 = vand.u32 %v3324, 2147483648
        %v4192 = vsel %vm4190, %v4191, %v4189
        %v4193 = vrsqrt.pop %v3327
        %v4194 = vmul.f32 %v3327, %v4193
        %vm4195 = vcmp.eq.f32.partialorder %v3327, inf
        %v4196 = vsel %vm4195, %v3327, %v4194
        %vm4197 = vcmp.eq.f32.partialorder %v3327, 0.0
        %v4198 = vand.u32 %v3327, 2147483648
        %v4199 = vsel %vm4197, %v4198, %v4196
        %v4200 = vrsqrt.pop %v3330
        %v4201 = vmul.f32 %v3330, %v4200
        %vm4202 = vcmp.eq.f32.partialorder %v3330, inf
        %v4203 = vsel %vm4202, %v3330, %v4201
        %vm4204 = vcmp.eq.f32.partialorder %v3330, 0.0
        %v4205 = vand.u32 %v3330, 2147483648
        %v4206 = vsel %vm4204, %v4205, %v4203
        %v4207 = vrsqrt.pop %v3333
        %v4208 = vmul.f32 %v3333, %v4207
        %vm4209 = vcmp.eq.f32.partialorder %v3333, inf
        %v4210 = vsel %vm4209, %v3333, %v4208
        %vm4211 = vcmp.eq.f32.partialorder %v3333, 0.0
        %v4212 = vand.u32 %v3333, 2147483648
        %v4213 = vsel %vm4211, %v4212, %v4210
        %v4214 = vrsqrt.pop %v3336
        %v4215 = vmul.f32 %v3336, %v4214
        %vm4216 = vcmp.eq.f32.partialorder %v3336, inf
        %v4217 = vsel %vm4216, %v3336, %v4215
        %vm4218 = vcmp.eq.f32.partialorder %v3336, 0.0
        %v4219 = vand.u32 %v3336, 2147483648
        %v4220 = vsel %vm4218, %v4219, %v4217
        %v4221 = vrsqrt.pop %v3339
        %v4222 = vmul.f32 %v3339, %v4221
        %vm4223 = vcmp.eq.f32.partialorder %v3339, inf
        %v4224 = vsel %vm4223, %v3339, %v4222
        %vm4225 = vcmp.eq.f32.partialorder %v3339, 0.0
        %v4226 = vand.u32 %v3339, 2147483648
        %v4227 = vsel %vm4225, %v4226, %v4224
        %v4228 = vrsqrt.pop %v3342
        %v4229 = vmul.f32 %v3342, %v4228
        %vm4230 = vcmp.eq.f32.partialorder %v3342, inf
        %v4231 = vsel %vm4230, %v3342, %v4229
        %vm4232 = vcmp.eq.f32.partialorder %v3342, 0.0
        %v4233 = vand.u32 %v3342, 2147483648
        %v4234 = vsel %vm4232, %v4233, %v4231
        %v4235 = vrsqrt.pop %v3345
        %v4236 = vmul.f32 %v3345, %v4235
        %vm4237 = vcmp.eq.f32.partialorder %v3345, inf
        %v4238 = vsel %vm4237, %v3345, %v4236
        %vm4239 = vcmp.eq.f32.partialorder %v3345, 0.0
        %v4240 = vand.u32 %v3345, 2147483648
        %v4241 = vsel %vm4239, %v4240, %v4238
        %v4242 = vxor.u32 %v3352, 2147483648
        %v4243 = vxor.u32 %v3359, 2147483648
        %v4244 = vxor.u32 %v3366, 2147483648
        %v4245 = vxor.u32 %v3373, 2147483648
        %v4246 = vxor.u32 %v3380, 2147483648
        %v4247 = vxor.u32 %v3387, 2147483648
        %v4248 = vxor.u32 %v3394, 2147483648
        %v4249 = vxor.u32 %v3401, 2147483648
        %v4250 = vxor.u32 %v3408, 2147483648
        %v4251 = vxor.u32 %v3415, 2147483648
        %v4252 = vxor.u32 %v3422, 2147483648
        %v4253 = vxor.u32 %v3429, 2147483648
        %v4254 = vxor.u32 %v3436, 2147483648
        %v4255 = vxor.u32 %v3443, 2147483648
        %v4256 = vxor.u32 %v3450, 2147483648
        %v4257 = vxor.u32 %v3457, 2147483648
        %v4258 = vxor.u32 %v3464, 2147483648
        %v4259 = vxor.u32 %v3471, 2147483648
        %v4260 = vxor.u32 %v3478, 2147483648
        %v4261 = vxor.u32 %v3485, 2147483648
        %v4262 = vxor.u32 %v3492, 2147483648
        %v4263 = vxor.u32 %v3499, 2147483648
        %v4264 = vxor.u32 %v3506, 2147483648
        %v4265 = vxor.u32 %v3513, 2147483648
        %v4266 = vxor.u32 %v3520, 2147483648
        %v4267 = vxor.u32 %v3527, 2147483648
        %v4268 = vxor.u32 %v3534, 2147483648
        %v4269 = vxor.u32 %v3541, 2147483648
        %v4270 = vxor.u32 %v3548, 2147483648
        %v4271 = vxor.u32 %v3555, 2147483648
        %v4272 = vxor.u32 %v3562, 2147483648
        %v4273 = vxor.u32 %v3569, 2147483648
        %v4274 = vxor.u32 %v3576, 2147483648
        %v4275 = vxor.u32 %v3583, 2147483648
        %v4276 = vxor.u32 %v3590, 2147483648
        %v4277 = vxor.u32 %v3597, 2147483648
        %v4278 = vxor.u32 %v3604, 2147483648
        %v4279 = vxor.u32 %v3611, 2147483648
        %v4280 = vxor.u32 %v3618, 2147483648
        %v4281 = vxor.u32 %v3625, 2147483648
        %v4282 = vxor.u32 %v3632, 2147483648
        %v4283 = vxor.u32 %v3639, 2147483648
        %v4284 = vxor.u32 %v3646, 2147483648
        %v4285 = vxor.u32 %v3653, 2147483648
        %v4286 = vxor.u32 %v3660, 2147483648
        %v4287 = vxor.u32 %v3667, 2147483648
        %v4288 = vxor.u32 %v3674, 2147483648
        %v4289 = vxor.u32 %v3681, 2147483648
        %v4290 = vxor.u32 %v3688, 2147483648
        %v4291 = vxor.u32 %v3695, 2147483648
        %v4292 = vxor.u32 %v3702, 2147483648
        %v4293 = vxor.u32 %v3709, 2147483648
        %v4294 = vxor.u32 %v3716, 2147483648
        %v4295 = vxor.u32 %v3723, 2147483648
        %v4296 = vxor.u32 %v3730, 2147483648
        %v4297 = vxor.u32 %v3737, 2147483648
        %v4298 = vxor.u32 %v3744, 2147483648
        %v4299 = vxor.u32 %v3751, 2147483648
        %v4300 = vxor.u32 %v3758, 2147483648
        %v4301 = vxor.u32 %v3765, 2147483648
        %v4302 = vxor.u32 %v3772, 2147483648
        %v4303 = vxor.u32 %v3779, 2147483648
        %v4304 = vxor.u32 %v3786, 2147483648
        %v4305 = vxor.u32 %v3793, 2147483648
        %v4306 = vxor.u32 %v3800, 2147483648
        %v4307 = vxor.u32 %v3807, 2147483648
        %v4308 = vxor.u32 %v3814, 2147483648
        %v4309 = vxor.u32 %v3821, 2147483648
        %v4310 = vxor.u32 %v3828, 2147483648
        %v4311 = vxor.u32 %v3835, 2147483648
        %v4312 = vxor.u32 %v3842, 2147483648
        %v4313 = vxor.u32 %v3849, 2147483648
        %v4314 = vxor.u32 %v3856, 2147483648
        %v4315 = vxor.u32 %v3863, 2147483648
        %v4316 = vxor.u32 %v3870, 2147483648
        %v4317 = vxor.u32 %v3877, 2147483648
        %v4318 = vxor.u32 %v3884, 2147483648
        %v4319 = vxor.u32 %v3891, 2147483648
        %v4320 = vxor.u32 %v3898, 2147483648
        %v4321 = vxor.u32 %v3905, 2147483648
        %v4322 = vxor.u32 %v3912, 2147483648
        %v4323 = vxor.u32 %v3919, 2147483648
        %v4324 = vxor.u32 %v3926, 2147483648
        %v4325 = vxor.u32 %v3933, 2147483648
        %v4326 = vxor.u32 %v3940, 2147483648
        %v4327 = vxor.u32 %v3947, 2147483648
        %v4328 = vxor.u32 %v3954, 2147483648
        %v4329 = vxor.u32 %v3961, 2147483648
        %v4330 = vxor.u32 %v3968, 2147483648
        %v4331 = vxor.u32 %v3975, 2147483648
        %v4332 = vxor.u32 %v3982, 2147483648
        %v4333 = vxor.u32 %v3989, 2147483648
        %v4334 = vxor.u32 %v3996, 2147483648
        %v4335 = vxor.u32 %v4003, 2147483648
        %v4336 = vxor.u32 %v4010, 2147483648
        %v4337 = vxor.u32 %v4017, 2147483648
        %v4338 = vxor.u32 %v4024, 2147483648
        %v4339 = vxor.u32 %v4031, 2147483648
        %v4340 = vxor.u32 %v4038, 2147483648
        %v4341 = vxor.u32 %v4045, 2147483648
        %v4342 = vxor.u32 %v4052, 2147483648
        %v4343 = vxor.u32 %v4059, 2147483648
        %v4344 = vxor.u32 %v4066, 2147483648
        %v4345 = vxor.u32 %v4073, 2147483648
        %v4346 = vxor.u32 %v4080, 2147483648
        %v4347 = vxor.u32 %v4087, 2147483648
        %v4348 = vxor.u32 %v4094, 2147483648
        %v4349 = vxor.u32 %v4101, 2147483648
        %v4350 = vxor.u32 %v4108, 2147483648
        %v4351 = vxor.u32 %v4115, 2147483648
        %v4352 = vxor.u32 %v4122, 2147483648
        %v4353 = vxor.u32 %v4129, 2147483648
        %v4354 = vxor.u32 %v4136, 2147483648
        %v4355 = vxor.u32 %v4143, 2147483648
        %v4356 = vxor.u32 %v4150, 2147483648
        %v4357 = vxor.u32 %v4157, 2147483648
        %v4358 = vxor.u32 %v4164, 2147483648
        %v4359 = vxor.u32 %v4171, 2147483648
        %v4360 = vxor.u32 %v4178, 2147483648
        %v4361 = vxor.u32 %v4185, 2147483648
        %v4362 = vxor.u32 %v4192, 2147483648
        %v4363 = vxor.u32 %v4199, 2147483648
        %v4364 = vxor.u32 %v4206, 2147483648
        %v4365 = vxor.u32 %v4213, 2147483648
        %v4366 = vxor.u32 %v4220, 2147483648
        %v4367 = vxor.u32 %v4227, 2147483648
        %v4368 = vxor.u32 %v4234, 2147483648
        %v4369 = vxor.u32 %v4241, 2147483648
        %v4370 = vmul.f32 %v4242, 1.442695
        %v4371 = vpow.pop %v4370
        %v4372 = vmul.f32 %v4243, 1.442695
        %v4373 = vpow.pop %v4372
        %v4374 = vmul.f32 %v4244, 1.442695
        %v4375 = vpow.pop %v4374
        %v4376 = vmul.f32 %v4245, 1.442695
        %v4377 = vpow.pop %v4376
        %v4378 = vmul.f32 %v4246, 1.442695
        %v4379 = vpow.pop %v4378
        %v4380 = vmul.f32 %v4247, 1.442695
        %v4381 = vpow.pop %v4380
        %v4382 = vmul.f32 %v4248, 1.442695
        %v4383 = vpow.pop %v4382
        %v4384 = vmul.f32 %v4249, 1.442695
        %v4385 = vpow.pop %v4384
        %v4386 = vmul.f32 %v4250, 1.442695
        %v4387 = vpow.pop %v4386
        %v4388 = vmul.f32 %v4251, 1.442695
        %v4389 = vpow.pop %v4388
        %v4390 = vmul.f32 %v4252, 1.442695
        %v4391 = vpow.pop %v4390
        %v4392 = vmul.f32 %v4253, 1.442695
        %v4393 = vpow.pop %v4392
        %v4394 = vmul.f32 %v4254, 1.442695
        %v4395 = vpow.pop %v4394
        %v4396 = vmul.f32 %v4255, 1.442695
        %v4397 = vpow.pop %v4396
        %v4398 = vmul.f32 %v4256, 1.442695
        %v4399 = vpow.pop %v4398
        %v4400 = vmul.f32 %v4257, 1.442695
        %v4401 = vpow.pop %v4400
        %v4402 = vmul.f32 %v4258, 1.442695
        %v4403 = vpow.pop %v4402
        %v4404 = vmul.f32 %v4259, 1.442695
        %v4405 = vpow.pop %v4404
        %v4406 = vmul.f32 %v4260, 1.442695
        %v4407 = vpow.pop %v4406
        %v4408 = vmul.f32 %v4261, 1.442695
        %v4409 = vpow.pop %v4408
        %v4410 = vmul.f32 %v4262, 1.442695
        %v4411 = vpow.pop %v4410
        %v4412 = vmul.f32 %v4263, 1.442695
        %v4413 = vpow.pop %v4412
        %v4414 = vmul.f32 %v4264, 1.442695
        %v4415 = vpow.pop %v4414
        %v4416 = vmul.f32 %v4265, 1.442695
        %v4417 = vpow.pop %v4416
        %v4418 = vmul.f32 %v4266, 1.442695
        %v4419 = vpow.pop %v4418
        %v4420 = vmul.f32 %v4267, 1.442695
        %v4421 = vpow.pop %v4420
        %v4422 = vmul.f32 %v4268, 1.442695
        %v4423 = vpow.pop %v4422
        %v4424 = vmul.f32 %v4269, 1.442695
        %v4425 = vpow.pop %v4424
        %v4426 = vmul.f32 %v4270, 1.442695
        %v4427 = vpow.pop %v4426
        %v4428 = vmul.f32 %v4271, 1.442695
        %v4429 = vpow.pop %v4428
        %v4430 = vmul.f32 %v4272, 1.442695
        %v4431 = vpow.pop %v4430
        %v4432 = vmul.f32 %v4273, 1.442695
        %v4433 = vpow.pop %v4432
        %v4434 = vmul.f32 %v4274, 1.442695
        %v4435 = vpow.pop %v4434
        %v4436 = vmul.f32 %v4275, 1.442695
        %v4437 = vpow.pop %v4436
        %v4438 = vmul.f32 %v4276, 1.442695
        %v4439 = vpow.pop %v4438
        %v4440 = vmul.f32 %v4277, 1.442695
        %v4441 = vpow.pop %v4440
        %v4442 = vmul.f32 %v4278, 1.442695
        %v4443 = vpow.pop %v4442
        %v4444 = vmul.f32 %v4279, 1.442695
        %v4445 = vpow.pop %v4444
        %v4446 = vmul.f32 %v4280, 1.442695
        %v4447 = vpow.pop %v4446
        %v4448 = vmul.f32 %v4281, 1.442695
        %v4449 = vpow.pop %v4448
        %v4450 = vmul.f32 %v4282, 1.442695
        %v4451 = vpow.pop %v4450
        %v4452 = vmul.f32 %v4283, 1.442695
        %v4453 = vpow.pop %v4452
        %v4454 = vmul.f32 %v4284, 1.442695
        %v4455 = vpow.pop %v4454
        %v4456 = vmul.f32 %v4285, 1.442695
        %v4457 = vpow.pop %v4456
        %v4458 = vmul.f32 %v4286, 1.442695
        %v4459 = vpow.pop %v4458
        %v4460 = vmul.f32 %v4287, 1.442695
        %v4461 = vpow.pop %v4460
        %v4462 = vmul.f32 %v4288, 1.442695
        %v4463 = vpow.pop %v4462
        %v4464 = vmul.f32 %v4289, 1.442695
        %v4465 = vpow.pop %v4464
        %v4466 = vmul.f32 %v4290, 1.442695
        %v4467 = vpow.pop %v4466
        %v4468 = vmul.f32 %v4291, 1.442695
        %v4469 = vpow.pop %v4468
        %v4470 = vmul.f32 %v4292, 1.442695
        %v4471 = vpow.pop %v4470
        %v4472 = vmul.f32 %v4293, 1.442695
        %v4473 = vpow.pop %v4472
        %v4474 = vmul.f32 %v4294, 1.442695
        %v4475 = vpow.pop %v4474
        %v4476 = vmul.f32 %v4295, 1.442695
        %v4477 = vpow.pop %v4476
        %v4478 = vmul.f32 %v4296, 1.442695
        %v4479 = vpow.pop %v4478
        %v4480 = vmul.f32 %v4297, 1.442695
        %v4481 = vpow.pop %v4480
        %v4482 = vmul.f32 %v4298, 1.442695
        %v4483 = vpow.pop %v4482
        %v4484 = vmul.f32 %v4299, 1.442695
        %v4485 = vpow.pop %v4484
        %v4486 = vmul.f32 %v4300, 1.442695
        %v4487 = vpow.pop %v4486
        %v4488 = vmul.f32 %v4301, 1.442695
        %v4489 = vpow.pop %v4488
        %v4490 = vmul.f32 %v4302, 1.442695
        %v4491 = vpow.pop %v4490
        %v4492 = vmul.f32 %v4303, 1.442695
        %v4493 = vpow.pop %v4492
        %v4494 = vmul.f32 %v4304, 1.442695
        %v4495 = vpow.pop %v4494
        %v4496 = vmul.f32 %v4305, 1.442695
        %v4497 = vpow.pop %v4496
        %v4498 = vmul.f32 %v4306, 1.442695
        %v4499 = vpow.pop %v4498
        %v4500 = vmul.f32 %v4307, 1.442695
        %v4501 = vpow.pop %v4500
        %v4502 = vmul.f32 %v4308, 1.442695
        %v4503 = vpow.pop %v4502
        %v4504 = vmul.f32 %v4309, 1.442695
        %v4505 = vpow.pop %v4504
        %v4506 = vmul.f32 %v4310, 1.442695
        %v4507 = vpow.pop %v4506
        %v4508 = vmul.f32 %v4311, 1.442695
        %v4509 = vpow.pop %v4508
        %v4510 = vmul.f32 %v4312, 1.442695
        %v4511 = vpow.pop %v4510
        %v4512 = vmul.f32 %v4313, 1.442695
        %v4513 = vpow.pop %v4512
        %v4514 = vmul.f32 %v4314, 1.442695
        %v4515 = vpow.pop %v4514
        %v4516 = vmul.f32 %v4315, 1.442695
        %v4517 = vpow.pop %v4516
        %v4518 = vmul.f32 %v4316, 1.442695
        %v4519 = vpow.pop %v4518
        %v4520 = vmul.f32 %v4317, 1.442695
        %v4521 = vpow.pop %v4520
        %v4522 = vmul.f32 %v4318, 1.442695
        %v4523 = vpow.pop %v4522
        %v4524 = vmul.f32 %v4319, 1.442695
        %v4525 = vpow.pop %v4524
        %v4526 = vmul.f32 %v4320, 1.442695
        %v4527 = vpow.pop %v4526
        %v4528 = vmul.f32 %v4321, 1.442695
        %v4529 = vpow.pop %v4528
        %v4530 = vmul.f32 %v4322, 1.442695
        %v4531 = vpow.pop %v4530
        %v4532 = vmul.f32 %v4323, 1.442695
        %v4533 = vpow.pop %v4532
        %v4534 = vmul.f32 %v4324, 1.442695
        %v4535 = vpow.pop %v4534
        %v4536 = vmul.f32 %v4325, 1.442695
        %v4537 = vpow.pop %v4536
        %v4538 = vmul.f32 %v4326, 1.442695
        %v4539 = vpow.pop %v4538
        %v4540 = vmul.f32 %v4327, 1.442695
        %v4541 = vpow.pop %v4540
        %v4542 = vmul.f32 %v4328, 1.442695
        %v4543 = vpow.pop %v4542
        %v4544 = vmul.f32 %v4329, 1.442695
        %v4545 = vpow.pop %v4544
        %v4546 = vmul.f32 %v4330, 1.442695
        %v4547 = vpow.pop %v4546
        %v4548 = vmul.f32 %v4331, 1.442695
        %v4549 = vpow.pop %v4548
        %v4550 = vmul.f32 %v4332, 1.442695
        %v4551 = vpow.pop %v4550
        %v4552 = vmul.f32 %v4333, 1.442695
        %v4553 = vpow.pop %v4552
        %v4554 = vmul.f32 %v4334, 1.442695
        %v4555 = vpow.pop %v4554
        %v4556 = vmul.f32 %v4335, 1.442695
        %v4557 = vpow.pop %v4556
        %v4558 = vmul.f32 %v4336, 1.442695
        %v4559 = vpow.pop %v4558
        %v4560 = vmul.f32 %v4337, 1.442695
        %v4561 = vpow.pop %v4560
        %v4562 = vmul.f32 %v4338, 1.442695
        %v4563 = vpow.pop %v4562
        %v4564 = vmul.f32 %v4339, 1.442695
        %v4565 = vpow.pop %v4564
        %v4566 = vmul.f32 %v4340, 1.442695
        %v4567 = vpow.pop %v4566
        %v4568 = vmul.f32 %v4341, 1.442695
        %v4569 = vpow.pop %v4568
        %v4570 = vmul.f32 %v4342, 1.442695
        %v4571 = vpow.pop %v4570
        %v4572 = vmul.f32 %v4343, 1.442695
        %v4573 = vpow.pop %v4572
        %v4574 = vmul.f32 %v4344, 1.442695
        %v4575 = vpow.pop %v4574
        %v4576 = vmul.f32 %v4345, 1.442695
        %v4577 = vpow.pop %v4576
        %v4578 = vmul.f32 %v4346, 1.442695
        %v4579 = vpow.pop %v4578
        %v4580 = vmul.f32 %v4347, 1.442695
        %v4581 = vpow.pop %v4580
        %v4582 = vmul.f32 %v4348, 1.442695
        %v4583 = vpow.pop %v4582
        %v4584 = vmul.f32 %v4349, 1.442695
        %v4585 = vpow.pop %v4584
        %v4586 = vmul.f32 %v4350, 1.442695
        %v4587 = vpow.pop %v4586
        %v4588 = vmul.f32 %v4351, 1.442695
        %v4589 = vpow.pop %v4588
        %v4590 = vmul.f32 %v4352, 1.442695
        %v4591 = vpow.pop %v4590
        %v4592 = vmul.f32 %v4353, 1.442695
        %v4593 = vpow.pop %v4592
        %v4594 = vmul.f32 %v4354, 1.442695
        %v4595 = vpow.pop %v4594
        %v4596 = vmul.f32 %v4355, 1.442695
        %v4597 = vpow.pop %v4596
        %v4598 = vmul.f32 %v4356, 1.442695
        %v4599 = vpow.pop %v4598
        %v4600 = vmul.f32 %v4357, 1.442695
        %v4601 = vpow.pop %v4600
        %v4602 = vmul.f32 %v4358, 1.442695
        %v4603 = vpow.pop %v4602
        %v4604 = vmul.f32 %v4359, 1.442695
        %v4605 = vpow.pop %v4604
        %v4606 = vmul.f32 %v4360, 1.442695
        %v4607 = vpow.pop %v4606
        %v4608 = vmul.f32 %v4361, 1.442695
        %v4609 = vpow.pop %v4608
        %v4610 = vmul.f32 %v4362, 1.442695
        %v4611 = vpow.pop %v4610
        %v4612 = vmul.f32 %v4363, 1.442695
        %v4613 = vpow.pop %v4612
        %v4614 = vmul.f32 %v4364, 1.442695
        %v4615 = vpow.pop %v4614
        %v4616 = vmul.f32 %v4365, 1.442695
        %v4617 = vpow.pop %v4616
        %v4618 = vmul.f32 %v4366, 1.442695
        %v4619 = vpow.pop %v4618
        %v4620 = vmul.f32 %v4367, 1.442695
        %v4621 = vpow.pop %v4620
        %v4622 = vmul.f32 %v4368, 1.442695
        %v4623 = vpow.pop %v4622
        %v4624 = vmul.f32 %v4369, 1.442695
        %v4625 = vpow.pop %v4624
        %v4626 = vadd.f32 %v4371, 1.0
        %v4627 = vadd.f32 %v4373, 1.0
        %v4628 = vadd.f32 %v4375, 1.0
        %v4629 = vadd.f32 %v4377, 1.0
        %v4630 = vadd.f32 %v4379, 1.0
        %v4631 = vadd.f32 %v4381, 1.0
        %v4632 = vadd.f32 %v4383, 1.0
        %v4633 = vadd.f32 %v4385, 1.0
        %v4634 = vadd.f32 %v4387, 1.0
        %v4635 = vadd.f32 %v4389, 1.0
        %v4636 = vadd.f32 %v4391, 1.0
        %v4637 = vadd.f32 %v4393, 1.0
        %v4638 = vadd.f32 %v4395, 1.0
        %v4639 = vadd.f32 %v4397, 1.0
        %v4640 = vadd.f32 %v4399, 1.0
        %v4641 = vadd.f32 %v4401, 1.0
        %v4642 = vadd.f32 %v4403, 1.0
        %v4643 = vadd.f32 %v4405, 1.0
        %v4644 = vadd.f32 %v4407, 1.0
        %v4645 = vadd.f32 %v4409, 1.0
        %v4646 = vadd.f32 %v4411, 1.0
        %v4647 = vadd.f32 %v4413, 1.0
        %v4648 = vadd.f32 %v4415, 1.0
        %v4649 = vadd.f32 %v4417, 1.0
        %v4650 = vadd.f32 %v4419, 1.0
        %v4651 = vadd.f32 %v4421, 1.0
        %v4652 = vadd.f32 %v4423, 1.0
        %v4653 = vadd.f32 %v4425, 1.0
        %v4654 = vadd.f32 %v4427, 1.0
        %v4655 = vadd.f32 %v4429, 1.0
        %v4656 = vadd.f32 %v4431, 1.0
        %v4657 = vadd.f32 %v4433, 1.0
        %v4658 = vadd.f32 %v4435, 1.0
        %v4659 = vadd.f32 %v4437, 1.0
        %v4660 = vadd.f32 %v4439, 1.0
        %v4661 = vadd.f32 %v4441, 1.0
        %v4662 = vadd.f32 %v4443, 1.0
        %v4663 = vadd.f32 %v4445, 1.0
        %v4664 = vadd.f32 %v4447, 1.0
        %v4665 = vadd.f32 %v4449, 1.0
        %v4666 = vadd.f32 %v4451, 1.0
        %v4667 = vadd.f32 %v4453, 1.0
        %v4668 = vadd.f32 %v4455, 1.0
        %v4669 = vadd.f32 %v4457, 1.0
        %v4670 = vadd.f32 %v4459, 1.0
        %v4671 = vadd.f32 %v4461, 1.0
        %v4672 = vadd.f32 %v4463, 1.0
        %v4673 = vadd.f32 %v4465, 1.0
        %v4674 = vadd.f32 %v4467, 1.0
        %v4675 = vadd.f32 %v4469, 1.0
        %v4676 = vadd.f32 %v4471, 1.0
        %v4677 = vadd.f32 %v4473, 1.0
        %v4678 = vadd.f32 %v4475, 1.0
        %v4679 = vadd.f32 %v4477, 1.0
        %v4680 = vadd.f32 %v4479, 1.0
        %v4681 = vadd.f32 %v4481, 1.0
        %v4682 = vadd.f32 %v4483, 1.0
        %v4683 = vadd.f32 %v4485, 1.0
        %v4684 = vadd.f32 %v4487, 1.0
        %v4685 = vadd.f32 %v4489, 1.0
        %v4686 = vadd.f32 %v4491, 1.0
        %v4687 = vadd.f32 %v4493, 1.0
        %v4688 = vadd.f32 %v4495, 1.0
        %v4689 = vadd.f32 %v4497, 1.0
        %v4690 = vadd.f32 %v4499, 1.0
        %v4691 = vadd.f32 %v4501, 1.0
        %v4692 = vadd.f32 %v4503, 1.0
        %v4693 = vadd.f32 %v4505, 1.0
        %v4694 = vadd.f32 %v4507, 1.0
        %v4695 = vadd.f32 %v4509, 1.0
        %v4696 = vadd.f32 %v4511, 1.0
        %v4697 = vadd.f32 %v4513, 1.0
        %v4698 = vadd.f32 %v4515, 1.0
        %v4699 = vadd.f32 %v4517, 1.0
        %v4700 = vadd.f32 %v4519, 1.0
        %v4701 = vadd.f32 %v4521, 1.0
        %v4702 = vadd.f32 %v4523, 1.0
        %v4703 = vadd.f32 %v4525, 1.0
        %v4704 = vadd.f32 %v4527, 1.0
        %v4705 = vadd.f32 %v4529, 1.0
        %v4706 = vadd.f32 %v4531, 1.0
        %v4707 = vadd.f32 %v4533, 1.0
        %v4708 = vadd.f32 %v4535, 1.0
        %v4709 = vadd.f32 %v4537, 1.0
        %v4710 = vadd.f32 %v4539, 1.0
        %v4711 = vadd.f32 %v4541, 1.0
        %v4712 = vadd.f32 %v4543, 1.0
        %v4713 = vadd.f32 %v4545, 1.0
        %v4714 = vadd.f32 %v4547, 1.0
        %v4715 = vadd.f32 %v4549, 1.0
        %v4716 = vadd.f32 %v4551, 1.0
        %v4717 = vadd.f32 %v4553, 1.0
        %v4718 = vadd.f32 %v4555, 1.0
        %v4719 = vadd.f32 %v4557, 1.0
        %v4720 = vadd.f32 %v4559, 1.0
        %v4721 = vadd.f32 %v4561, 1.0
        %v4722 = vadd.f32 %v4563, 1.0
        %v4723 = vadd.f32 %v4565, 1.0
        %v4724 = vadd.f32 %v4567, 1.0
        %v4725 = vadd.f32 %v4569, 1.0
        %v4726 = vadd.f32 %v4571, 1.0
        %v4727 = vadd.f32 %v4573, 1.0
        %v4728 = vadd.f32 %v4575, 1.0
        %v4729 = vadd.f32 %v4577, 1.0
        %v4730 = vadd.f32 %v4579, 1.0
        %v4731 = vadd.f32 %v4581, 1.0
        %v4732 = vadd.f32 %v4583, 1.0
        %v4733 = vadd.f32 %v4585, 1.0
        %v4734 = vadd.f32 %v4587, 1.0
        %v4735 = vadd.f32 %v4589, 1.0
        %v4736 = vadd.f32 %v4591, 1.0
        %v4737 = vadd.f32 %v4593, 1.0
        %v4738 = vadd.f32 %v4595, 1.0
        %v4739 = vadd.f32 %v4597, 1.0
        %v4740 = vadd.f32 %v4599, 1.0
        %v4741 = vadd.f32 %v4601, 1.0
        %v4742 = vadd.f32 %v4603, 1.0
        %v4743 = vadd.f32 %v4605, 1.0
        %v4744 = vadd.f32 %v4607, 1.0
        %v4745 = vadd.f32 %v4609, 1.0
        %v4746 = vadd.f32 %v4611, 1.0
        %v4747 = vadd.f32 %v4613, 1.0
        %v4748 = vadd.f32 %v4615, 1.0
        %v4749 = vadd.f32 %v4617, 1.0
        %v4750 = vadd.f32 %v4619, 1.0
        %v4751 = vadd.f32 %v4621, 1.0
        %v4752 = vadd.f32 %v4623, 1.0
        %v4753 = vadd.f32 %v4625, 1.0
        %v4754 = vrcp.pop %v4626
        %v4755 = vmul.f32 1.0, %v4754
        %v4756 = vrcp.pop %v4627
        %v4757 = vmul.f32 1.0, %v4756
        %v4758 = vrcp.pop %v4628
        %v4759 = vmul.f32 1.0, %v4758
        %v4760 = vrcp.pop %v4629
        %v4761 = vmul.f32 1.0, %v4760
        %v4762 = vrcp.pop %v4630
        %v4763 = vmul.f32 1.0, %v4762
        %v4764 = vrcp.pop %v4631
        %v4765 = vmul.f32 1.0, %v4764
        %v4766 = vrcp.pop %v4632
        %v4767 = vmul.f32 1.0, %v4766
        %v4768 = vrcp.pop %v4633
        %v4769 = vmul.f32 1.0, %v4768
        %v4770 = vrcp.pop %v4634
        %v4771 = vmul.f32 1.0, %v4770
        %v4772 = vrcp.pop %v4635
        %v4773 = vmul.f32 1.0, %v4772
        %v4774 = vrcp.pop %v4636
        %v4775 = vmul.f32 1.0, %v4774
        %v4776 = vrcp.pop %v4637
        %v4777 = vmul.f32 1.0, %v4776
        %v4778 = vrcp.pop %v4638
        %v4779 = vmul.f32 1.0, %v4778
        %v4780 = vrcp.pop %v4639
        %v4781 = vmul.f32 1.0, %v4780
        %v4782 = vrcp.pop %v4640
        %v4783 = vmul.f32 1.0, %v4782
        %v4784 = vrcp.pop %v4641
        %v4785 = vmul.f32 1.0, %v4784
        %v4786 = vrcp.pop %v4642
        %v4787 = vmul.f32 1.0, %v4786
        %v4788 = vrcp.pop %v4643
        %v4789 = vmul.f32 1.0, %v4788
        %v4790 = vrcp.pop %v4644
        %v4791 = vmul.f32 1.0, %v4790
        %v4792 = vrcp.pop %v4645
        %v4793 = vmul.f32 1.0, %v4792
        %v4794 = vrcp.pop %v4646
        %v4795 = vmul.f32 1.0, %v4794
        %v4796 = vrcp.pop %v4647
        %v4797 = vmul.f32 1.0, %v4796
        %v4798 = vrcp.pop %v4648
        %v4799 = vmul.f32 1.0, %v4798
        %v4800 = vrcp.pop %v4649
        %v4801 = vmul.f32 1.0, %v4800
        %v4802 = vrcp.pop %v4650
        %v4803 = vmul.f32 1.0, %v4802
        %v4804 = vrcp.pop %v4651
        %v4805 = vmul.f32 1.0, %v4804
        %v4806 = vrcp.pop %v4652
        %v4807 = vmul.f32 1.0, %v4806
        %v4808 = vrcp.pop %v4653
        %v4809 = vmul.f32 1.0, %v4808
        %v4810 = vrcp.pop %v4654
        %v4811 = vmul.f32 1.0, %v4810
        %v4812 = vrcp.pop %v4655
        %v4813 = vmul.f32 1.0, %v4812
        %v4814 = vrcp.pop %v4656
        %v4815 = vmul.f32 1.0, %v4814
        %v4816 = vrcp.pop %v4657
        %v4817 = vmul.f32 1.0, %v4816
        %v4818 = vrcp.pop %v4658
        %v4819 = vmul.f32 1.0, %v4818
        %v4820 = vrcp.pop %v4659
        %v4821 = vmul.f32 1.0, %v4820
        %v4822 = vrcp.pop %v4660
        %v4823 = vmul.f32 1.0, %v4822
        %v4824 = vrcp.pop %v4661
        %v4825 = vmul.f32 1.0, %v4824
        %v4826 = vrcp.pop %v4662
        %v4827 = vmul.f32 1.0, %v4826
        %v4828 = vrcp.pop %v4663
        %v4829 = vmul.f32 1.0, %v4828
        %v4830 = vrcp.pop %v4664
        %v4831 = vmul.f32 1.0, %v4830
        %v4832 = vrcp.pop %v4665
        %v4833 = vmul.f32 1.0, %v4832
        %v4834 = vrcp.pop %v4666
        %v4835 = vmul.f32 1.0, %v4834
        %v4836 = vrcp.pop %v4667
        %v4837 = vmul.f32 1.0, %v4836
        %v4838 = vrcp.pop %v4668
        %v4839 = vmul.f32 1.0, %v4838
        %v4840 = vrcp.pop %v4669
        %v4841 = vmul.f32 1.0, %v4840
        %v4842 = vrcp.pop %v4670
        %v4843 = vmul.f32 1.0, %v4842
        %v4844 = vrcp.pop %v4671
        %v4845 = vmul.f32 1.0, %v4844
        %v4846 = vrcp.pop %v4672
        %v4847 = vmul.f32 1.0, %v4846
        %v4848 = vrcp.pop %v4673
        %v4849 = vmul.f32 1.0, %v4848
        %v4850 = vrcp.pop %v4674
        %v4851 = vmul.f32 1.0, %v4850
        %v4852 = vrcp.pop %v4675
        %v4853 = vmul.f32 1.0, %v4852
        %v4854 = vrcp.pop %v4676
        %v4855 = vmul.f32 1.0, %v4854
        %v4856 = vrcp.pop %v4677
        %v4857 = vmul.f32 1.0, %v4856
        %v4858 = vrcp.pop %v4678
        %v4859 = vmul.f32 1.0, %v4858
        %v4860 = vrcp.pop %v4679
        %v4861 = vmul.f32 1.0, %v4860
        %v4862 = vrcp.pop %v4680
        %v4863 = vmul.f32 1.0, %v4862
        %v4864 = vrcp.pop %v4681
        %v4865 = vmul.f32 1.0, %v4864
        %v4866 = vrcp.pop %v4682
        %v4867 = vmul.f32 1.0, %v4866
        %v4868 = vrcp.pop %v4683
        %v4869 = vmul.f32 1.0, %v4868
        %v4870 = vrcp.pop %v4684
        %v4871 = vmul.f32 1.0, %v4870
        %v4872 = vrcp.pop %v4685
        %v4873 = vmul.f32 1.0, %v4872
        %v4874 = vrcp.pop %v4686
        %v4875 = vmul.f32 1.0, %v4874
        %v4876 = vrcp.pop %v4687
        %v4877 = vmul.f32 1.0, %v4876
        %v4878 = vrcp.pop %v4688
        %v4879 = vmul.f32 1.0, %v4878
        %v4880 = vrcp.pop %v4689
        %v4881 = vmul.f32 1.0, %v4880
        %v4882 = vrcp.pop %v4690
        %v4883 = vmul.f32 1.0, %v4882
        %v4884 = vrcp.pop %v4691
        %v4885 = vmul.f32 1.0, %v4884
        %v4886 = vrcp.pop %v4692
        %v4887 = vmul.f32 1.0, %v4886
        %v4888 = vrcp.pop %v4693
        %v4889 = vmul.f32 1.0, %v4888
        %v4890 = vrcp.pop %v4694
        %v4891 = vmul.f32 1.0, %v4890
        %v4892 = vrcp.pop %v4695
        %v4893 = vmul.f32 1.0, %v4892
        %v4894 = vrcp.pop %v4696
        %v4895 = vmul.f32 1.0, %v4894
        %v4896 = vrcp.pop %v4697
        %v4897 = vmul.f32 1.0, %v4896
        %v4898 = vrcp.pop %v4698
        %v4899 = vmul.f32 1.0, %v4898
        %v4900 = vrcp.pop %v4699
        %v4901 = vmul.f32 1.0, %v4900
        %v4902 = vrcp.pop %v4700
        %v4903 = vmul.f32 1.0, %v4902
        %v4904 = vrcp.pop %v4701
        %v4905 = vmul.f32 1.0, %v4904
        %v4906 = vrcp.pop %v4702
        %v4907 = vmul.f32 1.0, %v4906
        %v4908 = vrcp.pop %v4703
        %v4909 = vmul.f32 1.0, %v4908
        %v4910 = vrcp.pop %v4704
        %v4911 = vmul.f32 1.0, %v4910
        %v4912 = vrcp.pop %v4705
        %v4913 = vmul.f32 1.0, %v4912
        %v4914 = vrcp.pop %v4706
        %v4915 = vmul.f32 1.0, %v4914
        %v4916 = vrcp.pop %v4707
        %v4917 = vmul.f32 1.0, %v4916
        %v4918 = vrcp.pop %v4708
        %v4919 = vmul.f32 1.0, %v4918
        %v4920 = vrcp.pop %v4709
        %v4921 = vmul.f32 1.0, %v4920
        %v4922 = vrcp.pop %v4710
        %v4923 = vmul.f32 1.0, %v4922
        %v4924 = vrcp.pop %v4711
        %v4925 = vmul.f32 1.0, %v4924
        %v4926 = vrcp.pop %v4712
        %v4927 = vmul.f32 1.0, %v4926
        %v4928 = vrcp.pop %v4713
        %v4929 = vmul.f32 1.0, %v4928
        %v4930 = vrcp.pop %v4714
        %v4931 = vmul.f32 1.0, %v4930
        %v4932 = vrcp.pop %v4715
        %v4933 = vmul.f32 1.0, %v4932
        %v4934 = vrcp.pop %v4716
        %v4935 = vmul.f32 1.0, %v4934
        %v4936 = vrcp.pop %v4717
        %v4937 = vmul.f32 1.0, %v4936
        %v4938 = vrcp.pop %v4718
        %v4939 = vmul.f32 1.0, %v4938
        %v4940 = vrcp.pop %v4719
        %v4941 = vmul.f32 1.0, %v4940
        %v4942 = vrcp.pop %v4720
        %v4943 = vmul.f32 1.0, %v4942
        %v4944 = vrcp.pop %v4721
        %v4945 = vmul.f32 1.0, %v4944
        %v4946 = vrcp.pop %v4722
        %v4947 = vmul.f32 1.0, %v4946
        %v4948 = vrcp.pop %v4723
        %v4949 = vmul.f32 1.0, %v4948
        %v4950 = vrcp.pop %v4724
        %v4951 = vmul.f32 1.0, %v4950
        %v4952 = vrcp.pop %v4725
        %v4953 = vmul.f32 1.0, %v4952
        %v4954 = vrcp.pop %v4726
        %v4955 = vmul.f32 1.0, %v4954
        %v4956 = vrcp.pop %v4727
        %v4957 = vmul.f32 1.0, %v4956
        %v4958 = vrcp.pop %v4728
        %v4959 = vmul.f32 1.0, %v4958
        %v4960 = vrcp.pop %v4729
        %v4961 = vmul.f32 1.0, %v4960
        %v4962 = vrcp.pop %v4730
        %v4963 = vmul.f32 1.0, %v4962
        %v4964 = vrcp.pop %v4731
        %v4965 = vmul.f32 1.0, %v4964
        %v4966 = vrcp.pop %v4732
        %v4967 = vmul.f32 1.0, %v4966
        %v4968 = vrcp.pop %v4733
        %v4969 = vmul.f32 1.0, %v4968
        %v4970 = vrcp.pop %v4734
        %v4971 = vmul.f32 1.0, %v4970
        %v4972 = vrcp.pop %v4735
        %v4973 = vmul.f32 1.0, %v4972
        %v4974 = vrcp.pop %v4736
        %v4975 = vmul.f32 1.0, %v4974
        %v4976 = vrcp.pop %v4737
        %v4977 = vmul.f32 1.0, %v4976
        %v4978 = vrcp.pop %v4738
        %v4979 = vmul.f32 1.0, %v4978
        %v4980 = vrcp.pop %v4739
        %v4981 = vmul.f32 1.0, %v4980
        %v4982 = vrcp.pop %v4740
        %v4983 = vmul.f32 1.0, %v4982
        %v4984 = vrcp.pop %v4741
        %v4985 = vmul.f32 1.0, %v4984
        %v4986 = vrcp.pop %v4742
        %v4987 = vmul.f32 1.0, %v4986
        %v4988 = vrcp.pop %v4743
        %v4989 = vmul.f32 1.0, %v4988
        %v4990 = vrcp.pop %v4744
        %v4991 = vmul.f32 1.0, %v4990
        %v4992 = vrcp.pop %v4745
        %v4993 = vmul.f32 1.0, %v4992
        %v4994 = vrcp.pop %v4746
        %v4995 = vmul.f32 1.0, %v4994
        %v4996 = vrcp.pop %v4747
        %v4997 = vmul.f32 1.0, %v4996
        %v4998 = vrcp.pop %v4748
        %v4999 = vmul.f32 1.0, %v4998
        %v5000 = vrcp.pop %v4749
        %v5001 = vmul.f32 1.0, %v5000
        %v5002 = vrcp.pop %v4750
        %v5003 = vmul.f32 1.0, %v5002
        %v5004 = vrcp.pop %v4751
        %v5005 = vmul.f32 1.0, %v5004
        %v5006 = vrcp.pop %v4752
        %v5007 = vmul.f32 1.0, %v5006
        %v5008 = vrcp.pop %v4753
        %v5009 = vmul.f32 1.0, %v5008
        %v5010 = vmul.f32 %v4755, %v2577
        %v5011 = vmul.f32 %v4757, %v2578
        %v5012 = vmul.f32 %v4759, %v2579
        %v5013 = vmul.f32 %v4761, %v2580
        %v5014 = vmul.f32 %v4763, %v2581
        %v5015 = vmul.f32 %v4765, %v2582
        %v5016 = vmul.f32 %v4767, %v2583
        %v5017 = vmul.f32 %v4769, %v2584
        %v5018 = vmul.f32 %v4771, %v2585
        %v5019 = vmul.f32 %v4773, %v2586
        %v5020 = vmul.f32 %v4775, %v2587
        %v5021 = vmul.f32 %v4777, %v2588
        %v5022 = vmul.f32 %v4779, %v2589
        %v5023 = vmul.f32 %v4781, %v2590
        %v5024 = vmul.f32 %v4783, %v2591
        %v5025 = vmul.f32 %v4785, %v2592
        %v5026 = vmul.f32 %v4787, %v2593
        %v5027 = vmul.f32 %v4789, %v2594
        %v5028 = vmul.f32 %v4791, %v2595
        %v5029 = vmul.f32 %v4793, %v2596
        %v5030 = vmul.f32 %v4795, %v2597
        %v5031 = vmul.f32 %v4797, %v2598
        %v5032 = vmul.f32 %v4799, %v2599
        %v5033 = vmul.f32 %v4801, %v2600
        %v5034 = vmul.f32 %v4803, %v2601
        %v5035 = vmul.f32 %v4805, %v2602
        %v5036 = vmul.f32 %v4807, %v2603
        %v5037 = vmul.f32 %v4809, %v2604
        %v5038 = vmul.f32 %v4811, %v2605
        %v5039 = vmul.f32 %v4813, %v2606
        %v5040 = vmul.f32 %v4815, %v2607
        %v5041 = vmul.f32 %v4817, %v2608
        %v5042 = vmul.f32 %v4819, %v2609
        %v5043 = vmul.f32 %v4821, %v2610
        %v5044 = vmul.f32 %v4823, %v2611
        %v5045 = vmul.f32 %v4825, %v2612
        %v5046 = vmul.f32 %v4827, %v2613
        %v5047 = vmul.f32 %v4829, %v2614
        %v5048 = vmul.f32 %v4831, %v2615
        %v5049 = vmul.f32 %v4833, %v2616
        %v5050 = vmul.f32 %v4835, %v2617
        %v5051 = vmul.f32 %v4837, %v2618
        %v5052 = vmul.f32 %v4839, %v2619
        %v5053 = vmul.f32 %v4841, %v2620
        %v5054 = vmul.f32 %v4843, %v2621
        %v5055 = vmul.f32 %v4845, %v2622
        %v5056 = vmul.f32 %v4847, %v2623
        %v5057 = vmul.f32 %v4849, %v2624
        %v5058 = vmul.f32 %v4851, %v2625
        %v5059 = vmul.f32 %v4853, %v2626
        %v5060 = vmul.f32 %v4855, %v2627
        %v5061 = vmul.f32 %v4857, %v2628
        %v5062 = vmul.f32 %v4859, %v2629
        %v5063 = vmul.f32 %v4861, %v2630
        %v5064 = vmul.f32 %v4863, %v2631
        %v5065 = vmul.f32 %v4865, %v2632
        %v5066 = vmul.f32 %v4867, %v2633
        %v5067 = vmul.f32 %v4869, %v2634
        %v5068 = vmul.f32 %v4871, %v2635
        %v5069 = vmul.f32 %v4873, %v2636
        %v5070 = vmul.f32 %v4875, %v2637
        %v5071 = vmul.f32 %v4877, %v2638
        %v5072 = vmul.f32 %v4879, %v2639
        %v5073 = vmul.f32 %v4881, %v2640
        %v5074 = vmul.f32 %v4883, %v2641
        %v5075 = vmul.f32 %v4885, %v2642
        %v5076 = vmul.f32 %v4887, %v2643
        %v5077 = vmul.f32 %v4889, %v2644
        %v5078 = vmul.f32 %v4891, %v2645
        %v5079 = vmul.f32 %v4893, %v2646
        %v5080 = vmul.f32 %v4895, %v2647
        %v5081 = vmul.f32 %v4897, %v2648
        %v5082 = vmul.f32 %v4899, %v2649
        %v5083 = vmul.f32 %v4901, %v2650
        %v5084 = vmul.f32 %v4903, %v2651
        %v5085 = vmul.f32 %v4905, %v2652
        %v5086 = vmul.f32 %v4907, %v2653
        %v5087 = vmul.f32 %v4909, %v2654
        %v5088 = vmul.f32 %v4911, %v2655
        %v5089 = vmul.f32 %v4913, %v2656
        %v5090 = vmul.f32 %v4915, %v2657
        %v5091 = vmul.f32 %v4917, %v2658
        %v5092 = vmul.f32 %v4919, %v2659
        %v5093 = vmul.f32 %v4921, %v2660
        %v5094 = vmul.f32 %v4923, %v2661
        %v5095 = vmul.f32 %v4925, %v2662
        %v5096 = vmul.f32 %v4927, %v2663
        %v5097 = vmul.f32 %v4929, %v2664
        %v5098 = vmul.f32 %v4931, %v2665
        %v5099 = vmul.f32 %v4933, %v2666
        %v5100 = vmul.f32 %v4935, %v2667
        %v5101 = vmul.f32 %v4937, %v2668
        %v5102 = vmul.f32 %v4939, %v2669
        %v5103 = vmul.f32 %v4941, %v2670
        %v5104 = vmul.f32 %v4943, %v2671
        %v5105 = vmul.f32 %v4945, %v2672
        %v5106 = vmul.f32 %v4947, %v2673
        %v5107 = vmul.f32 %v4949, %v2674
        %v5108 = vmul.f32 %v4951, %v2675
        %v5109 = vmul.f32 %v4953, %v2676
        %v5110 = vmul.f32 %v4955, %v2677
        %v5111 = vmul.f32 %v4957, %v2678
        %v5112 = vmul.f32 %v4959, %v2679
        %v5113 = vmul.f32 %v4961, %v2680
        %v5114 = vmul.f32 %v4963, %v2681
        %v5115 = vmul.f32 %v4965, %v2682
        %v5116 = vmul.f32 %v4967, %v2683
        %v5117 = vmul.f32 %v4969, %v2684
        %v5118 = vmul.f32 %v4971, %v2685
        %v5119 = vmul.f32 %v4973, %v2686
        %v5120 = vmul.f32 %v4975, %v2687
        %v5121 = vmul.f32 %v4977, %v2688
        %v5122 = vmul.f32 %v4979, %v2689
        %v5123 = vmul.f32 %v4981, %v2690
        %v5124 = vmul.f32 %v4983, %v2691
        %v5125 = vmul.f32 %v4985, %v2692
        %v5126 = vmul.f32 %v4987, %v2693
        %v5127 = vmul.f32 %v4989, %v2694
        %v5128 = vmul.f32 %v4991, %v2695
        %v5129 = vmul.f32 %v4993, %v2696
        %v5130 = vmul.f32 %v4995, %v2697
        %v5131 = vmul.f32 %v4997, %v2698
        %v5132 = vmul.f32 %v4999, %v2699
        %v5133 = vmul.f32 %v5001, %v2700
        %v5134 = vmul.f32 %v5003, %v2701
        %v5135 = vmul.f32 %v5005, %v2702
        %v5136 = vmul.f32 %v5007, %v2703
        %v5137 = vmul.f32 %v5009, %v2704
        %vm5138 = vcmask 261120
        %v5139 = vsel %vm5138, %v5010, -inf
        %v5140 = vrot.slane %v5139, 4
        %v5141 = vmax.f32 %v5139, %v5140
        %v5142 = vrot.slane %v5141, 2
        %v5143 = vmax.f32 %v5141, %v5142
        %v5144 = vrot.slane %v5143, 1
        %v5145 = vmax.f32 %v5143, %v5144
        %v5146 = vsel %vm5138, %v5011, -inf
        %v5147 = vrot.slane %v5146, 4
        %v5148 = vmax.f32 %v5146, %v5147
        %v5149 = vrot.slane %v5148, 2
        %v5150 = vmax.f32 %v5148, %v5149
        %v5151 = vrot.slane %v5150, 1
        %v5152 = vmax.f32 %v5150, %v5151
        %v5153 = vsel %vm5138, %v5012, -inf
        %v5154 = vrot.slane %v5153, 4
        %v5155 = vmax.f32 %v5153, %v5154
        %v5156 = vrot.slane %v5155, 2
        %v5157 = vmax.f32 %v5155, %v5156
        %v5158 = vrot.slane %v5157, 1
        %v5159 = vmax.f32 %v5157, %v5158
        %v5160 = vsel %vm5138, %v5013, -inf
        %v5161 = vrot.slane %v5160, 4
        %v5162 = vmax.f32 %v5160, %v5161
        %v5163 = vrot.slane %v5162, 2
        %v5164 = vmax.f32 %v5162, %v5163
        %v5165 = vrot.slane %v5164, 1
        %v5166 = vmax.f32 %v5164, %v5165
        %v5167 = vsel %vm5138, %v5014, -inf
        %v5168 = vrot.slane %v5167, 4
        %v5169 = vmax.f32 %v5167, %v5168
        %v5170 = vrot.slane %v5169, 2
        %v5171 = vmax.f32 %v5169, %v5170
        %v5172 = vrot.slane %v5171, 1
        %v5173 = vmax.f32 %v5171, %v5172
        %v5174 = vsel %vm5138, %v5015, -inf
        %v5175 = vrot.slane %v5174, 4
        %v5176 = vmax.f32 %v5174, %v5175
        %v5177 = vrot.slane %v5176, 2
        %v5178 = vmax.f32 %v5176, %v5177
        %v5179 = vrot.slane %v5178, 1
        %v5180 = vmax.f32 %v5178, %v5179
        %v5181 = vsel %vm5138, %v5016, -inf
        %v5182 = vrot.slane %v5181, 4
        %v5183 = vmax.f32 %v5181, %v5182
        %v5184 = vrot.slane %v5183, 2
        %v5185 = vmax.f32 %v5183, %v5184
        %v5186 = vrot.slane %v5185, 1
        %v5187 = vmax.f32 %v5185, %v5186
        %v5188 = vsel %vm5138, %v5017, -inf
        %v5189 = vrot.slane %v5188, 4
        %v5190 = vmax.f32 %v5188, %v5189
        %v5191 = vrot.slane %v5190, 2
        %v5192 = vmax.f32 %v5190, %v5191
        %v5193 = vrot.slane %v5192, 1
        %v5194 = vmax.f32 %v5192, %v5193
        %v5195 = vsel %vm5138, %v5018, -inf
        %v5196 = vrot.slane %v5195, 4
        %v5197 = vmax.f32 %v5195, %v5196
        %v5198 = vrot.slane %v5197, 2
        %v5199 = vmax.f32 %v5197, %v5198
        %v5200 = vrot.slane %v5199, 1
        %v5201 = vmax.f32 %v5199, %v5200
        %v5202 = vsel %vm5138, %v5019, -inf
        %v5203 = vrot.slane %v5202, 4
        %v5204 = vmax.f32 %v5202, %v5203
        %v5205 = vrot.slane %v5204, 2
        %v5206 = vmax.f32 %v5204, %v5205
        %v5207 = vrot.slane %v5206, 1
        %v5208 = vmax.f32 %v5206, %v5207
        %v5209 = vsel %vm5138, %v5020, -inf
        %v5210 = vrot.slane %v5209, 4
        %v5211 = vmax.f32 %v5209, %v5210
        %v5212 = vrot.slane %v5211, 2
        %v5213 = vmax.f32 %v5211, %v5212
        %v5214 = vrot.slane %v5213, 1
        %v5215 = vmax.f32 %v5213, %v5214
        %v5216 = vsel %vm5138, %v5021, -inf
        %v5217 = vrot.slane %v5216, 4
        %v5218 = vmax.f32 %v5216, %v5217
        %v5219 = vrot.slane %v5218, 2
        %v5220 = vmax.f32 %v5218, %v5219
        %v5221 = vrot.slane %v5220, 1
        %v5222 = vmax.f32 %v5220, %v5221
        %v5223 = vsel %vm5138, %v5022, -inf
        %v5224 = vrot.slane %v5223, 4
        %v5225 = vmax.f32 %v5223, %v5224
        %v5226 = vrot.slane %v5225, 2
        %v5227 = vmax.f32 %v5225, %v5226
        %v5228 = vrot.slane %v5227, 1
        %v5229 = vmax.f32 %v5227, %v5228
        %v5230 = vsel %vm5138, %v5023, -inf
        %v5231 = vrot.slane %v5230, 4
        %v5232 = vmax.f32 %v5230, %v5231
        %v5233 = vrot.slane %v5232, 2
        %v5234 = vmax.f32 %v5232, %v5233
        %v5235 = vrot.slane %v5234, 1
        %v5236 = vmax.f32 %v5234, %v5235
        %v5237 = vsel %vm5138, %v5024, -inf
        %v5238 = vrot.slane %v5237, 4
        %v5239 = vmax.f32 %v5237, %v5238
        %v5240 = vrot.slane %v5239, 2
        %v5241 = vmax.f32 %v5239, %v5240
        %v5242 = vrot.slane %v5241, 1
        %v5243 = vmax.f32 %v5241, %v5242
        %v5244 = vsel %vm5138, %v5025, -inf
        %v5245 = vrot.slane %v5244, 4
        %v5246 = vmax.f32 %v5244, %v5245
        %v5247 = vrot.slane %v5246, 2
        %v5248 = vmax.f32 %v5246, %v5247
        %v5249 = vrot.slane %v5248, 1
        %v5250 = vmax.f32 %v5248, %v5249
        %v5251 = vsel %vm5138, %v5026, -inf
        %v5252 = vrot.slane %v5251, 4
        %v5253 = vmax.f32 %v5251, %v5252
        %v5254 = vrot.slane %v5253, 2
        %v5255 = vmax.f32 %v5253, %v5254
        %v5256 = vrot.slane %v5255, 1
        %v5257 = vmax.f32 %v5255, %v5256
        %v5258 = vsel %vm5138, %v5027, -inf
        %v5259 = vrot.slane %v5258, 4
        %v5260 = vmax.f32 %v5258, %v5259
        %v5261 = vrot.slane %v5260, 2
        %v5262 = vmax.f32 %v5260, %v5261
        %v5263 = vrot.slane %v5262, 1
        %v5264 = vmax.f32 %v5262, %v5263
        %v5265 = vsel %vm5138, %v5028, -inf
        %v5266 = vrot.slane %v5265, 4
        %v5267 = vmax.f32 %v5265, %v5266
        %v5268 = vrot.slane %v5267, 2
        %v5269 = vmax.f32 %v5267, %v5268
        %v5270 = vrot.slane %v5269, 1
        %v5271 = vmax.f32 %v5269, %v5270
        %v5272 = vsel %vm5138, %v5029, -inf
        %v5273 = vrot.slane %v5272, 4
        %v5274 = vmax.f32 %v5272, %v5273
        %v5275 = vrot.slane %v5274, 2
        %v5276 = vmax.f32 %v5274, %v5275
        %v5277 = vrot.slane %v5276, 1
        %v5278 = vmax.f32 %v5276, %v5277
        %v5279 = vsel %vm5138, %v5030, -inf
        %v5280 = vrot.slane %v5279, 4
        %v5281 = vmax.f32 %v5279, %v5280
        %v5282 = vrot.slane %v5281, 2
        %v5283 = vmax.f32 %v5281, %v5282
        %v5284 = vrot.slane %v5283, 1
        %v5285 = vmax.f32 %v5283, %v5284
        %v5286 = vsel %vm5138, %v5031, -inf
        %v5287 = vrot.slane %v5286, 4
        %v5288 = vmax.f32 %v5286, %v5287
        %v5289 = vrot.slane %v5288, 2
        %v5290 = vmax.f32 %v5288, %v5289
        %v5291 = vrot.slane %v5290, 1
        %v5292 = vmax.f32 %v5290, %v5291
        %v5293 = vsel %vm5138, %v5032, -inf
        %v5294 = vrot.slane %v5293, 4
        %v5295 = vmax.f32 %v5293, %v5294
        %v5296 = vrot.slane %v5295, 2
        %v5297 = vmax.f32 %v5295, %v5296
        %v5298 = vrot.slane %v5297, 1
        %v5299 = vmax.f32 %v5297, %v5298
        %v5300 = vsel %vm5138, %v5033, -inf
        %v5301 = vrot.slane %v5300, 4
        %v5302 = vmax.f32 %v5300, %v5301
        %v5303 = vrot.slane %v5302, 2
        %v5304 = vmax.f32 %v5302, %v5303
        %v5305 = vrot.slane %v5304, 1
        %v5306 = vmax.f32 %v5304, %v5305
        %v5307 = vsel %vm5138, %v5034, -inf
        %v5308 = vrot.slane %v5307, 4
        %v5309 = vmax.f32 %v5307, %v5308
        %v5310 = vrot.slane %v5309, 2
        %v5311 = vmax.f32 %v5309, %v5310
        %v5312 = vrot.slane %v5311, 1
        %v5313 = vmax.f32 %v5311, %v5312
        %v5314 = vsel %vm5138, %v5035, -inf
        %v5315 = vrot.slane %v5314, 4
        %v5316 = vmax.f32 %v5314, %v5315
        %v5317 = vrot.slane %v5316, 2
        %v5318 = vmax.f32 %v5316, %v5317
        %v5319 = vrot.slane %v5318, 1
        %v5320 = vmax.f32 %v5318, %v5319
        %v5321 = vsel %vm5138, %v5036, -inf
        %v5322 = vrot.slane %v5321, 4
        %v5323 = vmax.f32 %v5321, %v5322
        %v5324 = vrot.slane %v5323, 2
        %v5325 = vmax.f32 %v5323, %v5324
        %v5326 = vrot.slane %v5325, 1
        %v5327 = vmax.f32 %v5325, %v5326
        %v5328 = vsel %vm5138, %v5037, -inf
        %v5329 = vrot.slane %v5328, 4
        %v5330 = vmax.f32 %v5328, %v5329
        %v5331 = vrot.slane %v5330, 2
        %v5332 = vmax.f32 %v5330, %v5331
        %v5333 = vrot.slane %v5332, 1
        %v5334 = vmax.f32 %v5332, %v5333
        %v5335 = vsel %vm5138, %v5038, -inf
        %v5336 = vrot.slane %v5335, 4
        %v5337 = vmax.f32 %v5335, %v5336
        %v5338 = vrot.slane %v5337, 2
        %v5339 = vmax.f32 %v5337, %v5338
        %v5340 = vrot.slane %v5339, 1
        %v5341 = vmax.f32 %v5339, %v5340
        %v5342 = vsel %vm5138, %v5039, -inf
        %v5343 = vrot.slane %v5342, 4
        %v5344 = vmax.f32 %v5342, %v5343
        %v5345 = vrot.slane %v5344, 2
        %v5346 = vmax.f32 %v5344, %v5345
        %v5347 = vrot.slane %v5346, 1
        %v5348 = vmax.f32 %v5346, %v5347
        %v5349 = vsel %vm5138, %v5040, -inf
        %v5350 = vrot.slane %v5349, 4
        %v5351 = vmax.f32 %v5349, %v5350
        %v5352 = vrot.slane %v5351, 2
        %v5353 = vmax.f32 %v5351, %v5352
        %v5354 = vrot.slane %v5353, 1
        %v5355 = vmax.f32 %v5353, %v5354
        %v5356 = vsel %vm5138, %v5041, -inf
        %v5357 = vrot.slane %v5356, 4
        %v5358 = vmax.f32 %v5356, %v5357
        %v5359 = vrot.slane %v5358, 2
        %v5360 = vmax.f32 %v5358, %v5359
        %v5361 = vrot.slane %v5360, 1
        %v5362 = vmax.f32 %v5360, %v5361
        %v5363 = vsel %vm5138, %v5042, -inf
        %v5364 = vrot.slane %v5363, 4
        %v5365 = vmax.f32 %v5363, %v5364
        %v5366 = vrot.slane %v5365, 2
        %v5367 = vmax.f32 %v5365, %v5366
        %v5368 = vrot.slane %v5367, 1
        %v5369 = vmax.f32 %v5367, %v5368
        %v5370 = vsel %vm5138, %v5043, -inf
        %v5371 = vrot.slane %v5370, 4
        %v5372 = vmax.f32 %v5370, %v5371
        %v5373 = vrot.slane %v5372, 2
        %v5374 = vmax.f32 %v5372, %v5373
        %v5375 = vrot.slane %v5374, 1
        %v5376 = vmax.f32 %v5374, %v5375
        %v5377 = vsel %vm5138, %v5044, -inf
        %v5378 = vrot.slane %v5377, 4
        %v5379 = vmax.f32 %v5377, %v5378
        %v5380 = vrot.slane %v5379, 2
        %v5381 = vmax.f32 %v5379, %v5380
        %v5382 = vrot.slane %v5381, 1
        %v5383 = vmax.f32 %v5381, %v5382
        %v5384 = vsel %vm5138, %v5045, -inf
        %v5385 = vrot.slane %v5384, 4
        %v5386 = vmax.f32 %v5384, %v5385
        %v5387 = vrot.slane %v5386, 2
        %v5388 = vmax.f32 %v5386, %v5387
        %v5389 = vrot.slane %v5388, 1
        %v5390 = vmax.f32 %v5388, %v5389
        %v5391 = vsel %vm5138, %v5046, -inf
        %v5392 = vrot.slane %v5391, 4
        %v5393 = vmax.f32 %v5391, %v5392
        %v5394 = vrot.slane %v5393, 2
        %v5395 = vmax.f32 %v5393, %v5394
        %v5396 = vrot.slane %v5395, 1
        %v5397 = vmax.f32 %v5395, %v5396
        %v5398 = vsel %vm5138, %v5047, -inf
        %v5399 = vrot.slane %v5398, 4
        %v5400 = vmax.f32 %v5398, %v5399
        %v5401 = vrot.slane %v5400, 2
        %v5402 = vmax.f32 %v5400, %v5401
        %v5403 = vrot.slane %v5402, 1
        %v5404 = vmax.f32 %v5402, %v5403
        %v5405 = vsel %vm5138, %v5048, -inf
        %v5406 = vrot.slane %v5405, 4
        %v5407 = vmax.f32 %v5405, %v5406
        %v5408 = vrot.slane %v5407, 2
        %v5409 = vmax.f32 %v5407, %v5408
        %v5410 = vrot.slane %v5409, 1
        %v5411 = vmax.f32 %v5409, %v5410
        %v5412 = vsel %vm5138, %v5049, -inf
        %v5413 = vrot.slane %v5412, 4
        %v5414 = vmax.f32 %v5412, %v5413
        %v5415 = vrot.slane %v5414, 2
        %v5416 = vmax.f32 %v5414, %v5415
        %v5417 = vrot.slane %v5416, 1
        %v5418 = vmax.f32 %v5416, %v5417
        %v5419 = vsel %vm5138, %v5050, -inf
        %v5420 = vrot.slane %v5419, 4
        %v5421 = vmax.f32 %v5419, %v5420
        %v5422 = vrot.slane %v5421, 2
        %v5423 = vmax.f32 %v5421, %v5422
        %v5424 = vrot.slane %v5423, 1
        %v5425 = vmax.f32 %v5423, %v5424
        %v5426 = vsel %vm5138, %v5051, -inf
        %v5427 = vrot.slane %v5426, 4
        %v5428 = vmax.f32 %v5426, %v5427
        %v5429 = vrot.slane %v5428, 2
        %v5430 = vmax.f32 %v5428, %v5429
        %v5431 = vrot.slane %v5430, 1
        %v5432 = vmax.f32 %v5430, %v5431
        %v5433 = vsel %vm5138, %v5052, -inf
        %v5434 = vrot.slane %v5433, 4
        %v5435 = vmax.f32 %v5433, %v5434
        %v5436 = vrot.slane %v5435, 2
        %v5437 = vmax.f32 %v5435, %v5436
        %v5438 = vrot.slane %v5437, 1
        %v5439 = vmax.f32 %v5437, %v5438
        %v5440 = vsel %vm5138, %v5053, -inf
        %v5441 = vrot.slane %v5440, 4
        %v5442 = vmax.f32 %v5440, %v5441
        %v5443 = vrot.slane %v5442, 2
        %v5444 = vmax.f32 %v5442, %v5443
        %v5445 = vrot.slane %v5444, 1
        %v5446 = vmax.f32 %v5444, %v5445
        %v5447 = vsel %vm5138, %v5054, -inf
        %v5448 = vrot.slane %v5447, 4
        %v5449 = vmax.f32 %v5447, %v5448
        %v5450 = vrot.slane %v5449, 2
        %v5451 = vmax.f32 %v5449, %v5450
        %v5452 = vrot.slane %v5451, 1
        %v5453 = vmax.f32 %v5451, %v5452
        %v5454 = vsel %vm5138, %v5055, -inf
        %v5455 = vrot.slane %v5454, 4
        %v5456 = vmax.f32 %v5454, %v5455
        %v5457 = vrot.slane %v5456, 2
        %v5458 = vmax.f32 %v5456, %v5457
        %v5459 = vrot.slane %v5458, 1
        %v5460 = vmax.f32 %v5458, %v5459
        %v5461 = vsel %vm5138, %v5056, -inf
        %v5462 = vrot.slane %v5461, 4
        %v5463 = vmax.f32 %v5461, %v5462
        %v5464 = vrot.slane %v5463, 2
        %v5465 = vmax.f32 %v5463, %v5464
        %v5466 = vrot.slane %v5465, 1
        %v5467 = vmax.f32 %v5465, %v5466
        %v5468 = vsel %vm5138, %v5057, -inf
        %v5469 = vrot.slane %v5468, 4
        %v5470 = vmax.f32 %v5468, %v5469
        %v5471 = vrot.slane %v5470, 2
        %v5472 = vmax.f32 %v5470, %v5471
        %v5473 = vrot.slane %v5472, 1
        %v5474 = vmax.f32 %v5472, %v5473
        %v5475 = vsel %vm5138, %v5058, -inf
        %v5476 = vrot.slane %v5475, 4
        %v5477 = vmax.f32 %v5475, %v5476
        %v5478 = vrot.slane %v5477, 2
        %v5479 = vmax.f32 %v5477, %v5478
        %v5480 = vrot.slane %v5479, 1
        %v5481 = vmax.f32 %v5479, %v5480
        %v5482 = vsel %vm5138, %v5059, -inf
        %v5483 = vrot.slane %v5482, 4
        %v5484 = vmax.f32 %v5482, %v5483
        %v5485 = vrot.slane %v5484, 2
        %v5486 = vmax.f32 %v5484, %v5485
        %v5487 = vrot.slane %v5486, 1
        %v5488 = vmax.f32 %v5486, %v5487
        %v5489 = vsel %vm5138, %v5060, -inf
        %v5490 = vrot.slane %v5489, 4
        %v5491 = vmax.f32 %v5489, %v5490
        %v5492 = vrot.slane %v5491, 2
        %v5493 = vmax.f32 %v5491, %v5492
        %v5494 = vrot.slane %v5493, 1
        %v5495 = vmax.f32 %v5493, %v5494
        %v5496 = vsel %vm5138, %v5061, -inf
        %v5497 = vrot.slane %v5496, 4
        %v5498 = vmax.f32 %v5496, %v5497
        %v5499 = vrot.slane %v5498, 2
        %v5500 = vmax.f32 %v5498, %v5499
        %v5501 = vrot.slane %v5500, 1
        %v5502 = vmax.f32 %v5500, %v5501
        %v5503 = vsel %vm5138, %v5062, -inf
        %v5504 = vrot.slane %v5503, 4
        %v5505 = vmax.f32 %v5503, %v5504
        %v5506 = vrot.slane %v5505, 2
        %v5507 = vmax.f32 %v5505, %v5506
        %v5508 = vrot.slane %v5507, 1
        %v5509 = vmax.f32 %v5507, %v5508
        %v5510 = vsel %vm5138, %v5063, -inf
        %v5511 = vrot.slane %v5510, 4
        %v5512 = vmax.f32 %v5510, %v5511
        %v5513 = vrot.slane %v5512, 2
        %v5514 = vmax.f32 %v5512, %v5513
        %v5515 = vrot.slane %v5514, 1
        %v5516 = vmax.f32 %v5514, %v5515
        %v5517 = vsel %vm5138, %v5064, -inf
        %v5518 = vrot.slane %v5517, 4
        %v5519 = vmax.f32 %v5517, %v5518
        %v5520 = vrot.slane %v5519, 2
        %v5521 = vmax.f32 %v5519, %v5520
        %v5522 = vrot.slane %v5521, 1
        %v5523 = vmax.f32 %v5521, %v5522
        %v5524 = vsel %vm5138, %v5065, -inf
        %v5525 = vrot.slane %v5524, 4
        %v5526 = vmax.f32 %v5524, %v5525
        %v5527 = vrot.slane %v5526, 2
        %v5528 = vmax.f32 %v5526, %v5527
        %v5529 = vrot.slane %v5528, 1
        %v5530 = vmax.f32 %v5528, %v5529
        %v5531 = vsel %vm5138, %v5066, -inf
        %v5532 = vrot.slane %v5531, 4
        %v5533 = vmax.f32 %v5531, %v5532
        %v5534 = vrot.slane %v5533, 2
        %v5535 = vmax.f32 %v5533, %v5534
        %v5536 = vrot.slane %v5535, 1
        %v5537 = vmax.f32 %v5535, %v5536
        %v5538 = vsel %vm5138, %v5067, -inf
        %v5539 = vrot.slane %v5538, 4
        %v5540 = vmax.f32 %v5538, %v5539
        %v5541 = vrot.slane %v5540, 2
        %v5542 = vmax.f32 %v5540, %v5541
        %v5543 = vrot.slane %v5542, 1
        %v5544 = vmax.f32 %v5542, %v5543
        %v5545 = vsel %vm5138, %v5068, -inf
        %v5546 = vrot.slane %v5545, 4
        %v5547 = vmax.f32 %v5545, %v5546
        %v5548 = vrot.slane %v5547, 2
        %v5549 = vmax.f32 %v5547, %v5548
        %v5550 = vrot.slane %v5549, 1
        %v5551 = vmax.f32 %v5549, %v5550
        %v5552 = vsel %vm5138, %v5069, -inf
        %v5553 = vrot.slane %v5552, 4
        %v5554 = vmax.f32 %v5552, %v5553
        %v5555 = vrot.slane %v5554, 2
        %v5556 = vmax.f32 %v5554, %v5555
        %v5557 = vrot.slane %v5556, 1
        %v5558 = vmax.f32 %v5556, %v5557
        %v5559 = vsel %vm5138, %v5070, -inf
        %v5560 = vrot.slane %v5559, 4
        %v5561 = vmax.f32 %v5559, %v5560
        %v5562 = vrot.slane %v5561, 2
        %v5563 = vmax.f32 %v5561, %v5562
        %v5564 = vrot.slane %v5563, 1
        %v5565 = vmax.f32 %v5563, %v5564
        %v5566 = vsel %vm5138, %v5071, -inf
        %v5567 = vrot.slane %v5566, 4
        %v5568 = vmax.f32 %v5566, %v5567
        %v5569 = vrot.slane %v5568, 2
        %v5570 = vmax.f32 %v5568, %v5569
        %v5571 = vrot.slane %v5570, 1
        %v5572 = vmax.f32 %v5570, %v5571
        %v5573 = vsel %vm5138, %v5072, -inf
        %v5574 = vrot.slane %v5573, 4
        %v5575 = vmax.f32 %v5573, %v5574
        %v5576 = vrot.slane %v5575, 2
        %v5577 = vmax.f32 %v5575, %v5576
        %v5578 = vrot.slane %v5577, 1
        %v5579 = vmax.f32 %v5577, %v5578
        %v5580 = vsel %vm5138, %v5073, -inf
        %v5581 = vrot.slane %v5580, 4
        %v5582 = vmax.f32 %v5580, %v5581
        %v5583 = vrot.slane %v5582, 2
        %v5584 = vmax.f32 %v5582, %v5583
        %v5585 = vrot.slane %v5584, 1
        %v5586 = vmax.f32 %v5584, %v5585
        %v5587 = vsel %vm5138, %v5074, -inf
        %v5588 = vrot.slane %v5587, 4
        %v5589 = vmax.f32 %v5587, %v5588
        %v5590 = vrot.slane %v5589, 2
        %v5591 = vmax.f32 %v5589, %v5590
        %v5592 = vrot.slane %v5591, 1
        %v5593 = vmax.f32 %v5591, %v5592
        %v5594 = vsel %vm5138, %v5075, -inf
        %v5595 = vrot.slane %v5594, 4
        %v5596 = vmax.f32 %v5594, %v5595
        %v5597 = vrot.slane %v5596, 2
        %v5598 = vmax.f32 %v5596, %v5597
        %v5599 = vrot.slane %v5598, 1
        %v5600 = vmax.f32 %v5598, %v5599
        %v5601 = vsel %vm5138, %v5076, -inf
        %v5602 = vrot.slane %v5601, 4
        %v5603 = vmax.f32 %v5601, %v5602
        %v5604 = vrot.slane %v5603, 2
        %v5605 = vmax.f32 %v5603, %v5604
        %v5606 = vrot.slane %v5605, 1
        %v5607 = vmax.f32 %v5605, %v5606
        %v5608 = vsel %vm5138, %v5077, -inf
        %v5609 = vrot.slane %v5608, 4
        %v5610 = vmax.f32 %v5608, %v5609
        %v5611 = vrot.slane %v5610, 2
        %v5612 = vmax.f32 %v5610, %v5611
        %v5613 = vrot.slane %v5612, 1
        %v5614 = vmax.f32 %v5612, %v5613
        %v5615 = vsel %vm5138, %v5078, -inf
        %v5616 = vrot.slane %v5615, 4
        %v5617 = vmax.f32 %v5615, %v5616
        %v5618 = vrot.slane %v5617, 2
        %v5619 = vmax.f32 %v5617, %v5618
        %v5620 = vrot.slane %v5619, 1
        %v5621 = vmax.f32 %v5619, %v5620
        %v5622 = vsel %vm5138, %v5079, -inf
        %v5623 = vrot.slane %v5622, 4
        %v5624 = vmax.f32 %v5622, %v5623
        %v5625 = vrot.slane %v5624, 2
        %v5626 = vmax.f32 %v5624, %v5625
        %v5627 = vrot.slane %v5626, 1
        %v5628 = vmax.f32 %v5626, %v5627
        %v5629 = vsel %vm5138, %v5080, -inf
        %v5630 = vrot.slane %v5629, 4
        %v5631 = vmax.f32 %v5629, %v5630
        %v5632 = vrot.slane %v5631, 2
        %v5633 = vmax.f32 %v5631, %v5632
        %v5634 = vrot.slane %v5633, 1
        %v5635 = vmax.f32 %v5633, %v5634
        %v5636 = vsel %vm5138, %v5081, -inf
        %v5637 = vrot.slane %v5636, 4
        %v5638 = vmax.f32 %v5636, %v5637
        %v5639 = vrot.slane %v5638, 2
        %v5640 = vmax.f32 %v5638, %v5639
        %v5641 = vrot.slane %v5640, 1
        %v5642 = vmax.f32 %v5640, %v5641
        %v5643 = vsel %vm5138, %v5082, -inf
        %v5644 = vrot.slane %v5643, 4
        %v5645 = vmax.f32 %v5643, %v5644
        %v5646 = vrot.slane %v5645, 2
        %v5647 = vmax.f32 %v5645, %v5646
        %v5648 = vrot.slane %v5647, 1
        %v5649 = vmax.f32 %v5647, %v5648
        %v5650 = vsel %vm5138, %v5083, -inf
        %v5651 = vrot.slane %v5650, 4
        %v5652 = vmax.f32 %v5650, %v5651
        %v5653 = vrot.slane %v5652, 2
        %v5654 = vmax.f32 %v5652, %v5653
        %v5655 = vrot.slane %v5654, 1
        %v5656 = vmax.f32 %v5654, %v5655
        %v5657 = vsel %vm5138, %v5084, -inf
        %v5658 = vrot.slane %v5657, 4
        %v5659 = vmax.f32 %v5657, %v5658
        %v5660 = vrot.slane %v5659, 2
        %v5661 = vmax.f32 %v5659, %v5660
        %v5662 = vrot.slane %v5661, 1
        %v5663 = vmax.f32 %v5661, %v5662
        %v5664 = vsel %vm5138, %v5085, -inf
        %v5665 = vrot.slane %v5664, 4
        %v5666 = vmax.f32 %v5664, %v5665
        %v5667 = vrot.slane %v5666, 2
        %v5668 = vmax.f32 %v5666, %v5667
        %v5669 = vrot.slane %v5668, 1
        %v5670 = vmax.f32 %v5668, %v5669
        %v5671 = vsel %vm5138, %v5086, -inf
        %v5672 = vrot.slane %v5671, 4
        %v5673 = vmax.f32 %v5671, %v5672
        %v5674 = vrot.slane %v5673, 2
        %v5675 = vmax.f32 %v5673, %v5674
        %v5676 = vrot.slane %v5675, 1
        %v5677 = vmax.f32 %v5675, %v5676
        %v5678 = vsel %vm5138, %v5087, -inf
        %v5679 = vrot.slane %v5678, 4
        %v5680 = vmax.f32 %v5678, %v5679
        %v5681 = vrot.slane %v5680, 2
        %v5682 = vmax.f32 %v5680, %v5681
        %v5683 = vrot.slane %v5682, 1
        %v5684 = vmax.f32 %v5682, %v5683
        %v5685 = vsel %vm5138, %v5088, -inf
        %v5686 = vrot.slane %v5685, 4
        %v5687 = vmax.f32 %v5685, %v5686
        %v5688 = vrot.slane %v5687, 2
        %v5689 = vmax.f32 %v5687, %v5688
        %v5690 = vrot.slane %v5689, 1
        %v5691 = vmax.f32 %v5689, %v5690
        %v5692 = vsel %vm5138, %v5089, -inf
        %v5693 = vrot.slane %v5692, 4
        %v5694 = vmax.f32 %v5692, %v5693
        %v5695 = vrot.slane %v5694, 2
        %v5696 = vmax.f32 %v5694, %v5695
        %v5697 = vrot.slane %v5696, 1
        %v5698 = vmax.f32 %v5696, %v5697
        %v5699 = vsel %vm5138, %v5090, -inf
        %v5700 = vrot.slane %v5699, 4
        %v5701 = vmax.f32 %v5699, %v5700
        %v5702 = vrot.slane %v5701, 2
        %v5703 = vmax.f32 %v5701, %v5702
        %v5704 = vrot.slane %v5703, 1
        %v5705 = vmax.f32 %v5703, %v5704
        %v5706 = vsel %vm5138, %v5091, -inf
        %v5707 = vrot.slane %v5706, 4
        %v5708 = vmax.f32 %v5706, %v5707
        %v5709 = vrot.slane %v5708, 2
        %v5710 = vmax.f32 %v5708, %v5709
        %v5711 = vrot.slane %v5710, 1
        %v5712 = vmax.f32 %v5710, %v5711
        %v5713 = vsel %vm5138, %v5092, -inf
        %v5714 = vrot.slane %v5713, 4
        %v5715 = vmax.f32 %v5713, %v5714
        %v5716 = vrot.slane %v5715, 2
        %v5717 = vmax.f32 %v5715, %v5716
        %v5718 = vrot.slane %v5717, 1
        %v5719 = vmax.f32 %v5717, %v5718
        %v5720 = vsel %vm5138, %v5093, -inf
        %v5721 = vrot.slane %v5720, 4
        %v5722 = vmax.f32 %v5720, %v5721
        %v5723 = vrot.slane %v5722, 2
        %v5724 = vmax.f32 %v5722, %v5723
        %v5725 = vrot.slane %v5724, 1
        %v5726 = vmax.f32 %v5724, %v5725
        %v5727 = vsel %vm5138, %v5094, -inf
        %v5728 = vrot.slane %v5727, 4
        %v5729 = vmax.f32 %v5727, %v5728
        %v5730 = vrot.slane %v5729, 2
        %v5731 = vmax.f32 %v5729, %v5730
        %v5732 = vrot.slane %v5731, 1
        %v5733 = vmax.f32 %v5731, %v5732
        %v5734 = vsel %vm5138, %v5095, -inf
        %v5735 = vrot.slane %v5734, 4
        %v5736 = vmax.f32 %v5734, %v5735
        %v5737 = vrot.slane %v5736, 2
        %v5738 = vmax.f32 %v5736, %v5737
        %v5739 = vrot.slane %v5738, 1
        %v5740 = vmax.f32 %v5738, %v5739
        %v5741 = vsel %vm5138, %v5096, -inf
        %v5742 = vrot.slane %v5741, 4
        %v5743 = vmax.f32 %v5741, %v5742
        %v5744 = vrot.slane %v5743, 2
        %v5745 = vmax.f32 %v5743, %v5744
        %v5746 = vrot.slane %v5745, 1
        %v5747 = vmax.f32 %v5745, %v5746
        %v5748 = vsel %vm5138, %v5097, -inf
        %v5749 = vrot.slane %v5748, 4
        %v5750 = vmax.f32 %v5748, %v5749
        %v5751 = vrot.slane %v5750, 2
        %v5752 = vmax.f32 %v5750, %v5751
        %v5753 = vrot.slane %v5752, 1
        %v5754 = vmax.f32 %v5752, %v5753
        %v5755 = vsel %vm5138, %v5098, -inf
        %v5756 = vrot.slane %v5755, 4
        %v5757 = vmax.f32 %v5755, %v5756
        %v5758 = vrot.slane %v5757, 2
        %v5759 = vmax.f32 %v5757, %v5758
        %v5760 = vrot.slane %v5759, 1
        %v5761 = vmax.f32 %v5759, %v5760
        %v5762 = vsel %vm5138, %v5099, -inf
        %v5763 = vrot.slane %v5762, 4
        %v5764 = vmax.f32 %v5762, %v5763
        %v5765 = vrot.slane %v5764, 2
        %v5766 = vmax.f32 %v5764, %v5765
        %v5767 = vrot.slane %v5766, 1
        %v5768 = vmax.f32 %v5766, %v5767
        %v5769 = vsel %vm5138, %v5100, -inf
        %v5770 = vrot.slane %v5769, 4
        %v5771 = vmax.f32 %v5769, %v5770
        %v5772 = vrot.slane %v5771, 2
        %v5773 = vmax.f32 %v5771, %v5772
        %v5774 = vrot.slane %v5773, 1
        %v5775 = vmax.f32 %v5773, %v5774
        %v5776 = vsel %vm5138, %v5101, -inf
        %v5777 = vrot.slane %v5776, 4
        %v5778 = vmax.f32 %v5776, %v5777
        %v5779 = vrot.slane %v5778, 2
        %v5780 = vmax.f32 %v5778, %v5779
        %v5781 = vrot.slane %v5780, 1
        %v5782 = vmax.f32 %v5780, %v5781
        %v5783 = vsel %vm5138, %v5102, -inf
        %v5784 = vrot.slane %v5783, 4
        %v5785 = vmax.f32 %v5783, %v5784
        %v5786 = vrot.slane %v5785, 2
        %v5787 = vmax.f32 %v5785, %v5786
        %v5788 = vrot.slane %v5787, 1
        %v5789 = vmax.f32 %v5787, %v5788
        %v5790 = vsel %vm5138, %v5103, -inf
        %v5791 = vrot.slane %v5790, 4
        %v5792 = vmax.f32 %v5790, %v5791
        %v5793 = vrot.slane %v5792, 2
        %v5794 = vmax.f32 %v5792, %v5793
        %v5795 = vrot.slane %v5794, 1
        %v5796 = vmax.f32 %v5794, %v5795
        %v5797 = vsel %vm5138, %v5104, -inf
        %v5798 = vrot.slane %v5797, 4
        %v5799 = vmax.f32 %v5797, %v5798
        %v5800 = vrot.slane %v5799, 2
        %v5801 = vmax.f32 %v5799, %v5800
        %v5802 = vrot.slane %v5801, 1
        %v5803 = vmax.f32 %v5801, %v5802
        %v5804 = vsel %vm5138, %v5105, -inf
        %v5805 = vrot.slane %v5804, 4
        %v5806 = vmax.f32 %v5804, %v5805
        %v5807 = vrot.slane %v5806, 2
        %v5808 = vmax.f32 %v5806, %v5807
        %v5809 = vrot.slane %v5808, 1
        %v5810 = vmax.f32 %v5808, %v5809
        %v5811 = vsel %vm5138, %v5106, -inf
        %v5812 = vrot.slane %v5811, 4
        %v5813 = vmax.f32 %v5811, %v5812
        %v5814 = vrot.slane %v5813, 2
        %v5815 = vmax.f32 %v5813, %v5814
        %v5816 = vrot.slane %v5815, 1
        %v5817 = vmax.f32 %v5815, %v5816
        %v5818 = vsel %vm5138, %v5107, -inf
        %v5819 = vrot.slane %v5818, 4
        %v5820 = vmax.f32 %v5818, %v5819
        %v5821 = vrot.slane %v5820, 2
        %v5822 = vmax.f32 %v5820, %v5821
        %v5823 = vrot.slane %v5822, 1
        %v5824 = vmax.f32 %v5822, %v5823
        %v5825 = vsel %vm5138, %v5108, -inf
        %v5826 = vrot.slane %v5825, 4
        %v5827 = vmax.f32 %v5825, %v5826
        %v5828 = vrot.slane %v5827, 2
        %v5829 = vmax.f32 %v5827, %v5828
        %v5830 = vrot.slane %v5829, 1
        %v5831 = vmax.f32 %v5829, %v5830
        %v5832 = vsel %vm5138, %v5109, -inf
        %v5833 = vrot.slane %v5832, 4
        %v5834 = vmax.f32 %v5832, %v5833
        %v5835 = vrot.slane %v5834, 2
        %v5836 = vmax.f32 %v5834, %v5835
        %v5837 = vrot.slane %v5836, 1
        %v5838 = vmax.f32 %v5836, %v5837
        %v5839 = vsel %vm5138, %v5110, -inf
        %v5840 = vrot.slane %v5839, 4
        %v5841 = vmax.f32 %v5839, %v5840
        %v5842 = vrot.slane %v5841, 2
        %v5843 = vmax.f32 %v5841, %v5842
        %v5844 = vrot.slane %v5843, 1
        %v5845 = vmax.f32 %v5843, %v5844
        %v5846 = vsel %vm5138, %v5111, -inf
        %v5847 = vrot.slane %v5846, 4
        %v5848 = vmax.f32 %v5846, %v5847
        %v5849 = vrot.slane %v5848, 2
        %v5850 = vmax.f32 %v5848, %v5849
        %v5851 = vrot.slane %v5850, 1
        %v5852 = vmax.f32 %v5850, %v5851
        %v5853 = vsel %vm5138, %v5112, -inf
        %v5854 = vrot.slane %v5853, 4
        %v5855 = vmax.f32 %v5853, %v5854
        %v5856 = vrot.slane %v5855, 2
        %v5857 = vmax.f32 %v5855, %v5856
        %v5858 = vrot.slane %v5857, 1
        %v5859 = vmax.f32 %v5857, %v5858
        %v5860 = vsel %vm5138, %v5113, -inf
        %v5861 = vrot.slane %v5860, 4
        %v5862 = vmax.f32 %v5860, %v5861
        %v5863 = vrot.slane %v5862, 2
        %v5864 = vmax.f32 %v5862, %v5863
        %v5865 = vrot.slane %v5864, 1
        %v5866 = vmax.f32 %v5864, %v5865
        %v5867 = vsel %vm5138, %v5114, -inf
        %v5868 = vrot.slane %v5867, 4
        %v5869 = vmax.f32 %v5867, %v5868
        %v5870 = vrot.slane %v5869, 2
        %v5871 = vmax.f32 %v5869, %v5870
        %v5872 = vrot.slane %v5871, 1
        %v5873 = vmax.f32 %v5871, %v5872
        %v5874 = vsel %vm5138, %v5115, -inf
        %v5875 = vrot.slane %v5874, 4
        %v5876 = vmax.f32 %v5874, %v5875
        %v5877 = vrot.slane %v5876, 2
        %v5878 = vmax.f32 %v5876, %v5877
        %v5879 = vrot.slane %v5878, 1
        %v5880 = vmax.f32 %v5878, %v5879
        %v5881 = vsel %vm5138, %v5116, -inf
        %v5882 = vrot.slane %v5881, 4
        %v5883 = vmax.f32 %v5881, %v5882
        %v5884 = vrot.slane %v5883, 2
        %v5885 = vmax.f32 %v5883, %v5884
        %v5886 = vrot.slane %v5885, 1
        %v5887 = vmax.f32 %v5885, %v5886
        %v5888 = vsel %vm5138, %v5117, -inf
        %v5889 = vrot.slane %v5888, 4
        %v5890 = vmax.f32 %v5888, %v5889
        %v5891 = vrot.slane %v5890, 2
        %v5892 = vmax.f32 %v5890, %v5891
        %v5893 = vrot.slane %v5892, 1
        %v5894 = vmax.f32 %v5892, %v5893
        %v5895 = vsel %vm5138, %v5118, -inf
        %v5896 = vrot.slane %v5895, 4
        %v5897 = vmax.f32 %v5895, %v5896
        %v5898 = vrot.slane %v5897, 2
        %v5899 = vmax.f32 %v5897, %v5898
        %v5900 = vrot.slane %v5899, 1
        %v5901 = vmax.f32 %v5899, %v5900
        %v5902 = vsel %vm5138, %v5119, -inf
        %v5903 = vrot.slane %v5902, 4
        %v5904 = vmax.f32 %v5902, %v5903
        %v5905 = vrot.slane %v5904, 2
        %v5906 = vmax.f32 %v5904, %v5905
        %v5907 = vrot.slane %v5906, 1
        %v5908 = vmax.f32 %v5906, %v5907
        %v5909 = vsel %vm5138, %v5120, -inf
        %v5910 = vrot.slane %v5909, 4
        %v5911 = vmax.f32 %v5909, %v5910
        %v5912 = vrot.slane %v5911, 2
        %v5913 = vmax.f32 %v5911, %v5912
        %v5914 = vrot.slane %v5913, 1
        %v5915 = vmax.f32 %v5913, %v5914
        %v5916 = vsel %vm5138, %v5121, -inf
        %v5917 = vrot.slane %v5916, 4
        %v5918 = vmax.f32 %v5916, %v5917
        %v5919 = vrot.slane %v5918, 2
        %v5920 = vmax.f32 %v5918, %v5919
        %v5921 = vrot.slane %v5920, 1
        %v5922 = vmax.f32 %v5920, %v5921
        %v5923 = vsel %vm5138, %v5122, -inf
        %v5924 = vrot.slane %v5923, 4
        %v5925 = vmax.f32 %v5923, %v5924
        %v5926 = vrot.slane %v5925, 2
        %v5927 = vmax.f32 %v5925, %v5926
        %v5928 = vrot.slane %v5927, 1
        %v5929 = vmax.f32 %v5927, %v5928
        %v5930 = vsel %vm5138, %v5123, -inf
        %v5931 = vrot.slane %v5930, 4
        %v5932 = vmax.f32 %v5930, %v5931
        %v5933 = vrot.slane %v5932, 2
        %v5934 = vmax.f32 %v5932, %v5933
        %v5935 = vrot.slane %v5934, 1
        %v5936 = vmax.f32 %v5934, %v5935
        %v5937 = vsel %vm5138, %v5124, -inf
        %v5938 = vrot.slane %v5937, 4
        %v5939 = vmax.f32 %v5937, %v5938
        %v5940 = vrot.slane %v5939, 2
        %v5941 = vmax.f32 %v5939, %v5940
        %v5942 = vrot.slane %v5941, 1
        %v5943 = vmax.f32 %v5941, %v5942
        %v5944 = vsel %vm5138, %v5125, -inf
        %v5945 = vrot.slane %v5944, 4
        %v5946 = vmax.f32 %v5944, %v5945
        %v5947 = vrot.slane %v5946, 2
        %v5948 = vmax.f32 %v5946, %v5947
        %v5949 = vrot.slane %v5948, 1
        %v5950 = vmax.f32 %v5948, %v5949
        %v5951 = vsel %vm5138, %v5126, -inf
        %v5952 = vrot.slane %v5951, 4
        %v5953 = vmax.f32 %v5951, %v5952
        %v5954 = vrot.slane %v5953, 2
        %v5955 = vmax.f32 %v5953, %v5954
        %v5956 = vrot.slane %v5955, 1
        %v5957 = vmax.f32 %v5955, %v5956
        %v5958 = vsel %vm5138, %v5127, -inf
        %v5959 = vrot.slane %v5958, 4
        %v5960 = vmax.f32 %v5958, %v5959
        %v5961 = vrot.slane %v5960, 2
        %v5962 = vmax.f32 %v5960, %v5961
        %v5963 = vrot.slane %v5962, 1
        %v5964 = vmax.f32 %v5962, %v5963
        %v5965 = vsel %vm5138, %v5128, -inf
        %v5966 = vrot.slane %v5965, 4
        %v5967 = vmax.f32 %v5965, %v5966
        %v5968 = vrot.slane %v5967, 2
        %v5969 = vmax.f32 %v5967, %v5968
        %v5970 = vrot.slane %v5969, 1
        %v5971 = vmax.f32 %v5969, %v5970
        %v5972 = vsel %vm5138, %v5129, -inf
        %v5973 = vrot.slane %v5972, 4
        %v5974 = vmax.f32 %v5972, %v5973
        %v5975 = vrot.slane %v5974, 2
        %v5976 = vmax.f32 %v5974, %v5975
        %v5977 = vrot.slane %v5976, 1
        %v5978 = vmax.f32 %v5976, %v5977
        %v5979 = vsel %vm5138, %v5130, -inf
        %v5980 = vrot.slane %v5979, 4
        %v5981 = vmax.f32 %v5979, %v5980
        %v5982 = vrot.slane %v5981, 2
        %v5983 = vmax.f32 %v5981, %v5982
        %v5984 = vrot.slane %v5983, 1
        %v5985 = vmax.f32 %v5983, %v5984
        %v5986 = vsel %vm5138, %v5131, -inf
        %v5987 = vrot.slane %v5986, 4
        %v5988 = vmax.f32 %v5986, %v5987
        %v5989 = vrot.slane %v5988, 2
        %v5990 = vmax.f32 %v5988, %v5989
        %v5991 = vrot.slane %v5990, 1
        %v5992 = vmax.f32 %v5990, %v5991
        %v5993 = vsel %vm5138, %v5132, -inf
        %v5994 = vrot.slane %v5993, 4
        %v5995 = vmax.f32 %v5993, %v5994
        %v5996 = vrot.slane %v5995, 2
        %v5997 = vmax.f32 %v5995, %v5996
        %v5998 = vrot.slane %v5997, 1
        %v5999 = vmax.f32 %v5997, %v5998
        %v6000 = vsel %vm5138, %v5133, -inf
        %v6001 = vrot.slane %v6000, 4
        %v6002 = vmax.f32 %v6000, %v6001
        %v6003 = vrot.slane %v6002, 2
        %v6004 = vmax.f32 %v6002, %v6003
        %v6005 = vrot.slane %v6004, 1
        %v6006 = vmax.f32 %v6004, %v6005
        %v6007 = vsel %vm5138, %v5134, -inf
        %v6008 = vrot.slane %v6007, 4
        %v6009 = vmax.f32 %v6007, %v6008
        %v6010 = vrot.slane %v6009, 2
        %v6011 = vmax.f32 %v6009, %v6010
        %v6012 = vrot.slane %v6011, 1
        %v6013 = vmax.f32 %v6011, %v6012
        %v6014 = vsel %vm5138, %v5135, -inf
        %v6015 = vrot.slane %v6014, 4
        %v6016 = vmax.f32 %v6014, %v6015
        %v6017 = vrot.slane %v6016, 2
        %v6018 = vmax.f32 %v6016, %v6017
        %v6019 = vrot.slane %v6018, 1
        %v6020 = vmax.f32 %v6018, %v6019
        %v6021 = vsel %vm5138, %v5136, -inf
        %v6022 = vrot.slane %v6021, 4
        %v6023 = vmax.f32 %v6021, %v6022
        %v6024 = vrot.slane %v6023, 2
        %v6025 = vmax.f32 %v6023, %v6024
        %v6026 = vrot.slane %v6025, 1
        %v6027 = vmax.f32 %v6025, %v6026
        %v6028 = vsel %vm5138, %v5137, -inf
        %v6029 = vrot.slane %v6028, 4
        %v6030 = vmax.f32 %v6028, %v6029
        %v6031 = vrot.slane %v6030, 2
        %v6032 = vmax.f32 %v6030, %v6031
        %v6033 = vrot.slane %v6032, 1
        %v6034 = vmax.f32 %v6032, %v6033
        %vm6163 = vcmask 1041409
        %v6164 = vsel %vm6163, %v5152, %v5145
        %vm6165 = vcmask 1042434
        %v6166 = vsel %vm6165, %v5159, %v6164
        %vm6167 = vcmask 1043459
        %v6168 = vsel %vm6167, %v5166, %v6166
        %vm6169 = vcmask 1044484
        %v6170 = vsel %vm6169, %v5173, %v6168
        %vm6171 = vcmask 1045509
        %v6172 = vsel %vm6171, %v5180, %v6170
        %vm6173 = vcmask 1046534
        %v6174 = vsel %vm6173, %v5187, %v6172
        %vm6175 = vcmask 1047559
        %v6176 = vsel %vm6175, %v5194, %v6174
        %v6177 = vsel %vm6163, %v5208, %v5201
        %v6178 = vsel %vm6165, %v5215, %v6177
        %v6179 = vsel %vm6167, %v5222, %v6178
        %v6180 = vsel %vm6169, %v5229, %v6179
        %v6181 = vsel %vm6171, %v5236, %v6180
        %v6182 = vsel %vm6173, %v5243, %v6181
        %v6183 = vsel %vm6175, %v5250, %v6182
        %v6184 = vsel %vm6163, %v5264, %v5257
        %v6185 = vsel %vm6165, %v5271, %v6184
        %v6186 = vsel %vm6167, %v5278, %v6185
        %v6187 = vsel %vm6169, %v5285, %v6186
        %v6188 = vsel %vm6171, %v5292, %v6187
        %v6189 = vsel %vm6173, %v5299, %v6188
        %v6190 = vsel %vm6175, %v5306, %v6189
        %v6191 = vsel %vm6163, %v5320, %v5313
        %v6192 = vsel %vm6165, %v5327, %v6191
        %v6193 = vsel %vm6167, %v5334, %v6192
        %v6194 = vsel %vm6169, %v5341, %v6193
        %v6195 = vsel %vm6171, %v5348, %v6194
        %v6196 = vsel %vm6173, %v5355, %v6195
        %v6197 = vsel %vm6175, %v5362, %v6196
        %v6198 = vsel %vm6163, %v5376, %v5369
        %v6199 = vsel %vm6165, %v5383, %v6198
        %v6200 = vsel %vm6167, %v5390, %v6199
        %v6201 = vsel %vm6169, %v5397, %v6200
        %v6202 = vsel %vm6171, %v5404, %v6201
        %v6203 = vsel %vm6173, %v5411, %v6202
        %v6204 = vsel %vm6175, %v5418, %v6203
        %v6205 = vsel %vm6163, %v5432, %v5425
        %v6206 = vsel %vm6165, %v5439, %v6205
        %v6207 = vsel %vm6167, %v5446, %v6206
        %v6208 = vsel %vm6169, %v5453, %v6207
        %v6209 = vsel %vm6171, %v5460, %v6208
        %v6210 = vsel %vm6173, %v5467, %v6209
        %v6211 = vsel %vm6175, %v5474, %v6210
        %v6212 = vsel %vm6163, %v5488, %v5481
        %v6213 = vsel %vm6165, %v5495, %v6212
        %v6214 = vsel %vm6167, %v5502, %v6213
        %v6215 = vsel %vm6169, %v5509, %v6214
        %v6216 = vsel %vm6171, %v5516, %v6215
        %v6217 = vsel %vm6173, %v5523, %v6216
        %v6218 = vsel %vm6175, %v5530, %v6217
        %v6219 = vsel %vm6163, %v5544, %v5537
        %v6220 = vsel %vm6165, %v5551, %v6219
        %v6221 = vsel %vm6167, %v5558, %v6220
        %v6222 = vsel %vm6169, %v5565, %v6221
        %v6223 = vsel %vm6171, %v5572, %v6222
        %v6224 = vsel %vm6173, %v5579, %v6223
        %v6225 = vsel %vm6175, %v5586, %v6224
        %v6226 = vsel %vm6163, %v5600, %v5593
        %v6227 = vsel %vm6165, %v5607, %v6226
        %v6228 = vsel %vm6167, %v5614, %v6227
        %v6229 = vsel %vm6169, %v5621, %v6228
        %v6230 = vsel %vm6171, %v5628, %v6229
        %v6231 = vsel %vm6173, %v5635, %v6230
        %v6232 = vsel %vm6175, %v5642, %v6231
        %v6233 = vsel %vm6163, %v5656, %v5649
        %v6234 = vsel %vm6165, %v5663, %v6233
        %v6235 = vsel %vm6167, %v5670, %v6234
        %v6236 = vsel %vm6169, %v5677, %v6235
        %v6237 = vsel %vm6171, %v5684, %v6236
        %v6238 = vsel %vm6173, %v5691, %v6237
        %v6239 = vsel %vm6175, %v5698, %v6238
        %v6240 = vsel %vm6163, %v5712, %v5705
        %v6241 = vsel %vm6165, %v5719, %v6240
        %v6242 = vsel %vm6167, %v5726, %v6241
        %v6243 = vsel %vm6169, %v5733, %v6242
        %v6244 = vsel %vm6171, %v5740, %v6243
        %v6245 = vsel %vm6173, %v5747, %v6244
        %v6246 = vsel %vm6175, %v5754, %v6245
        %v6247 = vsel %vm6163, %v5768, %v5761
        %v6248 = vsel %vm6165, %v5775, %v6247
        %v6249 = vsel %vm6167, %v5782, %v6248
        %v6250 = vsel %vm6169, %v5789, %v6249
        %v6251 = vsel %vm6171, %v5796, %v6250
        %v6252 = vsel %vm6173, %v5803, %v6251
        %v6253 = vsel %vm6175, %v5810, %v6252
        %v6254 = vsel %vm6163, %v5824, %v5817
        %v6255 = vsel %vm6165, %v5831, %v6254
        %v6256 = vsel %vm6167, %v5838, %v6255
        %v6257 = vsel %vm6169, %v5845, %v6256
        %v6258 = vsel %vm6171, %v5852, %v6257
        %v6259 = vsel %vm6173, %v5859, %v6258
        %v6260 = vsel %vm6175, %v5866, %v6259
        %v6261 = vsel %vm6163, %v5880, %v5873
        %v6262 = vsel %vm6165, %v5887, %v6261
        %v6263 = vsel %vm6167, %v5894, %v6262
        %v6264 = vsel %vm6169, %v5901, %v6263
        %v6265 = vsel %vm6171, %v5908, %v6264
        %v6266 = vsel %vm6173, %v5915, %v6265
        %v6267 = vsel %vm6175, %v5922, %v6266
        %v6268 = vsel %vm6163, %v5936, %v5929
        %v6269 = vsel %vm6165, %v5943, %v6268
        %v6270 = vsel %vm6167, %v5950, %v6269
        %v6271 = vsel %vm6169, %v5957, %v6270
        %v6272 = vsel %vm6171, %v5964, %v6271
        %v6273 = vsel %vm6173, %v5971, %v6272
        %v6274 = vsel %vm6175, %v5978, %v6273
        %v6275 = vsel %vm6163, %v5992, %v5985
        %v6276 = vsel %vm6165, %v5999, %v6275
        %v6277 = vsel %vm6167, %v6006, %v6276
        %v6278 = vsel %vm6169, %v6013, %v6277
        %v6279 = vsel %vm6171, %v6020, %v6278
        %v6280 = vsel %vm6173, %v6027, %v6279
        %v6281 = vsel %vm6175, %v6034, %v6280
        %6298 = vxpose.xlu0.b32.start [1/16] %v6176, 128
        %6299 = vxpose.xlu0.b32.cont [2/16] %v6183, 128
        %6300 = vxpose.xlu0.b32.cont [3/16] %v6190, 128
        %6301 = vxpose.xlu0.b32.cont [4/16] %v6197, 128
        %6302 = vxpose.xlu0.b32.cont [5/16] %v6204, 128
        %6303 = vxpose.xlu0.b32.cont [6/16] %v6211, 128
        %6304 = vxpose.xlu0.b32.cont [7/16] %v6218, 128
        %6305 = vxpose.xlu0.b32.cont [8/16] %v6225, 128
        %6306 = vxpose.xlu0.b32.cont [9/16] %v6232, 128
        %6307 = vxpose.xlu0.b32.cont [10/16] %v6239, 128
        %6308 = vxpose.xlu0.b32.cont [11/16] %v6246, 128
        %6309 = vxpose.xlu0.b32.cont [12/16] %v6253, 128
        %6310 = vxpose.xlu0.b32.cont [13/16] %v6260, 128
        %6311 = vxpose.xlu0.b32.cont [14/16] %v6267, 128
        %6312 = vxpose.xlu0.b32.cont [15/16] %v6274, 128
        %6313 = vxpose.xlu0.b32.end [16/16] %v6281, 128
        %v6314 = vpop.trf.xlu0
        %v6315 = vpop.trf.xlu0
        %v6316 = vpop.trf.xlu0
        %v6317 = vpop.trf.xlu0
        %v6318 = vpop.trf.xlu0
        %v6319 = vpop.trf.xlu0
        %v6320 = vpop.trf.xlu0
        %v6321 = vpop.trf.xlu0
        %v6322 = vpop.trf.xlu0
        %v6323 = vpop.trf.xlu0
        %v6324 = vpop.trf.xlu0
        %v6325 = vpop.trf.xlu0
        %v6326 = vpop.trf.xlu0
        %v6327 = vpop.trf.xlu0
        %v6328 = vpop.trf.xlu0
        %v6329 = vpop.trf.xlu0
        %6330 = vst [vmem:[%s312] sm:$0xff] %v6314
        %6331 = vst [vmem:[%s312 + $0x8] sm:$0xff] %v6315
        %6332 = vst [vmem:[%s312 + $0x10] sm:$0xff] %v6316
        %6333 = vst [vmem:[%s312 + $0x18] sm:$0xff] %v6317
        %s6334 = sand.u32 %s158, 1
        %s6335 = scalar_lea.sflag [#allocation4], %s6334
        %s6336 = sand.u32 %s158, 1
        %s6337 = smul.addr %s6336, 32
        %s6338 = scalar_lea.vmem [#allocation11], %s6337
        // Predicated region
        $region61: #{tpu_custom_call.1} parent=39 // pred_check
          %p6339 = pneg %p168
        $region62: #{tpu_custom_call.1} parent=39 // pred_check_branch
          %6341 = sbr.rel (%p6339) target = $region64
        $region63: #{tpu_custom_call.1} parent=39 // pred_region
          %s6343 = ssub.s32 512, 512
          %6344 = vsyncadd %s6335, %s6343
          %s6345 = smul.addr %s28, 4
          %s6346 = sadd.s32 %s29, %s6345
          %s6347 = smul.addr %s6346, 128
          %s6348 = scalar_lea.hbm %s5, %s6347
          %s6349 = sshll.u32 %s6338, 4
          %s6350 = int_to_ptr.vmem [resolvable:$true] %s6349
          %6355 = dma.vmem_to_hbm [thread:$0]  %s6350, 512, %s6348, %s6335, 128, 128, 8
        $region64: #{tpu_custom_call.1} parent=39 // pred_fallthru
          _
      $region40: #{tpu_custom_call.1} parent=5 // pred_fallthru
        _
      %p6356 = scmp.le.s32.totalorder 2, %s19
      // Predicated region
      $region65: #{tpu_custom_call.1} parent=5 // pred_check
        %p6357 = pneg %p6356
      $region66: #{tpu_custom_call.1} parent=5 // pred_check_branch
        %6359 = sbr.rel (%p6357) target = $region68
      $region67: #{tpu_custom_call.1} parent=5 // pred_region
        %s6360 = ssub.s32 %s19, 2
        // Predicated region
        $region69: #{tpu_custom_call.1} parent=67 // pred_check
          %p6361 = pneg %p174
        $region70: #{tpu_custom_call.1} parent=67 // pred_check_branch
          %6363 = sbr.rel (%p6361) target = $region72
        $region71: #{tpu_custom_call.1} parent=67 // pred_region
          %s6364 = sand.u32 %s159, 1
          %s6365 = scalar_lea.sflag [#allocation4], %s6364
          %s6366 = sand.u32 %s159, 1
          %s6367 = smul.addr %s6366, 32
          %s6368 = scalar_lea.vmem [#allocation11], %s6367
          %6369 = dma.done %s6365, 512
        $region72: #{tpu_custom_call.1} parent=67 // pred_fallthru
          _
      $region68: #{tpu_custom_call.1} parent=5 // pred_fallthru
        _
    $region6: #{tpu_custom_call.1} parent=1 // loop_footer
      %s23 = sadd.s32 1, %s19
    $region7: #{tpu_custom_call.1} parent=1 // loop_footer_branch
      %18 = sbr.rel target = $region3
    $region8: #{tpu_custom_call.1} parent=1 // loop_exit
      _
    %6370 = vsyncpa [#allocation3], 1
    %s6371 = scalar_lea.sflag [#allocation3], 1
    %6372 = vsyncpa %s6371, 1
    %6373 = vsyncpa [#allocation6], 1
    %6374 = vsyncpa [#allocation9], 1
    %6375 = vsyncpa [#allocation4], 1
    %s6376 = scalar_lea.sflag [#allocation4], 1
    %6377 = vsyncpa %s6376, 1

</llo_original>
